<compile_context>
chip_gen: v6e
topology: v6e:2x2x1
jax: 0.10.0
libtpu: 0.0.40
codegen_flags: <defaults>
</compile_context>

<pallas_src>
import functools

import jax
import jax.numpy as jnp
from jax.experimental import pallas as pl
from jax.experimental.pallas import tpu as pltpu

# ---------------- config (small, consistent with a tiny DeiT) ----------------
B = 2             # batch
C_IN = 3          # input channels
IMG = 16          # image size
PATCH = 8         # patch size -> 4 patches
NUM_PATCHES = (IMG // PATCH) ** 2
PATCH_DIM = C_IN * PATCH * PATCH            # 192
EMBED_DIM = 32
NUM_HEADS = 4
HEAD_DIM = EMBED_DIM // NUM_HEADS           # 8
DEPTH = 2
MLP_HIDDEN = 4 * EMBED_DIM                  # 128
SEQ = NUM_PATCHES + 1                       # +1 cls token
EXTRA_TOKEN_NUMS = 2                        # only affects pos_embed_new (unused here)
EPS = 1e-6                                  # timm ViT LayerNorm eps

BLOCK_KEYS = ('ln1_w', 'ln1_b', 'q_w', 'q_b', 'k_w', 'k_b', 'v_w', 'v_b',
              'proj_w', 'proj_b', 'ln2_w', 'ln2_b', 'fc1_w', 'fc1_b',
              'fc2_w', 'fc2_b')
PER_BLOCK_PARAMS = len(BLOCK_KEYS)          # 16


# ------------------------------ kernel helpers --------------------------------
def _layernorm(x, w, b):
    mu = jnp.mean(x, axis=-1, keepdims=True)
    xc = x - mu
    var = jnp.mean(xc * xc, axis=-1, keepdims=True)
    return xc * jax.lax.rsqrt(var + EPS) * w + b


def _erf(x):
    # Abramowitz & Stegun 7.1.26 rational approximation, |err| <= 1.5e-7.
    # Used so exact-GELU lowers on Mosaic (only EUP exp needed).
    a1, a2, a3, a4, a5 = 0.254829592, -0.284496736, 1.421413741, -1.453152027, 1.061405429
    p = 0.3275911
    s = jnp.where(x >= 0.0, 1.0, -1.0)
    ax = jnp.abs(x)
    t = 1.0 / (1.0 + p * ax)
    poly = ((((a5 * t + a4) * t + a3) * t + a2) * t + a1) * t
    return s * (1.0 - poly * jnp.exp(-ax * ax))


def _gelu(x):
    # PyTorch nn.GELU() default = exact erf-GELU.
    return 0.5 * x * (1.0 + _erf(x * 0.7071067811865476))


def _block(x, p, num_heads):
    """One transformer block on a [S, D] f32 token slab (single image)."""
    (ln1w, ln1b, qw, qb, kw, kb, vw, vb, pw, pb,
     ln2w, ln2b, f1w, f1b, f2w, f2b) = p
    seq, dim = x.shape

    # --- MHSA ---
    h = _layernorm(x, ln1w[...], ln1b[...])
    h16 = h.astype(jnp.bfloat16)

    acc = jnp.zeros((seq, dim), jnp.float32)
    for hd in range(num_heads):           # static unroll; leading-axis ref index,
        q = jnp.dot(h16, qw[hd], preferred_element_type=jnp.float32) + qb[hd]
        k = jnp.dot(h16, kw[hd], preferred_element_type=jnp.float32) + kb[hd]
        v = jnp.dot(h16, vw[hd], preferred_element_type=jnp.float32) + vb[hd]
        # attention scale already folded into qw/qb at init.
        s = jnp.einsum('qe,ke->qk', q.astype(jnp.bfloat16), k.astype(jnp.bfloat16),
                       preferred_element_type=jnp.float32)
        s = s - jnp.max(s, axis=-1, keepdims=True)
        a = jnp.exp(s)
        a = a * pl.reciprocal(jnp.sum(a, axis=-1, keepdims=True), approx=True)
        o = jnp.dot(a.astype(jnp.bfloat16), v.astype(jnp.bfloat16),
                    preferred_element_type=jnp.float32)
        # per-head output projection slab -> no concat of head outputs needed.
        acc = acc + jnp.dot(o.astype(jnp.bfloat16), pw[hd],
                            preferred_element_type=jnp.float32)
    x = x + acc + pb[...]

    # --- MLP ---
    h = _layernorm(x, ln2w[...], ln2b[...])
    h1 = jnp.dot(h.astype(jnp.bfloat16), f1w[...],
                 preferred_element_type=jnp.float32) + f1b[...]
    g = _gelu(h1)
    h2 = jnp.dot(g.astype(jnp.bfloat16), f2w[...],
                 preferred_element_type=jnp.float32) + f2b[...]
    return x + h2


# ------------------------------ fused forward kernel --------------------------
def fused_forward_kernel(depth, num_heads, *refs):
    patches_ref, pe_w, pe_b, cls_ref, pos_ref = refs[:5]
    blk_refs = refs[5:5 + PER_BLOCK_PARAMS * depth]
    idx = 5 + PER_BLOCK_PARAMS * depth
    norm_w = refs[idx]
    norm_b = refs[idx + 1]
    out_ref = refs[idx + 2]
    x_scr = refs[idx + 3]

    # patch embed (conv k=s=patch as matmul) for this image
    p16 = patches_ref[0].astype(jnp.bfloat16)                       # [N, C*P*P]
    tok = jnp.dot(p16, pe_w[...], preferred_element_type=jnp.float32) + pe_b[...]

    # prepend cls token and add position embedding (pos_drop = identity at eval)
    x_scr[0:1, :] = cls_ref[0] + pos_ref[0, 0:1, :]
    x_scr[1:, :] = tok + pos_ref[0, 1:, :]
    x = x_scr[...]                                                  # [S, D]

    for i in range(depth):
        p = blk_refs[i * PER_BLOCK_PARAMS:(i + 1) * PER_BLOCK_PARAMS]
        x = _block(x, p, num_heads)
        # immediate feature would be captured at immediate_layer; not returned
        # in the default only_feat path.

    # final LayerNorm: only the CLS row is returned, LN is row-wise -> norm row 0.
    cls = _layernorm(x[0:1, :], norm_w[...], norm_b[...])
    out_ref[0] = cls


# ------------------------------ host-side glue ---------------------------------
def im2col(x, p):
    # x: NCHW [B, C, H, W] -> [B, N, C*p*p], patch order row-major over (h', w')
    b, c, h, w = x.shape
    x = x.reshape(b, c, h // p, p, w // p, p)
    x = x.transpose(0, 2, 4, 1, 3, 5)
    return x.reshape(b, (h // p) * (w // p), c * p * p)


def _resident_spec(shape):
    # Whole array resident in VMEM; same block for every grid step (no re-DMA).
    n = len(shape)
    return pl.BlockSpec(shape, lambda b, _n=n: (0,) * _n)


def forward(x, params):
    """SelfPromptDeit.forward(x) (only_feat=True, shortcut=False,
    return_immediate_feat=False, break_immediate=False) -> [B, D] CLS feature."""
    bsz = x.shape[0]
    patches = im2col(x, PATCH)                                      # [B, N, C*P*P]

    flat = [patches, params['pe_w'], params['pe_b'],
            params['cls_token'], params['pos_embed']]
    for blk in params['blocks']:
        flat.extend(blk[k] for k in BLOCK_KEYS)
    flat.extend([params['norm_w'], params['norm_b']])

    in_specs = [pl.BlockSpec((1, NUM_PATCHES, PATCH_DIM), lambda b: (b, 0, 0))]
    in_specs += [_resident_spec(a.shape) for a in flat[1:]]

    kernel = functools.partial(fused_forward_kernel,
                               len(params['blocks']), NUM_HEADS)
    out = pl.pallas_call(
        kernel,
        out_shape=jax.ShapeDtypeStruct((bsz, 1, EMBED_DIM), jnp.float32),
        grid_spec=pltpu.PrefetchScalarGridSpec(
            num_scalar_prefetch=0,
            grid=(bsz,),
            in_specs=in_specs,
            out_specs=pl.BlockSpec((1, 1, EMBED_DIM), lambda b: (b, 0, 0)),
            scratch_shapes=[pltpu.VMEM((SEQ, EMBED_DIM), jnp.float32)]),
        compiler_params=pltpu.CompilerParams(
            dimension_semantics=("parallel",)),   # 2 TCs on v7x take one image each
    )(*flat)
    return out.reshape(bsz, EMBED_DIM)


def init_params(key):
    ks = iter(jax.random.split(key, 128))
    scale = HEAD_DIM ** -0.5

    def nrm(shape, std=0.02):
        return std * jax.random.normal(next(ks), shape, dtype=jnp.float32)

    params = {
        # patch embed conv stored as [Cin*P*P, D] (flattened & transposed), bf16 for MXU
        'pe_w': nrm((PATCH_DIM, EMBED_DIM)).astype(jnp.bfloat16),
        'pe_b': jnp.zeros((1, EMBED_DIM), jnp.float32),
        'cls_token': nrm((1, 1, EMBED_DIM)),
        'pos_embed': nrm((1, SEQ, EMBED_DIM)),
        # pos_embed_new from SelfPrompt.__init__: unused in forward_features
        'pos_embed_new': jnp.zeros((1, NUM_PATCHES + EXTRA_TOKEN_NUMS, EMBED_DIM),
                                   jnp.float32),
        'norm_w': jnp.ones((1, EMBED_DIM), jnp.float32),
        'norm_b': jnp.zeros((1, EMBED_DIM), jnp.float32),
        'blocks': [],
    }
    for _ in range(DEPTH):
        params['blocks'].append({
            'ln1_w': jnp.ones((1, EMBED_DIM), jnp.float32),
            'ln1_b': jnp.zeros((1, EMBED_DIM), jnp.float32),
            # head-major weights; attention scale folded into q weight & bias.
            'q_w': (nrm((NUM_HEADS, EMBED_DIM, HEAD_DIM)) * scale).astype(jnp.bfloat16),
            'q_b': nrm((NUM_HEADS, 1, HEAD_DIM)) * scale,
            'k_w': nrm((NUM_HEADS, EMBED_DIM, HEAD_DIM)).astype(jnp.bfloat16),
            'k_b': nrm((NUM_HEADS, 1, HEAD_DIM)),
            'v_w': nrm((NUM_HEADS, EMBED_DIM, HEAD_DIM)).astype(jnp.bfloat16),
            'v_b': nrm((NUM_HEADS, 1, HEAD_DIM)),
            'proj_w': nrm((NUM_HEADS, HEAD_DIM, EMBED_DIM)).astype(jnp.bfloat16),
            'proj_b': jnp.zeros((1, EMBED_DIM), jnp.float32),
            'ln2_w': jnp.ones((1, EMBED_DIM), jnp.float32),
            'ln2_b': jnp.zeros((1, EMBED_DIM), jnp.float32),
            'fc1_w': nrm((EMBED_DIM, MLP_HIDDEN)).astype(jnp.bfloat16),
            'fc1_b': jnp.zeros((1, MLP_HIDDEN), jnp.float32),
            'fc2_w': nrm((MLP_HIDDEN, EMBED_DIM)).astype(jnp.bfloat16),
            'fc2_b': jnp.zeros((1, EMBED_DIM), jnp.float32),
        })
    return params


if __name__ == "__main__":
    key = jax.random.PRNGKey(0)
    pkey, xkey = jax.random.split(key)
    params = init_params(pkey)
    x = jax.random.normal(xkey, (B, C_IN, IMG, IMG), dtype=jnp.float32)

    out = jax.jit(forward)(x, params)
    out = jax.block_until_ready(out)
    assert out.shape == (B, EMBED_DIM), out.shape
    assert jnp.all(jnp.isfinite(out))
    print("KERNEL_OK")
</pallas_src>

<mosaic_0001>
module attributes {stable_mosaic.version = 11 : i64} {
  func.func @fused_forward_kernel(%arg0: i32, %arg1: memref<1x4x192xf32, #tpu.memory_space<vmem>>, %arg2: memref<192x32xbf16, #tpu.memory_space<vmem>>, %arg3: memref<1x32xf32, #tpu.memory_space<vmem>>, %arg4: memref<1x1x32xf32, #tpu.memory_space<vmem>>, %arg5: memref<1x5x32xf32, #tpu.memory_space<vmem>>, %arg6: memref<1x32xf32, #tpu.memory_space<vmem>>, %arg7: memref<1x32xf32, #tpu.memory_space<vmem>>, %arg8: memref<4x32x8xbf16, #tpu.memory_space<vmem>>, %arg9: memref<4x1x8xf32, #tpu.memory_space<vmem>>, %arg10: memref<4x32x8xbf16, #tpu.memory_space<vmem>>, %arg11: memref<4x1x8xf32, #tpu.memory_space<vmem>>, %arg12: memref<4x32x8xbf16, #tpu.memory_space<vmem>>, %arg13: memref<4x1x8xf32, #tpu.memory_space<vmem>>, %arg14: memref<4x8x32xbf16, #tpu.memory_space<vmem>>, %arg15: memref<1x32xf32, #tpu.memory_space<vmem>>, %arg16: memref<1x32xf32, #tpu.memory_space<vmem>>, %arg17: memref<1x32xf32, #tpu.memory_space<vmem>>, %arg18: memref<32x128xbf16, #tpu.memory_space<vmem>>, %arg19: memref<1x128xf32, #tpu.memory_space<vmem>>, %arg20: memref<128x32xbf16, #tpu.memory_space<vmem>>, %arg21: memref<1x32xf32, #tpu.memory_space<vmem>>, %arg22: memref<1x32xf32, #tpu.memory_space<vmem>>, %arg23: memref<1x32xf32, #tpu.memory_space<vmem>>, %arg24: memref<4x32x8xbf16, #tpu.memory_space<vmem>>, %arg25: memref<4x1x8xf32, #tpu.memory_space<vmem>>, %arg26: memref<4x32x8xbf16, #tpu.memory_space<vmem>>, %arg27: memref<4x1x8xf32, #tpu.memory_space<vmem>>, %arg28: memref<4x32x8xbf16, #tpu.memory_space<vmem>>, %arg29: memref<4x1x8xf32, #tpu.memory_space<vmem>>, %arg30: memref<4x8x32xbf16, #tpu.memory_space<vmem>>, %arg31: memref<1x32xf32, #tpu.memory_space<vmem>>, %arg32: memref<1x32xf32, #tpu.memory_space<vmem>>, %arg33: memref<1x32xf32, #tpu.memory_space<vmem>>, %arg34: memref<32x128xbf16, #tpu.memory_space<vmem>>, %arg35: memref<1x128xf32, #tpu.memory_space<vmem>>, %arg36: memref<128x32xbf16, #tpu.memory_space<vmem>>, %arg37: memref<1x32xf32, #tpu.memory_space<vmem>>, %arg38: memref<1x32xf32, #tpu.memory_space<vmem>>, %arg39: memref<1x32xf32, #tpu.memory_space<vmem>>, %arg40: memref<1x1x32xf32, #tpu.memory_space<vmem>>, %arg41: memref<5x32xf32, #tpu.memory_space<vmem>>) attributes {dimension_semantics = [#tpu.dimension_semantics<parallel>], iteration_bounds = array<i64: 2>, scalar_prefetch = 0 : i64, scratch_operands = 1 : i64, tpu.core_type = #tpu.core_type<tc>, window_params = [{transform_indices = @transform_0, window_bounds = array<i64: 1, 4, 192>}, {pipeline_mode = #tpu.pipeline_mode<synchronous>, transform_indices = @transform_1, window_bounds = array<i64: 192, 32>}, {pipeline_mode = #tpu.pipeline_mode<synchronous>, transform_indices = @transform_2, window_bounds = array<i64: 1, 32>}, {pipeline_mode = #tpu.pipeline_mode<synchronous>, transform_indices = @transform_3, window_bounds = array<i64: 1, 1, 32>}, {pipeline_mode = #tpu.pipeline_mode<synchronous>, transform_indices = @transform_4, window_bounds = array<i64: 1, 5, 32>}, {pipeline_mode = #tpu.pipeline_mode<synchronous>, transform_indices = @transform_5, window_bounds = array<i64: 1, 32>}, {pipeline_mode = #tpu.pipeline_mode<synchronous>, transform_indices = @transform_6, window_bounds = array<i64: 1, 32>}, {pipeline_mode = #tpu.pipeline_mode<synchronous>, transform_indices = @transform_7, window_bounds = array<i64: 4, 32, 8>}, {pipeline_mode = #tpu.pipeline_mode<synchronous>, transform_indices = @transform_8, window_bounds = array<i64: 4, 1, 8>}, {pipeline_mode = #tpu.pipeline_mode<synchronous>, transform_indices = @transform_9, window_bounds = array<i64: 4, 32, 8>}, {pipeline_mode = #tpu.pipeline_mode<synchronous>, transform_indices = @transform_10, window_bounds = array<i64: 4, 1, 8>}, {pipeline_mode = #tpu.pipeline_mode<synchronous>, transform_indices = @transform_11, window_bounds = array<i64: 4, 32, 8>}, {pipeline_mode = #tpu.pipeline_mode<synchronous>, transform_indices = @transform_12, window_bounds = array<i64: 4, 1, 8>}, {pipeline_mode = #tpu.pipeline_mode<synchronous>, transform_indices = @transform_13, window_bounds = array<i64: 4, 8, 32>}, {pipeline_mode = #tpu.pipeline_mode<synchronous>, transform_indices = @transform_14, window_bounds = array<i64: 1, 32>}, {pipeline_mode = #tpu.pipeline_mode<synchronous>, transform_indices = @transform_15, window_bounds = array<i64: 1, 32>}, {pipeline_mode = #tpu.pipeline_mode<synchronous>, transform_indices = @transform_16, window_bounds = array<i64: 1, 32>}, {pipeline_mode = #tpu.pipeline_mode<synchronous>, transform_indices = @transform_17, window_bounds = array<i64: 32, 128>}, {pipeline_mode = #tpu.pipeline_mode<synchronous>, transform_indices = @transform_18, window_bounds = array<i64: 1, 128>}, {pipeline_mode = #tpu.pipeline_mode<synchronous>, transform_indices = @transform_19, window_bounds = array<i64: 128, 32>}, {pipeline_mode = #tpu.pipeline_mode<synchronous>, transform_indices = @transform_20, window_bounds = array<i64: 1, 32>}, {pipeline_mode = #tpu.pipeline_mode<synchronous>, transform_indices = @transform_21, window_bounds = array<i64: 1, 32>}, {pipeline_mode = #tpu.pipeline_mode<synchronous>, transform_indices = @transform_22, window_bounds = array<i64: 1, 32>}, {pipeline_mode = #tpu.pipeline_mode<synchronous>, transform_indices = @transform_23, window_bounds = array<i64: 4, 32, 8>}, {pipeline_mode = #tpu.pipeline_mode<synchronous>, transform_indices = @transform_24, window_bounds = array<i64: 4, 1, 8>}, {pipeline_mode = #tpu.pipeline_mode<synchronous>, transform_indices = @transform_25, window_bounds = array<i64: 4, 32, 8>}, {pipeline_mode = #tpu.pipeline_mode<synchronous>, transform_indices = @transform_26, window_bounds = array<i64: 4, 1, 8>}, {pipeline_mode = #tpu.pipeline_mode<synchronous>, transform_indices = @transform_27, window_bounds = array<i64: 4, 32, 8>}, {pipeline_mode = #tpu.pipeline_mode<synchronous>, transform_indices = @transform_28, window_bounds = array<i64: 4, 1, 8>}, {pipeline_mode = #tpu.pipeline_mode<synchronous>, transform_indices = @transform_29, window_bounds = array<i64: 4, 8, 32>}, {pipeline_mode = #tpu.pipeline_mode<synchronous>, transform_indices = @transform_30, window_bounds = array<i64: 1, 32>}, {pipeline_mode = #tpu.pipeline_mode<synchronous>, transform_indices = @transform_31, window_bounds = array<i64: 1, 32>}, {pipeline_mode = #tpu.pipeline_mode<synchronous>, transform_indices = @transform_32, window_bounds = array<i64: 1, 32>}, {pipeline_mode = #tpu.pipeline_mode<synchronous>, transform_indices = @transform_33, window_bounds = array<i64: 32, 128>}, {pipeline_mode = #tpu.pipeline_mode<synchronous>, transform_indices = @transform_34, window_bounds = array<i64: 1, 128>}, {pipeline_mode = #tpu.pipeline_mode<synchronous>, transform_indices = @transform_35, window_bounds = array<i64: 128, 32>}, {pipeline_mode = #tpu.pipeline_mode<synchronous>, transform_indices = @transform_36, window_bounds = array<i64: 1, 32>}, {pipeline_mode = #tpu.pipeline_mode<synchronous>, transform_indices = @transform_37, window_bounds = array<i64: 1, 32>}, {pipeline_mode = #tpu.pipeline_mode<synchronous>, transform_indices = @transform_38, window_bounds = array<i64: 1, 32>}, {transform_indices = @transform_39, window_bounds = array<i64: 1, 1, 32>}]} {
    %c0 = arith.constant 0 : index
    %c0_0 = arith.constant 0 : index
    %c0_1 = arith.constant 0 : index
    %0 = vector.load %arg1[%c0, %c0_0, %c0_1] : memref<1x4x192xf32, #tpu.memory_space<vmem>>, vector<1x4x192xf32>
    %1 = vector.shape_cast %0 : vector<1x4x192xf32> to vector<4x192xf32>
    %2 = arith.truncf %1 : vector<4x192xf32> to vector<4x192xbf16>
    %c0_2 = arith.constant 0 : index
    %c0_3 = arith.constant 0 : index
    %3 = vector.load %arg2[%c0_2, %c0_3] : memref<192x32xbf16, #tpu.memory_space<vmem>>, vector<192x32xbf16>
    %cst = arith.constant dense<0.000000e+00> : vector<4x32xf32>
    %4 = tpu.matmul %2, %3, %cst {dimension_numbers = #tpu.dot_dimension_numbers<[1], [0], [0], [1], [0, 0, 1, 1], [], []>} : vector<4x192xbf16>, vector<192x32xbf16>, vector<4x32xf32> -> vector<4x32xf32>
    %c0_4 = arith.constant 0 : index
    %c0_5 = arith.constant 0 : index
    %5 = vector.load %arg3[%c0_4, %c0_5] : memref<1x32xf32, #tpu.memory_space<vmem>>, vector<1x32xf32>
    %6 = vector.broadcast %5 : vector<1x32xf32> to vector<4x32xf32>
    %7 = arith.addf %4, %6 : vector<4x32xf32>
    %c0_6 = arith.constant 0 : index
    %c0_7 = arith.constant 0 : index
    %c0_8 = arith.constant 0 : index
    %8 = vector.load %arg4[%c0_6, %c0_7, %c0_8] : memref<1x1x32xf32, #tpu.memory_space<vmem>>, vector<1x1x32xf32>
    %9 = vector.shape_cast %8 : vector<1x1x32xf32> to vector<1x32xf32>
    %c0_9 = arith.constant 0 : index
    %c0_10 = arith.constant 0 : index
    %c0_11 = arith.constant 0 : index
    %10 = vector.load %arg5[%c0_9, %c0_10, %c0_11] : memref<1x5x32xf32, #tpu.memory_space<vmem>>, vector<1x1x32xf32>
    %11 = vector.shape_cast %10 : vector<1x1x32xf32> to vector<1x32xf32>
    %12 = arith.addf %9, %11 : vector<1x32xf32>
    %c0_12 = arith.constant 0 : index
    %c0_13 = arith.constant 0 : index
    %13 = vector.load %arg41[%c0_12, %c0_13] : memref<5x32xf32, #tpu.memory_space<vmem>>, vector<1x32xf32>
    tpu.vector_store %arg41[%c0_12, %c0_13], %12 {strides = array<i32>} : memref<5x32xf32, #tpu.memory_space<vmem>>, vector<1x32xf32>,
    %c0_14 = arith.constant 0 : index
    %c1 = arith.constant 1 : index
    %c0_15 = arith.constant 0 : index
    %14 = vector.load %arg5[%c0_14, %c1, %c0_15] : memref<1x5x32xf32, #tpu.memory_space<vmem>>, vector<1x4x32xf32>
    %15 = vector.shape_cast %14 : vector<1x4x32xf32> to vector<4x32xf32>
    %16 = arith.addf %7, %15 : vector<4x32xf32>
    %c1_16 = arith.constant 1 : index
    %c0_17 = arith.constant 0 : index
    %17 = vector.load %arg41[%c1_16, %c0_17] : memref<5x32xf32, #tpu.memory_space<vmem>>, vector<4x32xf32>
    tpu.vector_store %arg41[%c1_16, %c0_17], %16 {strides = array<i32>} : memref<5x32xf32, #tpu.memory_space<vmem>>, vector<4x32xf32>,
    %c0_18 = arith.constant 0 : index
    %c0_19 = arith.constant 0 : index
    %18 = vector.load %arg41[%c0_18, %c0_19] : memref<5x32xf32, #tpu.memory_space<vmem>>, vector<5x32xf32>
    %c0_20 = arith.constant 0 : index
    %c0_21 = arith.constant 0 : index
    %19 = vector.load %arg6[%c0_20, %c0_21] : memref<1x32xf32, #tpu.memory_space<vmem>>, vector<1x32xf32>
    %c0_22 = arith.constant 0 : index
    %c0_23 = arith.constant 0 : index
    %20 = vector.load %arg7[%c0_22, %c0_23] : memref<1x32xf32, #tpu.memory_space<vmem>>, vector<1x32xf32>
    %cst_24 = arith.constant dense<0.000000e+00> : vector<5xf32>
    %21 = vector.multi_reduction <add>, %18, %cst_24 [1] : vector<5x32xf32> to vector<5xf32>
    %22 = vector.shape_cast %21 : vector<5xf32> to vector<5x1xf32>
    %cst_25 = arith.constant 3.200000e+01 : f32
    %23 = vector.broadcast %cst_25 : f32 to vector<5x1xf32>
    %24 = arith.divf %22, %23 : vector<5x1xf32>
    %25 = vector.broadcast %24 : vector<5x1xf32> to vector<5x32xf32>
    %26 = arith.subf %18, %25 : vector<5x32xf32>
    %27 = arith.mulf %26, %26 : vector<5x32xf32>
    %cst_26 = arith.constant dense<0.000000e+00> : vector<5xf32>
    %28 = vector.multi_reduction <add>, %27, %cst_26 [1] : vector<5x32xf32> to vector<5xf32>
    %29 = vector.shape_cast %28 : vector<5xf32> to vector<5x1xf32>
    %cst_27 = arith.constant 3.200000e+01 : f32
    %30 = vector.broadcast %cst_27 : f32 to vector<5x1xf32>
    %31 = arith.divf %29, %30 : vector<5x1xf32>
    %cst_28 = arith.constant 9.99999997E-7 : f32
    %32 = vector.broadcast %cst_28 : f32 to vector<5x1xf32>
    %33 = arith.addf %31, %32 : vector<5x1xf32>
    %34 = math.rsqrt %33 : vector<5x1xf32>
    %35 = vector.broadcast %34 : vector<5x1xf32> to vector<5x32xf32>
    %36 = arith.mulf %26, %35 : vector<5x32xf32>
    %37 = vector.broadcast %19 : vector<1x32xf32> to vector<5x32xf32>
    %38 = arith.mulf %36, %37 : vector<5x32xf32>
    %39 = vector.broadcast %20 : vector<1x32xf32> to vector<5x32xf32>
    %40 = arith.addf %38, %39 : vector<5x32xf32>
    %41 = arith.truncf %40 : vector<5x32xf32> to vector<5x32xbf16>
    %cst_29 = arith.constant 0.000000e+00 : f32
    %42 = vector.broadcast %cst_29 : f32 to vector<5x32xf32>
    %c0_30 = arith.constant 0 : index
    %c0_31 = arith.constant 0 : index
    %c0_32 = arith.constant 0 : index
    %43 = vector.load %arg8[%c0_30, %c0_31, %c0_32] : memref<4x32x8xbf16, #tpu.memory_space<vmem>>, vector<1x32x8xbf16>
    %44 = vector.shape_cast %43 : vector<1x32x8xbf16> to vector<32x8xbf16>
    %cst_33 = arith.constant dense<0.000000e+00> : vector<5x8xf32>
    %45 = tpu.matmul %41, %44, %cst_33 {dimension_numbers = #tpu.dot_dimension_numbers<[1], [0], [0], [1], [0, 0, 1, 1], [], []>} : vector<5x32xbf16>, vector<32x8xbf16>, vector<5x8xf32> -> vector<5x8xf32>
    %c0_34 = arith.constant 0 : index
    %c0_35 = arith.constant 0 : index
    %c0_36 = arith.constant 0 : index
    %46 = vector.load %arg9[%c0_34, %c0_35, %c0_36] : memref<4x1x8xf32, #tpu.memory_space<vmem>>, vector<1x1x8xf32>
    %47 = vector.shape_cast %46 : vector<1x1x8xf32> to vector<1x8xf32>
    %48 = vector.broadcast %47 : vector<1x8xf32> to vector<5x8xf32>
    %49 = arith.addf %45, %48 : vector<5x8xf32>
    %c0_37 = arith.constant 0 : index
    %c0_38 = arith.constant 0 : index
    %c0_39 = arith.constant 0 : index
    %50 = vector.load %arg10[%c0_37, %c0_38, %c0_39] : memref<4x32x8xbf16, #tpu.memory_space<vmem>>, vector<1x32x8xbf16>
    %51 = vector.shape_cast %50 : vector<1x32x8xbf16> to vector<32x8xbf16>
    %cst_40 = arith.constant dense<0.000000e+00> : vector<5x8xf32>
    %52 = tpu.matmul %41, %51, %cst_40 {dimension_numbers = #tpu.dot_dimension_numbers<[1], [0], [0], [1], [0, 0, 1, 1], [], []>} : vector<5x32xbf16>, vector<32x8xbf16>, vector<5x8xf32> -> vector<5x8xf32>
    %c0_41 = arith.constant 0 : index
    %c0_42 = arith.constant 0 : index
    %c0_43 = arith.constant 0 : index
    %53 = vector.load %arg11[%c0_41, %c0_42, %c0_43] : memref<4x1x8xf32, #tpu.memory_space<vmem>>, vector<1x1x8xf32>
    %54 = vector.shape_cast %53 : vector<1x1x8xf32> to vector<1x8xf32>
    %55 = vector.broadcast %54 : vector<1x8xf32> to vector<5x8xf32>
    %56 = arith.addf %52, %55 : vector<5x8xf32>
    %c0_44 = arith.constant 0 : index
    %c0_45 = arith.constant 0 : index
    %c0_46 = arith.constant 0 : index
    %57 = vector.load %arg12[%c0_44, %c0_45, %c0_46] : memref<4x32x8xbf16, #tpu.memory_space<vmem>>, vector<1x32x8xbf16>
    %58 = vector.shape_cast %57 : vector<1x32x8xbf16> to vector<32x8xbf16>
    %cst_47 = arith.constant dense<0.000000e+00> : vector<5x8xf32>
    %59 = tpu.matmul %41, %58, %cst_47 {dimension_numbers = #tpu.dot_dimension_numbers<[1], [0], [0], [1], [0, 0, 1, 1], [], []>} : vector<5x32xbf16>, vector<32x8xbf16>, vector<5x8xf32> -> vector<5x8xf32>
    %c0_48 = arith.constant 0 : index
    %c0_49 = arith.constant 0 : index
    %c0_50 = arith.constant 0 : index
    %60 = vector.load %arg13[%c0_48, %c0_49, %c0_50] : memref<4x1x8xf32, #tpu.memory_space<vmem>>, vector<1x1x8xf32>
    %61 = vector.shape_cast %60 : vector<1x1x8xf32> to vector<1x8xf32>
    %62 = vector.broadcast %61 : vector<1x8xf32> to vector<5x8xf32>
    %63 = arith.addf %59, %62 : vector<5x8xf32>
    %64 = arith.truncf %49 : vector<5x8xf32> to vector<5x8xbf16>
    %65 = arith.truncf %56 : vector<5x8xf32> to vector<5x8xbf16>
    "tpu.trace_start"() <{level = 10 : i32, message = "qe,ke->qk"}> : () -> ()
    %cst_51 = arith.constant dense<0.000000e+00> : vector<5x5xf32>
    %66 = tpu.matmul %64, %65, %cst_51 {dimension_numbers = #tpu.dot_dimension_numbers<[1], [1], [0], [0], [0, 0, 1, 0], [], []>} : vector<5x8xbf16>, vector<5x8xbf16>, vector<5x5xf32> -> vector<5x5xf32>
    "tpu.trace_stop"() : () -> ()
    %cst_52 = arith.constant dense<0xFF800000> : vector<5xf32>
    %67 = vector.multi_reduction <maximumf>, %66, %cst_52 [1] : vector<5x5xf32> to vector<5xf32>
    %68 = vector.shape_cast %67 : vector<5xf32> to vector<5x1xf32>
    %69 = vector.broadcast %68 : vector<5x1xf32> to vector<5x5xf32>
    %70 = arith.subf %66, %69 : vector<5x5xf32>
    %71 = math.exp %70 : vector<5x5xf32>
    %cst_53 = arith.constant dense<0.000000e+00> : vector<5xf32>
    %72 = vector.multi_reduction <add>, %71, %cst_53 [1] : vector<5x5xf32> to vector<5xf32>
    %73 = vector.shape_cast %72 : vector<5xf32> to vector<5x1xf32>
    %74 = tpu.reciprocal %73 {approx = true} : vector<5x1xf32> -> vector<5x1xf32>
    %75 = vector.broadcast %74 : vector<5x1xf32> to vector<5x5xf32>
    %76 = arith.mulf %71, %75 : vector<5x5xf32>
    %77 = arith.truncf %76 : vector<5x5xf32> to vector<5x5xbf16>
    %78 = arith.truncf %63 : vector<5x8xf32> to vector<5x8xbf16>
    %cst_54 = arith.constant dense<0.000000e+00> : vector<5x8xf32>
    %79 = tpu.matmul %77, %78, %cst_54 {dimension_numbers = #tpu.dot_dimension_numbers<[1], [0], [0], [1], [0, 0, 1, 1], [], []>} : vector<5x5xbf16>, vector<5x8xbf16>, vector<5x8xf32> -> vector<5x8xf32>
    %80 = arith.truncf %79 : vector<5x8xf32> to vector<5x8xbf16>
    %c0_55 = arith.constant 0 : index
    %c0_56 = arith.constant 0 : index
    %c0_57 = arith.constant 0 : index
    %81 = vector.load %arg14[%c0_55, %c0_56, %c0_57] : memref<4x8x32xbf16, #tpu.memory_space<vmem>>, vector<1x8x32xbf16>
    %82 = vector.shape_cast %81 : vector<1x8x32xbf16> to vector<8x32xbf16>
    %cst_58 = arith.constant dense<0.000000e+00> : vector<5x32xf32>
    %83 = tpu.matmul %80, %82, %cst_58 {dimension_numbers = #tpu.dot_dimension_numbers<[1], [0], [0], [1], [0, 0, 1, 1], [], []>} : vector<5x8xbf16>, vector<8x32xbf16>, vector<5x32xf32> -> vector<5x32xf32>
    %84 = arith.addf %42, %83 : vector<5x32xf32>
    %c1_59 = arith.constant 1 : index
    %c0_60 = arith.constant 0 : index
    %c0_61 = arith.constant 0 : index
    %85 = vector.load %arg8[%c1_59, %c0_60, %c0_61] : memref<4x32x8xbf16, #tpu.memory_space<vmem>>, vector<1x32x8xbf16>
    %86 = vector.shape_cast %85 : vector<1x32x8xbf16> to vector<32x8xbf16>
    %cst_62 = arith.constant dense<0.000000e+00> : vector<5x8xf32>
    %87 = tpu.matmul %41, %86, %cst_62 {dimension_numbers = #tpu.dot_dimension_numbers<[1], [0], [0], [1], [0, 0, 1, 1], [], []>} : vector<5x32xbf16>, vector<32x8xbf16>, vector<5x8xf32> -> vector<5x8xf32>
    %c1_63 = arith.constant 1 : index
    %c0_64 = arith.constant 0 : index
    %c0_65 = arith.constant 0 : index
    %88 = vector.load %arg9[%c1_63, %c0_64, %c0_65] : memref<4x1x8xf32, #tpu.memory_space<vmem>>, vector<1x1x8xf32>
    %89 = vector.shape_cast %88 : vector<1x1x8xf32> to vector<1x8xf32>
    %90 = vector.broadcast %89 : vector<1x8xf32> to vector<5x8xf32>
    %91 = arith.addf %87, %90 : vector<5x8xf32>
    %c1_66 = arith.constant 1 : index
    %c0_67 = arith.constant 0 : index
    %c0_68 = arith.constant 0 : index
    %92 = vector.load %arg10[%c1_66, %c0_67, %c0_68] : memref<4x32x8xbf16, #tpu.memory_space<vmem>>, vector<1x32x8xbf16>
    %93 = vector.shape_cast %92 : vector<1x32x8xbf16> to vector<32x8xbf16>
    %cst_69 = arith.constant dense<0.000000e+00> : vector<5x8xf32>
    %94 = tpu.matmul %41, %93, %cst_69 {dimension_numbers = #tpu.dot_dimension_numbers<[1], [0], [0], [1], [0, 0, 1, 1], [], []>} : vector<5x32xbf16>, vector<32x8xbf16>, vector<5x8xf32> -> vector<5x8xf32>
    %c1_70 = arith.constant 1 : index
    %c0_71 = arith.constant 0 : index
    %c0_72 = arith.constant 0 : index
    %95 = vector.load %arg11[%c1_70, %c0_71, %c0_72] : memref<4x1x8xf32, #tpu.memory_space<vmem>>, vector<1x1x8xf32>
    %96 = vector.shape_cast %95 : vector<1x1x8xf32> to vector<1x8xf32>
    %97 = vector.broadcast %96 : vector<1x8xf32> to vector<5x8xf32>
    %98 = arith.addf %94, %97 : vector<5x8xf32>
    %c1_73 = arith.constant 1 : index
    %c0_74 = arith.constant 0 : index
    %c0_75 = arith.constant 0 : index
    %99 = vector.load %arg12[%c1_73, %c0_74, %c0_75] : memref<4x32x8xbf16, #tpu.memory_space<vmem>>, vector<1x32x8xbf16>
    %100 = vector.shape_cast %99 : vector<1x32x8xbf16> to vector<32x8xbf16>
    %cst_76 = arith.constant dense<0.000000e+00> : vector<5x8xf32>
    %101 = tpu.matmul %41, %100, %cst_76 {dimension_numbers = #tpu.dot_dimension_numbers<[1], [0], [0], [1], [0, 0, 1, 1], [], []>} : vector<5x32xbf16>, vector<32x8xbf16>, vector<5x8xf32> -> vector<5x8xf32>
    %c1_77 = arith.constant 1 : index
    %c0_78 = arith.constant 0 : index
    %c0_79 = arith.constant 0 : index
    %102 = vector.load %arg13[%c1_77, %c0_78, %c0_79] : memref<4x1x8xf32, #tpu.memory_space<vmem>>, vector<1x1x8xf32>
    %103 = vector.shape_cast %102 : vector<1x1x8xf32> to vector<1x8xf32>
    %104 = vector.broadcast %103 : vector<1x8xf32> to vector<5x8xf32>
    %105 = arith.addf %101, %104 : vector<5x8xf32>
    %106 = arith.truncf %91 : vector<5x8xf32> to vector<5x8xbf16>
    %107 = arith.truncf %98 : vector<5x8xf32> to vector<5x8xbf16>
    "tpu.trace_start"() <{level = 10 : i32, message = "qe,ke->qk"}> : () -> ()
    %cst_80 = arith.constant dense<0.000000e+00> : vector<5x5xf32>
    %108 = tpu.matmul %106, %107, %cst_80 {dimension_numbers = #tpu.dot_dimension_numbers<[1], [1], [0], [0], [0, 0, 1, 0], [], []>} : vector<5x8xbf16>, vector<5x8xbf16>, vector<5x5xf32> -> vector<5x5xf32>
    "tpu.trace_stop"() : () -> ()
    %cst_81 = arith.constant dense<0xFF800000> : vector<5xf32>
    %109 = vector.multi_reduction <maximumf>, %108, %cst_81 [1] : vector<5x5xf32> to vector<5xf32>
    %110 = vector.shape_cast %109 : vector<5xf32> to vector<5x1xf32>
    %111 = vector.broadcast %110 : vector<5x1xf32> to vector<5x5xf32>
    %112 = arith.subf %108, %111 : vector<5x5xf32>
    %113 = math.exp %112 : vector<5x5xf32>
    %cst_82 = arith.constant dense<0.000000e+00> : vector<5xf32>
    %114 = vector.multi_reduction <add>, %113, %cst_82 [1] : vector<5x5xf32> to vector<5xf32>
    %115 = vector.shape_cast %114 : vector<5xf32> to vector<5x1xf32>
    %116 = tpu.reciprocal %115 {approx = true} : vector<5x1xf32> -> vector<5x1xf32>
    %117 = vector.broadcast %116 : vector<5x1xf32> to vector<5x5xf32>
    %118 = arith.mulf %113, %117 : vector<5x5xf32>
    %119 = arith.truncf %118 : vector<5x5xf32> to vector<5x5xbf16>
    %120 = arith.truncf %105 : vector<5x8xf32> to vector<5x8xbf16>
    %cst_83 = arith.constant dense<0.000000e+00> : vector<5x8xf32>
    %121 = tpu.matmul %119, %120, %cst_83 {dimension_numbers = #tpu.dot_dimension_numbers<[1], [0], [0], [1], [0, 0, 1, 1], [], []>} : vector<5x5xbf16>, vector<5x8xbf16>, vector<5x8xf32> -> vector<5x8xf32>
    %122 = arith.truncf %121 : vector<5x8xf32> to vector<5x8xbf16>
    %c1_84 = arith.constant 1 : index
    %c0_85 = arith.constant 0 : index
    %c0_86 = arith.constant 0 : index
    %123 = vector.load %arg14[%c1_84, %c0_85, %c0_86] : memref<4x8x32xbf16, #tpu.memory_space<vmem>>, vector<1x8x32xbf16>
    %124 = vector.shape_cast %123 : vector<1x8x32xbf16> to vector<8x32xbf16>
    %cst_87 = arith.constant dense<0.000000e+00> : vector<5x32xf32>
    %125 = tpu.matmul %122, %124, %cst_87 {dimension_numbers = #tpu.dot_dimension_numbers<[1], [0], [0], [1], [0, 0, 1, 1], [], []>} : vector<5x8xbf16>, vector<8x32xbf16>, vector<5x32xf32> -> vector<5x32xf32>
    %126 = arith.addf %84, %125 : vector<5x32xf32>
    %c2 = arith.constant 2 : index
    %c0_88 = arith.constant 0 : index
    %c0_89 = arith.constant 0 : index
    %127 = vector.load %arg8[%c2, %c0_88, %c0_89] : memref<4x32x8xbf16, #tpu.memory_space<vmem>>, vector<1x32x8xbf16>
    %128 = vector.shape_cast %127 : vector<1x32x8xbf16> to vector<32x8xbf16>
    %cst_90 = arith.constant dense<0.000000e+00> : vector<5x8xf32>
    %129 = tpu.matmul %41, %128, %cst_90 {dimension_numbers = #tpu.dot_dimension_numbers<[1], [0], [0], [1], [0, 0, 1, 1], [], []>} : vector<5x32xbf16>, vector<32x8xbf16>, vector<5x8xf32> -> vector<5x8xf32>
    %c2_91 = arith.constant 2 : index
    %c0_92 = arith.constant 0 : index
    %c0_93 = arith.constant 0 : index
    %130 = vector.load %arg9[%c2_91, %c0_92, %c0_93] : memref<4x1x8xf32, #tpu.memory_space<vmem>>, vector<1x1x8xf32>
    %131 = vector.shape_cast %130 : vector<1x1x8xf32> to vector<1x8xf32>
    %132 = vector.broadcast %131 : vector<1x8xf32> to vector<5x8xf32>
    %133 = arith.addf %129, %132 : vector<5x8xf32>
    %c2_94 = arith.constant 2 : index
    %c0_95 = arith.constant 0 : index
    %c0_96 = arith.constant 0 : index
    %134 = vector.load %arg10[%c2_94, %c0_95, %c0_96] : memref<4x32x8xbf16, #tpu.memory_space<vmem>>, vector<1x32x8xbf16>
    %135 = vector.shape_cast %134 : vector<1x32x8xbf16> to vector<32x8xbf16>
    %cst_97 = arith.constant dense<0.000000e+00> : vector<5x8xf32>
    %136 = tpu.matmul %41, %135, %cst_97 {dimension_numbers = #tpu.dot_dimension_numbers<[1], [0], [0], [1], [0, 0, 1, 1], [], []>} : vector<5x32xbf16>, vector<32x8xbf16>, vector<5x8xf32> -> vector<5x8xf32>
    %c2_98 = arith.constant 2 : index
    %c0_99 = arith.constant 0 : index
    %c0_100 = arith.constant 0 : index
    %137 = vector.load %arg11[%c2_98, %c0_99, %c0_100] : memref<4x1x8xf32, #tpu.memory_space<vmem>>, vector<1x1x8xf32>
    %138 = vector.shape_cast %137 : vector<1x1x8xf32> to vector<1x8xf32>
    %139 = vector.broadcast %138 : vector<1x8xf32> to vector<5x8xf32>
    %140 = arith.addf %136, %139 : vector<5x8xf32>
    %c2_101 = arith.constant 2 : index
    %c0_102 = arith.constant 0 : index
    %c0_103 = arith.constant 0 : index
    %141 = vector.load %arg12[%c2_101, %c0_102, %c0_103] : memref<4x32x8xbf16, #tpu.memory_space<vmem>>, vector<1x32x8xbf16>
    %142 = vector.shape_cast %141 : vector<1x32x8xbf16> to vector<32x8xbf16>
    %cst_104 = arith.constant dense<0.000000e+00> : vector<5x8xf32>
    %143 = tpu.matmul %41, %142, %cst_104 {dimension_numbers = #tpu.dot_dimension_numbers<[1], [0], [0], [1], [0, 0, 1, 1], [], []>} : vector<5x32xbf16>, vector<32x8xbf16>, vector<5x8xf32> -> vector<5x8xf32>
    %c2_105 = arith.constant 2 : index
    %c0_106 = arith.constant 0 : index
    %c0_107 = arith.constant 0 : index
    %144 = vector.load %arg13[%c2_105, %c0_106, %c0_107] : memref<4x1x8xf32, #tpu.memory_space<vmem>>, vector<1x1x8xf32>
    %145 = vector.shape_cast %144 : vector<1x1x8xf32> to vector<1x8xf32>
    %146 = vector.broadcast %145 : vector<1x8xf32> to vector<5x8xf32>
    %147 = arith.addf %143, %146 : vector<5x8xf32>
    %148 = arith.truncf %133 : vector<5x8xf32> to vector<5x8xbf16>
    %149 = arith.truncf %140 : vector<5x8xf32> to vector<5x8xbf16>
    "tpu.trace_start"() <{level = 10 : i32, message = "qe,ke->qk"}> : () -> ()
    %cst_108 = arith.constant dense<0.000000e+00> : vector<5x5xf32>
    %150 = tpu.matmul %148, %149, %cst_108 {dimension_numbers = #tpu.dot_dimension_numbers<[1], [1], [0], [0], [0, 0, 1, 0], [], []>} : vector<5x8xbf16>, vector<5x8xbf16>, vector<5x5xf32> -> vector<5x5xf32>
    "tpu.trace_stop"() : () -> ()
    %cst_109 = arith.constant dense<0xFF800000> : vector<5xf32>
    %151 = vector.multi_reduction <maximumf>, %150, %cst_109 [1] : vector<5x5xf32> to vector<5xf32>
    %152 = vector.shape_cast %151 : vector<5xf32> to vector<5x1xf32>
    %153 = vector.broadcast %152 : vector<5x1xf32> to vector<5x5xf32>
    %154 = arith.subf %150, %153 : vector<5x5xf32>
    %155 = math.exp %154 : vector<5x5xf32>
    %cst_110 = arith.constant dense<0.000000e+00> : vector<5xf32>
    %156 = vector.multi_reduction <add>, %155, %cst_110 [1] : vector<5x5xf32> to vector<5xf32>
    %157 = vector.shape_cast %156 : vector<5xf32> to vector<5x1xf32>
    %158 = tpu.reciprocal %157 {approx = true} : vector<5x1xf32> -> vector<5x1xf32>
    %159 = vector.broadcast %158 : vector<5x1xf32> to vector<5x5xf32>
    %160 = arith.mulf %155, %159 : vector<5x5xf32>
    %161 = arith.truncf %160 : vector<5x5xf32> to vector<5x5xbf16>
    %162 = arith.truncf %147 : vector<5x8xf32> to vector<5x8xbf16>
    %cst_111 = arith.constant dense<0.000000e+00> : vector<5x8xf32>
    %163 = tpu.matmul %161, %162, %cst_111 {dimension_numbers = #tpu.dot_dimension_numbers<[1], [0], [0], [1], [0, 0, 1, 1], [], []>} : vector<5x5xbf16>, vector<5x8xbf16>, vector<5x8xf32> -> vector<5x8xf32>
    %164 = arith.truncf %163 : vector<5x8xf32> to vector<5x8xbf16>
    %c2_112 = arith.constant 2 : index
    %c0_113 = arith.constant 0 : index
    %c0_114 = arith.constant 0 : index
    %165 = vector.load %arg14[%c2_112, %c0_113, %c0_114] : memref<4x8x32xbf16, #tpu.memory_space<vmem>>, vector<1x8x32xbf16>
    %166 = vector.shape_cast %165 : vector<1x8x32xbf16> to vector<8x32xbf16>
    %cst_115 = arith.constant dense<0.000000e+00> : vector<5x32xf32>
    %167 = tpu.matmul %164, %166, %cst_115 {dimension_numbers = #tpu.dot_dimension_numbers<[1], [0], [0], [1], [0, 0, 1, 1], [], []>} : vector<5x8xbf16>, vector<8x32xbf16>, vector<5x32xf32> -> vector<5x32xf32>
    %168 = arith.addf %126, %167 : vector<5x32xf32>
    %c3 = arith.constant 3 : index
    %c0_116 = arith.constant 0 : index
    %c0_117 = arith.constant 0 : index
    %169 = vector.load %arg8[%c3, %c0_116, %c0_117] : memref<4x32x8xbf16, #tpu.memory_space<vmem>>, vector<1x32x8xbf16>
    %170 = vector.shape_cast %169 : vector<1x32x8xbf16> to vector<32x8xbf16>
    %cst_118 = arith.constant dense<0.000000e+00> : vector<5x8xf32>
    %171 = tpu.matmul %41, %170, %cst_118 {dimension_numbers = #tpu.dot_dimension_numbers<[1], [0], [0], [1], [0, 0, 1, 1], [], []>} : vector<5x32xbf16>, vector<32x8xbf16>, vector<5x8xf32> -> vector<5x8xf32>
    %c3_119 = arith.constant 3 : index
    %c0_120 = arith.constant 0 : index
    %c0_121 = arith.constant 0 : index
    %172 = vector.load %arg9[%c3_119, %c0_120, %c0_121] : memref<4x1x8xf32, #tpu.memory_space<vmem>>, vector<1x1x8xf32>
    %173 = vector.shape_cast %172 : vector<1x1x8xf32> to vector<1x8xf32>
    %174 = vector.broadcast %173 : vector<1x8xf32> to vector<5x8xf32>
    %175 = arith.addf %171, %174 : vector<5x8xf32>
    %c3_122 = arith.constant 3 : index
    %c0_123 = arith.constant 0 : index
    %c0_124 = arith.constant 0 : index
    %176 = vector.load %arg10[%c3_122, %c0_123, %c0_124] : memref<4x32x8xbf16, #tpu.memory_space<vmem>>, vector<1x32x8xbf16>
    %177 = vector.shape_cast %176 : vector<1x32x8xbf16> to vector<32x8xbf16>
    %cst_125 = arith.constant dense<0.000000e+00> : vector<5x8xf32>
    %178 = tpu.matmul %41, %177, %cst_125 {dimension_numbers = #tpu.dot_dimension_numbers<[1], [0], [0], [1], [0, 0, 1, 1], [], []>} : vector<5x32xbf16>, vector<32x8xbf16>, vector<5x8xf32> -> vector<5x8xf32>
    %c3_126 = arith.constant 3 : index
    %c0_127 = arith.constant 0 : index
    %c0_128 = arith.constant 0 : index
    %179 = vector.load %arg11[%c3_126, %c0_127, %c0_128] : memref<4x1x8xf32, #tpu.memory_space<vmem>>, vector<1x1x8xf32>
    %180 = vector.shape_cast %179 : vector<1x1x8xf32> to vector<1x8xf32>
    %181 = vector.broadcast %180 : vector<1x8xf32> to vector<5x8xf32>
    %182 = arith.addf %178, %181 : vector<5x8xf32>
    %c3_129 = arith.constant 3 : index
    %c0_130 = arith.constant 0 : index
    %c0_131 = arith.constant 0 : index
    %183 = vector.load %arg12[%c3_129, %c0_130, %c0_131] : memref<4x32x8xbf16, #tpu.memory_space<vmem>>, vector<1x32x8xbf16>
    %184 = vector.shape_cast %183 : vector<1x32x8xbf16> to vector<32x8xbf16>
    %cst_132 = arith.constant dense<0.000000e+00> : vector<5x8xf32>
    %185 = tpu.matmul %41, %184, %cst_132 {dimension_numbers = #tpu.dot_dimension_numbers<[1], [0], [0], [1], [0, 0, 1, 1], [], []>} : vector<5x32xbf16>, vector<32x8xbf16>, vector<5x8xf32> -> vector<5x8xf32>
    %c3_133 = arith.constant 3 : index
    %c0_134 = arith.constant 0 : index
    %c0_135 = arith.constant 0 : index
    %186 = vector.load %arg13[%c3_133, %c0_134, %c0_135] : memref<4x1x8xf32, #tpu.memory_space<vmem>>, vector<1x1x8xf32>
    %187 = vector.shape_cast %186 : vector<1x1x8xf32> to vector<1x8xf32>
    %188 = vector.broadcast %187 : vector<1x8xf32> to vector<5x8xf32>
    %189 = arith.addf %185, %188 : vector<5x8xf32>
    %190 = arith.truncf %175 : vector<5x8xf32> to vector<5x8xbf16>
    %191 = arith.truncf %182 : vector<5x8xf32> to vector<5x8xbf16>
    "tpu.trace_start"() <{level = 10 : i32, message = "qe,ke->qk"}> : () -> ()
    %cst_136 = arith.constant dense<0.000000e+00> : vector<5x5xf32>
    %192 = tpu.matmul %190, %191, %cst_136 {dimension_numbers = #tpu.dot_dimension_numbers<[1], [1], [0], [0], [0, 0, 1, 0], [], []>} : vector<5x8xbf16>, vector<5x8xbf16>, vector<5x5xf32> -> vector<5x5xf32>
    "tpu.trace_stop"() : () -> ()
    %cst_137 = arith.constant dense<0xFF800000> : vector<5xf32>
    %193 = vector.multi_reduction <maximumf>, %192, %cst_137 [1] : vector<5x5xf32> to vector<5xf32>
    %194 = vector.shape_cast %193 : vector<5xf32> to vector<5x1xf32>
    %195 = vector.broadcast %194 : vector<5x1xf32> to vector<5x5xf32>
    %196 = arith.subf %192, %195 : vector<5x5xf32>
    %197 = math.exp %196 : vector<5x5xf32>
    %cst_138 = arith.constant dense<0.000000e+00> : vector<5xf32>
    %198 = vector.multi_reduction <add>, %197, %cst_138 [1] : vector<5x5xf32> to vector<5xf32>
    %199 = vector.shape_cast %198 : vector<5xf32> to vector<5x1xf32>
    %200 = tpu.reciprocal %199 {approx = true} : vector<5x1xf32> -> vector<5x1xf32>
    %201 = vector.broadcast %200 : vector<5x1xf32> to vector<5x5xf32>
    %202 = arith.mulf %197, %201 : vector<5x5xf32>
    %203 = arith.truncf %202 : vector<5x5xf32> to vector<5x5xbf16>
    %204 = arith.truncf %189 : vector<5x8xf32> to vector<5x8xbf16>
    %cst_139 = arith.constant dense<0.000000e+00> : vector<5x8xf32>
    %205 = tpu.matmul %203, %204, %cst_139 {dimension_numbers = #tpu.dot_dimension_numbers<[1], [0], [0], [1], [0, 0, 1, 1], [], []>} : vector<5x5xbf16>, vector<5x8xbf16>, vector<5x8xf32> -> vector<5x8xf32>
    %206 = arith.truncf %205 : vector<5x8xf32> to vector<5x8xbf16>
    %c3_140 = arith.constant 3 : index
    %c0_141 = arith.constant 0 : index
    %c0_142 = arith.constant 0 : index
    %207 = vector.load %arg14[%c3_140, %c0_141, %c0_142] : memref<4x8x32xbf16, #tpu.memory_space<vmem>>, vector<1x8x32xbf16>
    %208 = vector.shape_cast %207 : vector<1x8x32xbf16> to vector<8x32xbf16>
    %cst_143 = arith.constant dense<0.000000e+00> : vector<5x32xf32>
    %209 = tpu.matmul %206, %208, %cst_143 {dimension_numbers = #tpu.dot_dimension_numbers<[1], [0], [0], [1], [0, 0, 1, 1], [], []>} : vector<5x8xbf16>, vector<8x32xbf16>, vector<5x32xf32> -> vector<5x32xf32>
    %210 = arith.addf %168, %209 : vector<5x32xf32>
    %211 = arith.addf %18, %210 : vector<5x32xf32>
    %c0_144 = arith.constant 0 : index
    %c0_145 = arith.constant 0 : index
    %212 = vector.load %arg15[%c0_144, %c0_145] : memref<1x32xf32, #tpu.memory_space<vmem>>, vector<1x32xf32>
    %213 = vector.broadcast %212 : vector<1x32xf32> to vector<5x32xf32>
    %214 = arith.addf %211, %213 : vector<5x32xf32>
    %c0_146 = arith.constant 0 : index
    %c0_147 = arith.constant 0 : index
    %215 = vector.load %arg16[%c0_146, %c0_147] : memref<1x32xf32, #tpu.memory_space<vmem>>, vector<1x32xf32>
    %c0_148 = arith.constant 0 : index
    %c0_149 = arith.constant 0 : index
    %216 = vector.load %arg17[%c0_148, %c0_149] : memref<1x32xf32, #tpu.memory_space<vmem>>, vector<1x32xf32>
    %cst_150 = arith.constant dense<0.000000e+00> : vector<5xf32>
    %217 = vector.multi_reduction <add>, %214, %cst_150 [1] : vector<5x32xf32> to vector<5xf32>
    %218 = vector.shape_cast %217 : vector<5xf32> to vector<5x1xf32>
    %cst_151 = arith.constant 3.200000e+01 : f32
    %219 = vector.broadcast %cst_151 : f32 to vector<5x1xf32>
    %220 = arith.divf %218, %219 : vector<5x1xf32>
    %221 = vector.broadcast %220 : vector<5x1xf32> to vector<5x32xf32>
    %222 = arith.subf %214, %221 : vector<5x32xf32>
    %223 = arith.mulf %222, %222 : vector<5x32xf32>
    %cst_152 = arith.constant dense<0.000000e+00> : vector<5xf32>
    %224 = vector.multi_reduction <add>, %223, %cst_152 [1] : vector<5x32xf32> to vector<5xf32>
    %225 = vector.shape_cast %224 : vector<5xf32> to vector<5x1xf32>
    %cst_153 = arith.constant 3.200000e+01 : f32
    %226 = vector.broadcast %cst_153 : f32 to vector<5x1xf32>
    %227 = arith.divf %225, %226 : vector<5x1xf32>
    %cst_154 = arith.constant 9.99999997E-7 : f32
    %228 = vector.broadcast %cst_154 : f32 to vector<5x1xf32>
    %229 = arith.addf %227, %228 : vector<5x1xf32>
    %230 = math.rsqrt %229 : vector<5x1xf32>
    %231 = vector.broadcast %230 : vector<5x1xf32> to vector<5x32xf32>
    %232 = arith.mulf %222, %231 : vector<5x32xf32>
    %233 = vector.broadcast %215 : vector<1x32xf32> to vector<5x32xf32>
    %234 = arith.mulf %232, %233 : vector<5x32xf32>
    %235 = vector.broadcast %216 : vector<1x32xf32> to vector<5x32xf32>
    %236 = arith.addf %234, %235 : vector<5x32xf32>
    %237 = arith.truncf %236 : vector<5x32xf32> to vector<5x32xbf16>
    %c0_155 = arith.constant 0 : index
    %c0_156 = arith.constant 0 : index
    %238 = vector.load %arg18[%c0_155, %c0_156] : memref<32x128xbf16, #tpu.memory_space<vmem>>, vector<32x128xbf16>
    %cst_157 = arith.constant dense<0.000000e+00> : vector<5x128xf32>
    %239 = tpu.matmul %237, %238, %cst_157 {dimension_numbers = #tpu.dot_dimension_numbers<[1], [0], [0], [1], [0, 0, 1, 1], [], []>} : vector<5x32xbf16>, vector<32x128xbf16>, vector<5x128xf32> -> vector<5x128xf32>
    %c0_158 = arith.constant 0 : index
    %c0_159 = arith.constant 0 : index
    %240 = vector.load %arg19[%c0_158, %c0_159] : memref<1x128xf32, #tpu.memory_space<vmem>>, vector<1x128xf32>
    %241 = vector.broadcast %240 : vector<1x128xf32> to vector<5x128xf32>
    %242 = arith.addf %239, %241 : vector<5x128xf32>
    %cst_160 = arith.constant 5.000000e-01 : f32
    %243 = vector.broadcast %cst_160 : f32 to vector<5x128xf32>
    %244 = arith.mulf %243, %242 : vector<5x128xf32>
    %cst_161 = arith.constant 0.707106769 : f32
    %245 = vector.broadcast %cst_161 : f32 to vector<5x128xf32>
    %246 = arith.mulf %242, %245 : vector<5x128xf32>
    %cst_162 = arith.constant 0.000000e+00 : f32
    %247 = vector.broadcast %cst_162 : f32 to vector<5x128xf32>
    %248 = arith.cmpf oge, %246, %247 : vector<5x128xf32>
    %cst_163 = arith.constant 1.000000e+00 : f32
    %cst_164 = arith.constant -1.000000e+00 : f32
    %249 = vector.broadcast %cst_163 : f32 to vector<5x128xf32>
    %250 = vector.broadcast %cst_164 : f32 to vector<5x128xf32>
    %251 = arith.select %248, %249, %250 : vector<5x128xi1>, vector<5x128xf32>
    %252 = math.absf %246 : vector<5x128xf32>
    %cst_165 = arith.constant 0.327591091 : f32
    %253 = vector.broadcast %cst_165 : f32 to vector<5x128xf32>
    %254 = arith.mulf %253, %252 : vector<5x128xf32>
    %cst_166 = arith.constant 1.000000e+00 : f32
    %255 = vector.broadcast %cst_166 : f32 to vector<5x128xf32>
    %256 = arith.addf %255, %254 : vector<5x128xf32>
    %cst_167 = arith.constant 1.000000e+00 : f32
    %257 = vector.broadcast %cst_167 : f32 to vector<5x128xf32>
    %258 = arith.divf %257, %256 : vector<5x128xf32>
    %cst_168 = arith.constant 1.06140542 : f32
    %259 = vector.broadcast %cst_168 : f32 to vector<5x128xf32>
    %260 = arith.mulf %259, %258 : vector<5x128xf32>
    %cst_169 = arith.constant -1.45315206 : f32
    %261 = vector.broadcast %cst_169 : f32 to vector<5x128xf32>
    %262 = arith.addf %260, %261 : vector<5x128xf32>
    %263 = arith.mulf %262, %258 : vector<5x128xf32>
    %cst_170 = arith.constant 1.42141378 : f32
    %264 = vector.broadcast %cst_170 : f32 to vector<5x128xf32>
    %265 = arith.addf %263, %264 : vector<5x128xf32>
    %266 = arith.mulf %265, %258 : vector<5x128xf32>
    %cst_171 = arith.constant -0.284496725 : f32
    %267 = vector.broadcast %cst_171 : f32 to vector<5x128xf32>
    %268 = arith.addf %266, %267 : vector<5x128xf32>
    %269 = arith.mulf %268, %258 : vector<5x128xf32>
    %cst_172 = arith.constant 0.254829586 : f32
    %270 = vector.broadcast %cst_172 : f32 to vector<5x128xf32>
    %271 = arith.addf %269, %270 : vector<5x128xf32>
    %272 = arith.mulf %271, %258 : vector<5x128xf32>
    %cst_173 = arith.constant 0.000000e+00 : f32
    %273 = vector.broadcast %cst_173 : f32 to vector<5x128xf32>
    %274 = arith.subf %273, %252 : vector<5x128xf32>
    %275 = arith.mulf %274, %252 : vector<5x128xf32>
    %276 = math.exp %275 : vector<5x128xf32>
    %277 = arith.mulf %272, %276 : vector<5x128xf32>
    %cst_174 = arith.constant 1.000000e+00 : f32
    %278 = vector.broadcast %cst_174 : f32 to vector<5x128xf32>
    %279 = arith.subf %278, %277 : vector<5x128xf32>
    %280 = arith.mulf %251, %279 : vector<5x128xf32>
    %cst_175 = arith.constant 1.000000e+00 : f32
    %281 = vector.broadcast %cst_175 : f32 to vector<5x128xf32>
    %282 = arith.addf %281, %280 : vector<5x128xf32>
    %283 = arith.mulf %244, %282 : vector<5x128xf32>
    %284 = arith.truncf %283 : vector<5x128xf32> to vector<5x128xbf16>
    %c0_176 = arith.constant 0 : index
    %c0_177 = arith.constant 0 : index
    %285 = vector.load %arg20[%c0_176, %c0_177] : memref<128x32xbf16, #tpu.memory_space<vmem>>, vector<128x32xbf16>
    %cst_178 = arith.constant dense<0.000000e+00> : vector<5x32xf32>
    %286 = tpu.matmul %284, %285, %cst_178 {dimension_numbers = #tpu.dot_dimension_numbers<[1], [0], [0], [1], [0, 0, 1, 1], [], []>} : vector<5x128xbf16>, vector<128x32xbf16>, vector<5x32xf32> -> vector<5x32xf32>
    %c0_179 = arith.constant 0 : index
    %c0_180 = arith.constant 0 : index
    %287 = vector.load %arg21[%c0_179, %c0_180] : memref<1x32xf32, #tpu.memory_space<vmem>>, vector<1x32xf32>
    %288 = vector.broadcast %287 : vector<1x32xf32> to vector<5x32xf32>
    %289 = arith.addf %286, %288 : vector<5x32xf32>
    %290 = arith.addf %214, %289 : vector<5x32xf32>
    %c0_181 = arith.constant 0 : index
    %c0_182 = arith.constant 0 : index
    %291 = vector.load %arg22[%c0_181, %c0_182] : memref<1x32xf32, #tpu.memory_space<vmem>>, vector<1x32xf32>
    %c0_183 = arith.constant 0 : index
    %c0_184 = arith.constant 0 : index
    %292 = vector.load %arg23[%c0_183, %c0_184] : memref<1x32xf32, #tpu.memory_space<vmem>>, vector<1x32xf32>
    %cst_185 = arith.constant dense<0.000000e+00> : vector<5xf32>
    %293 = vector.multi_reduction <add>, %290, %cst_185 [1] : vector<5x32xf32> to vector<5xf32>
    %294 = vector.shape_cast %293 : vector<5xf32> to vector<5x1xf32>
    %cst_186 = arith.constant 3.200000e+01 : f32
    %295 = vector.broadcast %cst_186 : f32 to vector<5x1xf32>
    %296 = arith.divf %294, %295 : vector<5x1xf32>
    %297 = vector.broadcast %296 : vector<5x1xf32> to vector<5x32xf32>
    %298 = arith.subf %290, %297 : vector<5x32xf32>
    %299 = arith.mulf %298, %298 : vector<5x32xf32>
    %cst_187 = arith.constant dense<0.000000e+00> : vector<5xf32>
    %300 = vector.multi_reduction <add>, %299, %cst_187 [1] : vector<5x32xf32> to vector<5xf32>
    %301 = vector.shape_cast %300 : vector<5xf32> to vector<5x1xf32>
    %cst_188 = arith.constant 3.200000e+01 : f32
    %302 = vector.broadcast %cst_188 : f32 to vector<5x1xf32>
    %303 = arith.divf %301, %302 : vector<5x1xf32>
    %cst_189 = arith.constant 9.99999997E-7 : f32
    %304 = vector.broadcast %cst_189 : f32 to vector<5x1xf32>
    %305 = arith.addf %303, %304 : vector<5x1xf32>
    %306 = math.rsqrt %305 : vector<5x1xf32>
    %307 = vector.broadcast %306 : vector<5x1xf32> to vector<5x32xf32>
    %308 = arith.mulf %298, %307 : vector<5x32xf32>
    %309 = vector.broadcast %291 : vector<1x32xf32> to vector<5x32xf32>
    %310 = arith.mulf %308, %309 : vector<5x32xf32>
    %311 = vector.broadcast %292 : vector<1x32xf32> to vector<5x32xf32>
    %312 = arith.addf %310, %311 : vector<5x32xf32>
    %313 = arith.truncf %312 : vector<5x32xf32> to vector<5x32xbf16>
    %cst_190 = arith.constant 0.000000e+00 : f32
    %314 = vector.broadcast %cst_190 : f32 to vector<5x32xf32>
    %c0_191 = arith.constant 0 : index
    %c0_192 = arith.constant 0 : index
    %c0_193 = arith.constant 0 : index
    %315 = vector.load %arg24[%c0_191, %c0_192, %c0_193] : memref<4x32x8xbf16, #tpu.memory_space<vmem>>, vector<1x32x8xbf16>
    %316 = vector.shape_cast %315 : vector<1x32x8xbf16> to vector<32x8xbf16>
    %cst_194 = arith.constant dense<0.000000e+00> : vector<5x8xf32>
    %317 = tpu.matmul %313, %316, %cst_194 {dimension_numbers = #tpu.dot_dimension_numbers<[1], [0], [0], [1], [0, 0, 1, 1], [], []>} : vector<5x32xbf16>, vector<32x8xbf16>, vector<5x8xf32> -> vector<5x8xf32>
    %c0_195 = arith.constant 0 : index
    %c0_196 = arith.constant 0 : index
    %c0_197 = arith.constant 0 : index
    %318 = vector.load %arg25[%c0_195, %c0_196, %c0_197] : memref<4x1x8xf32, #tpu.memory_space<vmem>>, vector<1x1x8xf32>
    %319 = vector.shape_cast %318 : vector<1x1x8xf32> to vector<1x8xf32>
    %320 = vector.broadcast %319 : vector<1x8xf32> to vector<5x8xf32>
    %321 = arith.addf %317, %320 : vector<5x8xf32>
    %c0_198 = arith.constant 0 : index
    %c0_199 = arith.constant 0 : index
    %c0_200 = arith.constant 0 : index
    %322 = vector.load %arg26[%c0_198, %c0_199, %c0_200] : memref<4x32x8xbf16, #tpu.memory_space<vmem>>, vector<1x32x8xbf16>
    %323 = vector.shape_cast %322 : vector<1x32x8xbf16> to vector<32x8xbf16>
    %cst_201 = arith.constant dense<0.000000e+00> : vector<5x8xf32>
    %324 = tpu.matmul %313, %323, %cst_201 {dimension_numbers = #tpu.dot_dimension_numbers<[1], [0], [0], [1], [0, 0, 1, 1], [], []>} : vector<5x32xbf16>, vector<32x8xbf16>, vector<5x8xf32> -> vector<5x8xf32>
    %c0_202 = arith.constant 0 : index
    %c0_203 = arith.constant 0 : index
    %c0_204 = arith.constant 0 : index
    %325 = vector.load %arg27[%c0_202, %c0_203, %c0_204] : memref<4x1x8xf32, #tpu.memory_space<vmem>>, vector<1x1x8xf32>
    %326 = vector.shape_cast %325 : vector<1x1x8xf32> to vector<1x8xf32>
    %327 = vector.broadcast %326 : vector<1x8xf32> to vector<5x8xf32>
    %328 = arith.addf %324, %327 : vector<5x8xf32>
    %c0_205 = arith.constant 0 : index
    %c0_206 = arith.constant 0 : index
    %c0_207 = arith.constant 0 : index
    %329 = vector.load %arg28[%c0_205, %c0_206, %c0_207] : memref<4x32x8xbf16, #tpu.memory_space<vmem>>, vector<1x32x8xbf16>
    %330 = vector.shape_cast %329 : vector<1x32x8xbf16> to vector<32x8xbf16>
    %cst_208 = arith.constant dense<0.000000e+00> : vector<5x8xf32>
    %331 = tpu.matmul %313, %330, %cst_208 {dimension_numbers = #tpu.dot_dimension_numbers<[1], [0], [0], [1], [0, 0, 1, 1], [], []>} : vector<5x32xbf16>, vector<32x8xbf16>, vector<5x8xf32> -> vector<5x8xf32>
    %c0_209 = arith.constant 0 : index
    %c0_210 = arith.constant 0 : index
    %c0_211 = arith.constant 0 : index
    %332 = vector.load %arg29[%c0_209, %c0_210, %c0_211] : memref<4x1x8xf32, #tpu.memory_space<vmem>>, vector<1x1x8xf32>
    %333 = vector.shape_cast %332 : vector<1x1x8xf32> to vector<1x8xf32>
    %334 = vector.broadcast %333 : vector<1x8xf32> to vector<5x8xf32>
    %335 = arith.addf %331, %334 : vector<5x8xf32>
    %336 = arith.truncf %321 : vector<5x8xf32> to vector<5x8xbf16>
    %337 = arith.truncf %328 : vector<5x8xf32> to vector<5x8xbf16>
    "tpu.trace_start"() <{level = 10 : i32, message = "qe,ke->qk"}> : () -> ()
    %cst_212 = arith.constant dense<0.000000e+00> : vector<5x5xf32>
    %338 = tpu.matmul %336, %337, %cst_212 {dimension_numbers = #tpu.dot_dimension_numbers<[1], [1], [0], [0], [0, 0, 1, 0], [], []>} : vector<5x8xbf16>, vector<5x8xbf16>, vector<5x5xf32> -> vector<5x5xf32>
    "tpu.trace_stop"() : () -> ()
    %cst_213 = arith.constant dense<0xFF800000> : vector<5xf32>
    %339 = vector.multi_reduction <maximumf>, %338, %cst_213 [1] : vector<5x5xf32> to vector<5xf32>
    %340 = vector.shape_cast %339 : vector<5xf32> to vector<5x1xf32>
    %341 = vector.broadcast %340 : vector<5x1xf32> to vector<5x5xf32>
    %342 = arith.subf %338, %341 : vector<5x5xf32>
    %343 = math.exp %342 : vector<5x5xf32>
    %cst_214 = arith.constant dense<0.000000e+00> : vector<5xf32>
    %344 = vector.multi_reduction <add>, %343, %cst_214 [1] : vector<5x5xf32> to vector<5xf32>
    %345 = vector.shape_cast %344 : vector<5xf32> to vector<5x1xf32>
    %346 = tpu.reciprocal %345 {approx = true} : vector<5x1xf32> -> vector<5x1xf32>
    %347 = vector.broadcast %346 : vector<5x1xf32> to vector<5x5xf32>
    %348 = arith.mulf %343, %347 : vector<5x5xf32>
    %349 = arith.truncf %348 : vector<5x5xf32> to vector<5x5xbf16>
    %350 = arith.truncf %335 : vector<5x8xf32> to vector<5x8xbf16>
    %cst_215 = arith.constant dense<0.000000e+00> : vector<5x8xf32>
    %351 = tpu.matmul %349, %350, %cst_215 {dimension_numbers = #tpu.dot_dimension_numbers<[1], [0], [0], [1], [0, 0, 1, 1], [], []>} : vector<5x5xbf16>, vector<5x8xbf16>, vector<5x8xf32> -> vector<5x8xf32>
    %352 = arith.truncf %351 : vector<5x8xf32> to vector<5x8xbf16>
    %c0_216 = arith.constant 0 : index
    %c0_217 = arith.constant 0 : index
    %c0_218 = arith.constant 0 : index
    %353 = vector.load %arg30[%c0_216, %c0_217, %c0_218] : memref<4x8x32xbf16, #tpu.memory_space<vmem>>, vector<1x8x32xbf16>
    %354 = vector.shape_cast %353 : vector<1x8x32xbf16> to vector<8x32xbf16>
    %cst_219 = arith.constant dense<0.000000e+00> : vector<5x32xf32>
    %355 = tpu.matmul %352, %354, %cst_219 {dimension_numbers = #tpu.dot_dimension_numbers<[1], [0], [0], [1], [0, 0, 1, 1], [], []>} : vector<5x8xbf16>, vector<8x32xbf16>, vector<5x32xf32> -> vector<5x32xf32>
    %356 = arith.addf %314, %355 : vector<5x32xf32>
    %c1_220 = arith.constant 1 : index
    %c0_221 = arith.constant 0 : index
    %c0_222 = arith.constant 0 : index
    %357 = vector.load %arg24[%c1_220, %c0_221, %c0_222] : memref<4x32x8xbf16, #tpu.memory_space<vmem>>, vector<1x32x8xbf16>
    %358 = vector.shape_cast %357 : vector<1x32x8xbf16> to vector<32x8xbf16>
    %cst_223 = arith.constant dense<0.000000e+00> : vector<5x8xf32>
    %359 = tpu.matmul %313, %358, %cst_223 {dimension_numbers = #tpu.dot_dimension_numbers<[1], [0], [0], [1], [0, 0, 1, 1], [], []>} : vector<5x32xbf16>, vector<32x8xbf16>, vector<5x8xf32> -> vector<5x8xf32>
    %c1_224 = arith.constant 1 : index
    %c0_225 = arith.constant 0 : index
    %c0_226 = arith.constant 0 : index
    %360 = vector.load %arg25[%c1_224, %c0_225, %c0_226] : memref<4x1x8xf32, #tpu.memory_space<vmem>>, vector<1x1x8xf32>
    %361 = vector.shape_cast %360 : vector<1x1x8xf32> to vector<1x8xf32>
    %362 = vector.broadcast %361 : vector<1x8xf32> to vector<5x8xf32>
    %363 = arith.addf %359, %362 : vector<5x8xf32>
    %c1_227 = arith.constant 1 : index
    %c0_228 = arith.constant 0 : index
    %c0_229 = arith.constant 0 : index
    %364 = vector.load %arg26[%c1_227, %c0_228, %c0_229] : memref<4x32x8xbf16, #tpu.memory_space<vmem>>, vector<1x32x8xbf16>
    %365 = vector.shape_cast %364 : vector<1x32x8xbf16> to vector<32x8xbf16>
    %cst_230 = arith.constant dense<0.000000e+00> : vector<5x8xf32>
    %366 = tpu.matmul %313, %365, %cst_230 {dimension_numbers = #tpu.dot_dimension_numbers<[1], [0], [0], [1], [0, 0, 1, 1], [], []>} : vector<5x32xbf16>, vector<32x8xbf16>, vector<5x8xf32> -> vector<5x8xf32>
    %c1_231 = arith.constant 1 : index
    %c0_232 = arith.constant 0 : index
    %c0_233 = arith.constant 0 : index
    %367 = vector.load %arg27[%c1_231, %c0_232, %c0_233] : memref<4x1x8xf32, #tpu.memory_space<vmem>>, vector<1x1x8xf32>
    %368 = vector.shape_cast %367 : vector<1x1x8xf32> to vector<1x8xf32>
    %369 = vector.broadcast %368 : vector<1x8xf32> to vector<5x8xf32>
    %370 = arith.addf %366, %369 : vector<5x8xf32>
    %c1_234 = arith.constant 1 : index
    %c0_235 = arith.constant 0 : index
    %c0_236 = arith.constant 0 : index
    %371 = vector.load %arg28[%c1_234, %c0_235, %c0_236] : memref<4x32x8xbf16, #tpu.memory_space<vmem>>, vector<1x32x8xbf16>
    %372 = vector.shape_cast %371 : vector<1x32x8xbf16> to vector<32x8xbf16>
    %cst_237 = arith.constant dense<0.000000e+00> : vector<5x8xf32>
    %373 = tpu.matmul %313, %372, %cst_237 {dimension_numbers = #tpu.dot_dimension_numbers<[1], [0], [0], [1], [0, 0, 1, 1], [], []>} : vector<5x32xbf16>, vector<32x8xbf16>, vector<5x8xf32> -> vector<5x8xf32>
    %c1_238 = arith.constant 1 : index
    %c0_239 = arith.constant 0 : index
    %c0_240 = arith.constant 0 : index
    %374 = vector.load %arg29[%c1_238, %c0_239, %c0_240] : memref<4x1x8xf32, #tpu.memory_space<vmem>>, vector<1x1x8xf32>
    %375 = vector.shape_cast %374 : vector<1x1x8xf32> to vector<1x8xf32>
    %376 = vector.broadcast %375 : vector<1x8xf32> to vector<5x8xf32>
    %377 = arith.addf %373, %376 : vector<5x8xf32>
    %378 = arith.truncf %363 : vector<5x8xf32> to vector<5x8xbf16>
    %379 = arith.truncf %370 : vector<5x8xf32> to vector<5x8xbf16>
    "tpu.trace_start"() <{level = 10 : i32, message = "qe,ke->qk"}> : () -> ()
    %cst_241 = arith.constant dense<0.000000e+00> : vector<5x5xf32>
    %380 = tpu.matmul %378, %379, %cst_241 {dimension_numbers = #tpu.dot_dimension_numbers<[1], [1], [0], [0], [0, 0, 1, 0], [], []>} : vector<5x8xbf16>, vector<5x8xbf16>, vector<5x5xf32> -> vector<5x5xf32>
    "tpu.trace_stop"() : () -> ()
    %cst_242 = arith.constant dense<0xFF800000> : vector<5xf32>
    %381 = vector.multi_reduction <maximumf>, %380, %cst_242 [1] : vector<5x5xf32> to vector<5xf32>
    %382 = vector.shape_cast %381 : vector<5xf32> to vector<5x1xf32>
    %383 = vector.broadcast %382 : vector<5x1xf32> to vector<5x5xf32>
    %384 = arith.subf %380, %383 : vector<5x5xf32>
    %385 = math.exp %384 : vector<5x5xf32>
    %cst_243 = arith.constant dense<0.000000e+00> : vector<5xf32>
    %386 = vector.multi_reduction <add>, %385, %cst_243 [1] : vector<5x5xf32> to vector<5xf32>
    %387 = vector.shape_cast %386 : vector<5xf32> to vector<5x1xf32>
    %388 = tpu.reciprocal %387 {approx = true} : vector<5x1xf32> -> vector<5x1xf32>
    %389 = vector.broadcast %388 : vector<5x1xf32> to vector<5x5xf32>
    %390 = arith.mulf %385, %389 : vector<5x5xf32>
    %391 = arith.truncf %390 : vector<5x5xf32> to vector<5x5xbf16>
    %392 = arith.truncf %377 : vector<5x8xf32> to vector<5x8xbf16>
    %cst_244 = arith.constant dense<0.000000e+00> : vector<5x8xf32>
    %393 = tpu.matmul %391, %392, %cst_244 {dimension_numbers = #tpu.dot_dimension_numbers<[1], [0], [0], [1], [0, 0, 1, 1], [], []>} : vector<5x5xbf16>, vector<5x8xbf16>, vector<5x8xf32> -> vector<5x8xf32>
    %394 = arith.truncf %393 : vector<5x8xf32> to vector<5x8xbf16>
    %c1_245 = arith.constant 1 : index
    %c0_246 = arith.constant 0 : index
    %c0_247 = arith.constant 0 : index
    %395 = vector.load %arg30[%c1_245, %c0_246, %c0_247] : memref<4x8x32xbf16, #tpu.memory_space<vmem>>, vector<1x8x32xbf16>
    %396 = vector.shape_cast %395 : vector<1x8x32xbf16> to vector<8x32xbf16>
    %cst_248 = arith.constant dense<0.000000e+00> : vector<5x32xf32>
    %397 = tpu.matmul %394, %396, %cst_248 {dimension_numbers = #tpu.dot_dimension_numbers<[1], [0], [0], [1], [0, 0, 1, 1], [], []>} : vector<5x8xbf16>, vector<8x32xbf16>, vector<5x32xf32> -> vector<5x32xf32>
    %398 = arith.addf %356, %397 : vector<5x32xf32>
    %c2_249 = arith.constant 2 : index
    %c0_250 = arith.constant 0 : index
    %c0_251 = arith.constant 0 : index
    %399 = vector.load %arg24[%c2_249, %c0_250, %c0_251] : memref<4x32x8xbf16, #tpu.memory_space<vmem>>, vector<1x32x8xbf16>
    %400 = vector.shape_cast %399 : vector<1x32x8xbf16> to vector<32x8xbf16>
    %cst_252 = arith.constant dense<0.000000e+00> : vector<5x8xf32>
    %401 = tpu.matmul %313, %400, %cst_252 {dimension_numbers = #tpu.dot_dimension_numbers<[1], [0], [0], [1], [0, 0, 1, 1], [], []>} : vector<5x32xbf16>, vector<32x8xbf16>, vector<5x8xf32> -> vector<5x8xf32>
    %c2_253 = arith.constant 2 : index
    %c0_254 = arith.constant 0 : index
    %c0_255 = arith.constant 0 : index
    %402 = vector.load %arg25[%c2_253, %c0_254, %c0_255] : memref<4x1x8xf32, #tpu.memory_space<vmem>>, vector<1x1x8xf32>
    %403 = vector.shape_cast %402 : vector<1x1x8xf32> to vector<1x8xf32>
    %404 = vector.broadcast %403 : vector<1x8xf32> to vector<5x8xf32>
    %405 = arith.addf %401, %404 : vector<5x8xf32>
    %c2_256 = arith.constant 2 : index
    %c0_257 = arith.constant 0 : index
    %c0_258 = arith.constant 0 : index
    %406 = vector.load %arg26[%c2_256, %c0_257, %c0_258] : memref<4x32x8xbf16, #tpu.memory_space<vmem>>, vector<1x32x8xbf16>
    %407 = vector.shape_cast %406 : vector<1x32x8xbf16> to vector<32x8xbf16>
    %cst_259 = arith.constant dense<0.000000e+00> : vector<5x8xf32>
    %408 = tpu.matmul %313, %407, %cst_259 {dimension_numbers = #tpu.dot_dimension_numbers<[1], [0], [0], [1], [0, 0, 1, 1], [], []>} : vector<5x32xbf16>, vector<32x8xbf16>, vector<5x8xf32> -> vector<5x8xf32>
    %c2_260 = arith.constant 2 : index
    %c0_261 = arith.constant 0 : index
    %c0_262 = arith.constant 0 : index
    %409 = vector.load %arg27[%c2_260, %c0_261, %c0_262] : memref<4x1x8xf32, #tpu.memory_space<vmem>>, vector<1x1x8xf32>
    %410 = vector.shape_cast %409 : vector<1x1x8xf32> to vector<1x8xf32>
    %411 = vector.broadcast %410 : vector<1x8xf32> to vector<5x8xf32>
    %412 = arith.addf %408, %411 : vector<5x8xf32>
    %c2_263 = arith.constant 2 : index
    %c0_264 = arith.constant 0 : index
    %c0_265 = arith.constant 0 : index
    %413 = vector.load %arg28[%c2_263, %c0_264, %c0_265] : memref<4x32x8xbf16, #tpu.memory_space<vmem>>, vector<1x32x8xbf16>
    %414 = vector.shape_cast %413 : vector<1x32x8xbf16> to vector<32x8xbf16>
    %cst_266 = arith.constant dense<0.000000e+00> : vector<5x8xf32>
    %415 = tpu.matmul %313, %414, %cst_266 {dimension_numbers = #tpu.dot_dimension_numbers<[1], [0], [0], [1], [0, 0, 1, 1], [], []>} : vector<5x32xbf16>, vector<32x8xbf16>, vector<5x8xf32> -> vector<5x8xf32>
    %c2_267 = arith.constant 2 : index
    %c0_268 = arith.constant 0 : index
    %c0_269 = arith.constant 0 : index
    %416 = vector.load %arg29[%c2_267, %c0_268, %c0_269] : memref<4x1x8xf32, #tpu.memory_space<vmem>>, vector<1x1x8xf32>
    %417 = vector.shape_cast %416 : vector<1x1x8xf32> to vector<1x8xf32>
    %418 = vector.broadcast %417 : vector<1x8xf32> to vector<5x8xf32>
    %419 = arith.addf %415, %418 : vector<5x8xf32>
    %420 = arith.truncf %405 : vector<5x8xf32> to vector<5x8xbf16>
    %421 = arith.truncf %412 : vector<5x8xf32> to vector<5x8xbf16>
    "tpu.trace_start"() <{level = 10 : i32, message = "qe,ke->qk"}> : () -> ()
    %cst_270 = arith.constant dense<0.000000e+00> : vector<5x5xf32>
    %422 = tpu.matmul %420, %421, %cst_270 {dimension_numbers = #tpu.dot_dimension_numbers<[1], [1], [0], [0], [0, 0, 1, 0], [], []>} : vector<5x8xbf16>, vector<5x8xbf16>, vector<5x5xf32> -> vector<5x5xf32>
    "tpu.trace_stop"() : () -> ()
    %cst_271 = arith.constant dense<0xFF800000> : vector<5xf32>
    %423 = vector.multi_reduction <maximumf>, %422, %cst_271 [1] : vector<5x5xf32> to vector<5xf32>
    %424 = vector.shape_cast %423 : vector<5xf32> to vector<5x1xf32>
    %425 = vector.broadcast %424 : vector<5x1xf32> to vector<5x5xf32>
    %426 = arith.subf %422, %425 : vector<5x5xf32>
    %427 = math.exp %426 : vector<5x5xf32>
    %cst_272 = arith.constant dense<0.000000e+00> : vector<5xf32>
    %428 = vector.multi_reduction <add>, %427, %cst_272 [1] : vector<5x5xf32> to vector<5xf32>
    %429 = vector.shape_cast %428 : vector<5xf32> to vector<5x1xf32>
    %430 = tpu.reciprocal %429 {approx = true} : vector<5x1xf32> -> vector<5x1xf32>
    %431 = vector.broadcast %430 : vector<5x1xf32> to vector<5x5xf32>
    %432 = arith.mulf %427, %431 : vector<5x5xf32>
    %433 = arith.truncf %432 : vector<5x5xf32> to vector<5x5xbf16>
    %434 = arith.truncf %419 : vector<5x8xf32> to vector<5x8xbf16>
    %cst_273 = arith.constant dense<0.000000e+00> : vector<5x8xf32>
    %435 = tpu.matmul %433, %434, %cst_273 {dimension_numbers = #tpu.dot_dimension_numbers<[1], [0], [0], [1], [0, 0, 1, 1], [], []>} : vector<5x5xbf16>, vector<5x8xbf16>, vector<5x8xf32> -> vector<5x8xf32>
    %436 = arith.truncf %435 : vector<5x8xf32> to vector<5x8xbf16>
    %c2_274 = arith.constant 2 : index
    %c0_275 = arith.constant 0 : index
    %c0_276 = arith.constant 0 : index
    %437 = vector.load %arg30[%c2_274, %c0_275, %c0_276] : memref<4x8x32xbf16, #tpu.memory_space<vmem>>, vector<1x8x32xbf16>
    %438 = vector.shape_cast %437 : vector<1x8x32xbf16> to vector<8x32xbf16>
    %cst_277 = arith.constant dense<0.000000e+00> : vector<5x32xf32>
    %439 = tpu.matmul %436, %438, %cst_277 {dimension_numbers = #tpu.dot_dimension_numbers<[1], [0], [0], [1], [0, 0, 1, 1], [], []>} : vector<5x8xbf16>, vector<8x32xbf16>, vector<5x32xf32> -> vector<5x32xf32>
    %440 = arith.addf %398, %439 : vector<5x32xf32>
    %c3_278 = arith.constant 3 : index
    %c0_279 = arith.constant 0 : index
    %c0_280 = arith.constant 0 : index
    %441 = vector.load %arg24[%c3_278, %c0_279, %c0_280] : memref<4x32x8xbf16, #tpu.memory_space<vmem>>, vector<1x32x8xbf16>
    %442 = vector.shape_cast %441 : vector<1x32x8xbf16> to vector<32x8xbf16>
    %cst_281 = arith.constant dense<0.000000e+00> : vector<5x8xf32>
    %443 = tpu.matmul %313, %442, %cst_281 {dimension_numbers = #tpu.dot_dimension_numbers<[1], [0], [0], [1], [0, 0, 1, 1], [], []>} : vector<5x32xbf16>, vector<32x8xbf16>, vector<5x8xf32> -> vector<5x8xf32>
    %c3_282 = arith.constant 3 : index
    %c0_283 = arith.constant 0 : index
    %c0_284 = arith.constant 0 : index
    %444 = vector.load %arg25[%c3_282, %c0_283, %c0_284] : memref<4x1x8xf32, #tpu.memory_space<vmem>>, vector<1x1x8xf32>
    %445 = vector.shape_cast %444 : vector<1x1x8xf32> to vector<1x8xf32>
    %446 = vector.broadcast %445 : vector<1x8xf32> to vector<5x8xf32>
    %447 = arith.addf %443, %446 : vector<5x8xf32>
    %c3_285 = arith.constant 3 : index
    %c0_286 = arith.constant 0 : index
    %c0_287 = arith.constant 0 : index
    %448 = vector.load %arg26[%c3_285, %c0_286, %c0_287] : memref<4x32x8xbf16, #tpu.memory_space<vmem>>, vector<1x32x8xbf16>
    %449 = vector.shape_cast %448 : vector<1x32x8xbf16> to vector<32x8xbf16>
    %cst_288 = arith.constant dense<0.000000e+00> : vector<5x8xf32>
    %450 = tpu.matmul %313, %449, %cst_288 {dimension_numbers = #tpu.dot_dimension_numbers<[1], [0], [0], [1], [0, 0, 1, 1], [], []>} : vector<5x32xbf16>, vector<32x8xbf16>, vector<5x8xf32> -> vector<5x8xf32>
    %c3_289 = arith.constant 3 : index
    %c0_290 = arith.constant 0 : index
    %c0_291 = arith.constant 0 : index
    %451 = vector.load %arg27[%c3_289, %c0_290, %c0_291] : memref<4x1x8xf32, #tpu.memory_space<vmem>>, vector<1x1x8xf32>
    %452 = vector.shape_cast %451 : vector<1x1x8xf32> to vector<1x8xf32>
    %453 = vector.broadcast %452 : vector<1x8xf32> to vector<5x8xf32>
    %454 = arith.addf %450, %453 : vector<5x8xf32>
    %c3_292 = arith.constant 3 : index
    %c0_293 = arith.constant 0 : index
    %c0_294 = arith.constant 0 : index
    %455 = vector.load %arg28[%c3_292, %c0_293, %c0_294] : memref<4x32x8xbf16, #tpu.memory_space<vmem>>, vector<1x32x8xbf16>
    %456 = vector.shape_cast %455 : vector<1x32x8xbf16> to vector<32x8xbf16>
    %cst_295 = arith.constant dense<0.000000e+00> : vector<5x8xf32>
    %457 = tpu.matmul %313, %456, %cst_295 {dimension_numbers = #tpu.dot_dimension_numbers<[1], [0], [0], [1], [0, 0, 1, 1], [], []>} : vector<5x32xbf16>, vector<32x8xbf16>, vector<5x8xf32> -> vector<5x8xf32>
    %c3_296 = arith.constant 3 : index
    %c0_297 = arith.constant 0 : index
    %c0_298 = arith.constant 0 : index
    %458 = vector.load %arg29[%c3_296, %c0_297, %c0_298] : memref<4x1x8xf32, #tpu.memory_space<vmem>>, vector<1x1x8xf32>
    %459 = vector.shape_cast %458 : vector<1x1x8xf32> to vector<1x8xf32>
    %460 = vector.broadcast %459 : vector<1x8xf32> to vector<5x8xf32>
    %461 = arith.addf %457, %460 : vector<5x8xf32>
    %462 = arith.truncf %447 : vector<5x8xf32> to vector<5x8xbf16>
    %463 = arith.truncf %454 : vector<5x8xf32> to vector<5x8xbf16>
    "tpu.trace_start"() <{level = 10 : i32, message = "qe,ke->qk"}> : () -> ()
    %cst_299 = arith.constant dense<0.000000e+00> : vector<5x5xf32>
    %464 = tpu.matmul %462, %463, %cst_299 {dimension_numbers = #tpu.dot_dimension_numbers<[1], [1], [0], [0], [0, 0, 1, 0], [], []>} : vector<5x8xbf16>, vector<5x8xbf16>, vector<5x5xf32> -> vector<5x5xf32>
    "tpu.trace_stop"() : () -> ()
    %cst_300 = arith.constant dense<0xFF800000> : vector<5xf32>
    %465 = vector.multi_reduction <maximumf>, %464, %cst_300 [1] : vector<5x5xf32> to vector<5xf32>
    %466 = vector.shape_cast %465 : vector<5xf32> to vector<5x1xf32>
    %467 = vector.broadcast %466 : vector<5x1xf32> to vector<5x5xf32>
    %468 = arith.subf %464, %467 : vector<5x5xf32>
    %469 = math.exp %468 : vector<5x5xf32>
    %cst_301 = arith.constant dense<0.000000e+00> : vector<5xf32>
    %470 = vector.multi_reduction <add>, %469, %cst_301 [1] : vector<5x5xf32> to vector<5xf32>
    %471 = vector.shape_cast %470 : vector<5xf32> to vector<5x1xf32>
    %472 = tpu.reciprocal %471 {approx = true} : vector<5x1xf32> -> vector<5x1xf32>
    %473 = vector.broadcast %472 : vector<5x1xf32> to vector<5x5xf32>
    %474 = arith.mulf %469, %473 : vector<5x5xf32>
    %475 = arith.truncf %474 : vector<5x5xf32> to vector<5x5xbf16>
    %476 = arith.truncf %461 : vector<5x8xf32> to vector<5x8xbf16>
    %cst_302 = arith.constant dense<0.000000e+00> : vector<5x8xf32>
    %477 = tpu.matmul %475, %476, %cst_302 {dimension_numbers = #tpu.dot_dimension_numbers<[1], [0], [0], [1], [0, 0, 1, 1], [], []>} : vector<5x5xbf16>, vector<5x8xbf16>, vector<5x8xf32> -> vector<5x8xf32>
    %478 = arith.truncf %477 : vector<5x8xf32> to vector<5x8xbf16>
    %c3_303 = arith.constant 3 : index
    %c0_304 = arith.constant 0 : index
    %c0_305 = arith.constant 0 : index
    %479 = vector.load %arg30[%c3_303, %c0_304, %c0_305] : memref<4x8x32xbf16, #tpu.memory_space<vmem>>, vector<1x8x32xbf16>
    %480 = vector.shape_cast %479 : vector<1x8x32xbf16> to vector<8x32xbf16>
    %cst_306 = arith.constant dense<0.000000e+00> : vector<5x32xf32>
    %481 = tpu.matmul %478, %480, %cst_306 {dimension_numbers = #tpu.dot_dimension_numbers<[1], [0], [0], [1], [0, 0, 1, 1], [], []>} : vector<5x8xbf16>, vector<8x32xbf16>, vector<5x32xf32> -> vector<5x32xf32>
    %482 = arith.addf %440, %481 : vector<5x32xf32>
    %483 = arith.addf %290, %482 : vector<5x32xf32>
    %c0_307 = arith.constant 0 : index
    %c0_308 = arith.constant 0 : index
    %484 = vector.load %arg31[%c0_307, %c0_308] : memref<1x32xf32, #tpu.memory_space<vmem>>, vector<1x32xf32>
    %485 = vector.broadcast %484 : vector<1x32xf32> to vector<5x32xf32>
    %486 = arith.addf %483, %485 : vector<5x32xf32>
    %c0_309 = arith.constant 0 : index
    %c0_310 = arith.constant 0 : index
    %487 = vector.load %arg32[%c0_309, %c0_310] : memref<1x32xf32, #tpu.memory_space<vmem>>, vector<1x32xf32>
    %c0_311 = arith.constant 0 : index
    %c0_312 = arith.constant 0 : index
    %488 = vector.load %arg33[%c0_311, %c0_312] : memref<1x32xf32, #tpu.memory_space<vmem>>, vector<1x32xf32>
    %cst_313 = arith.constant dense<0.000000e+00> : vector<5xf32>
    %489 = vector.multi_reduction <add>, %486, %cst_313 [1] : vector<5x32xf32> to vector<5xf32>
    %490 = vector.shape_cast %489 : vector<5xf32> to vector<5x1xf32>
    %cst_314 = arith.constant 3.200000e+01 : f32
    %491 = vector.broadcast %cst_314 : f32 to vector<5x1xf32>
    %492 = arith.divf %490, %491 : vector<5x1xf32>
    %493 = vector.broadcast %492 : vector<5x1xf32> to vector<5x32xf32>
    %494 = arith.subf %486, %493 : vector<5x32xf32>
    %495 = arith.mulf %494, %494 : vector<5x32xf32>
    %cst_315 = arith.constant dense<0.000000e+00> : vector<5xf32>
    %496 = vector.multi_reduction <add>, %495, %cst_315 [1] : vector<5x32xf32> to vector<5xf32>
    %497 = vector.shape_cast %496 : vector<5xf32> to vector<5x1xf32>
    %cst_316 = arith.constant 3.200000e+01 : f32
    %498 = vector.broadcast %cst_316 : f32 to vector<5x1xf32>
    %499 = arith.divf %497, %498 : vector<5x1xf32>
    %cst_317 = arith.constant 9.99999997E-7 : f32
    %500 = vector.broadcast %cst_317 : f32 to vector<5x1xf32>
    %501 = arith.addf %499, %500 : vector<5x1xf32>
    %502 = math.rsqrt %501 : vector<5x1xf32>
    %503 = vector.broadcast %502 : vector<5x1xf32> to vector<5x32xf32>
    %504 = arith.mulf %494, %503 : vector<5x32xf32>
    %505 = vector.broadcast %487 : vector<1x32xf32> to vector<5x32xf32>
    %506 = arith.mulf %504, %505 : vector<5x32xf32>
    %507 = vector.broadcast %488 : vector<1x32xf32> to vector<5x32xf32>
    %508 = arith.addf %506, %507 : vector<5x32xf32>
    %509 = arith.truncf %508 : vector<5x32xf32> to vector<5x32xbf16>
    %c0_318 = arith.constant 0 : index
    %c0_319 = arith.constant 0 : index
    %510 = vector.load %arg34[%c0_318, %c0_319] : memref<32x128xbf16, #tpu.memory_space<vmem>>, vector<32x128xbf16>
    %cst_320 = arith.constant dense<0.000000e+00> : vector<5x128xf32>
    %511 = tpu.matmul %509, %510, %cst_320 {dimension_numbers = #tpu.dot_dimension_numbers<[1], [0], [0], [1], [0, 0, 1, 1], [], []>} : vector<5x32xbf16>, vector<32x128xbf16>, vector<5x128xf32> -> vector<5x128xf32>
    %c0_321 = arith.constant 0 : index
    %c0_322 = arith.constant 0 : index
    %512 = vector.load %arg35[%c0_321, %c0_322] : memref<1x128xf32, #tpu.memory_space<vmem>>, vector<1x128xf32>
    %513 = vector.broadcast %512 : vector<1x128xf32> to vector<5x128xf32>
    %514 = arith.addf %511, %513 : vector<5x128xf32>
    %cst_323 = arith.constant 5.000000e-01 : f32
    %515 = vector.broadcast %cst_323 : f32 to vector<5x128xf32>
    %516 = arith.mulf %515, %514 : vector<5x128xf32>
    %cst_324 = arith.constant 0.707106769 : f32
    %517 = vector.broadcast %cst_324 : f32 to vector<5x128xf32>
    %518 = arith.mulf %514, %517 : vector<5x128xf32>
    %cst_325 = arith.constant 0.000000e+00 : f32
    %519 = vector.broadcast %cst_325 : f32 to vector<5x128xf32>
    %520 = arith.cmpf oge, %518, %519 : vector<5x128xf32>
    %cst_326 = arith.constant 1.000000e+00 : f32
    %cst_327 = arith.constant -1.000000e+00 : f32
    %521 = vector.broadcast %cst_326 : f32 to vector<5x128xf32>
    %522 = vector.broadcast %cst_327 : f32 to vector<5x128xf32>
    %523 = arith.select %520, %521, %522 : vector<5x128xi1>, vector<5x128xf32>
    %524 = math.absf %518 : vector<5x128xf32>
    %cst_328 = arith.constant 0.327591091 : f32
    %525 = vector.broadcast %cst_328 : f32 to vector<5x128xf32>
    %526 = arith.mulf %525, %524 : vector<5x128xf32>
    %cst_329 = arith.constant 1.000000e+00 : f32
    %527 = vector.broadcast %cst_329 : f32 to vector<5x128xf32>
    %528 = arith.addf %527, %526 : vector<5x128xf32>
    %cst_330 = arith.constant 1.000000e+00 : f32
    %529 = vector.broadcast %cst_330 : f32 to vector<5x128xf32>
    %530 = arith.divf %529, %528 : vector<5x128xf32>
    %cst_331 = arith.constant 1.06140542 : f32
    %531 = vector.broadcast %cst_331 : f32 to vector<5x128xf32>
    %532 = arith.mulf %531, %530 : vector<5x128xf32>
    %cst_332 = arith.constant -1.45315206 : f32
    %533 = vector.broadcast %cst_332 : f32 to vector<5x128xf32>
    %534 = arith.addf %532, %533 : vector<5x128xf32>
    %535 = arith.mulf %534, %530 : vector<5x128xf32>
    %cst_333 = arith.constant 1.42141378 : f32
    %536 = vector.broadcast %cst_333 : f32 to vector<5x128xf32>
    %537 = arith.addf %535, %536 : vector<5x128xf32>
    %538 = arith.mulf %537, %530 : vector<5x128xf32>
    %cst_334 = arith.constant -0.284496725 : f32
    %539 = vector.broadcast %cst_334 : f32 to vector<5x128xf32>
    %540 = arith.addf %538, %539 : vector<5x128xf32>
    %541 = arith.mulf %540, %530 : vector<5x128xf32>
    %cst_335 = arith.constant 0.254829586 : f32
    %542 = vector.broadcast %cst_335 : f32 to vector<5x128xf32>
    %543 = arith.addf %541, %542 : vector<5x128xf32>
    %544 = arith.mulf %543, %530 : vector<5x128xf32>
    %cst_336 = arith.constant 0.000000e+00 : f32
    %545 = vector.broadcast %cst_336 : f32 to vector<5x128xf32>
    %546 = arith.subf %545, %524 : vector<5x128xf32>
    %547 = arith.mulf %546, %524 : vector<5x128xf32>
    %548 = math.exp %547 : vector<5x128xf32>
    %549 = arith.mulf %544, %548 : vector<5x128xf32>
    %cst_337 = arith.constant 1.000000e+00 : f32
    %550 = vector.broadcast %cst_337 : f32 to vector<5x128xf32>
    %551 = arith.subf %550, %549 : vector<5x128xf32>
    %552 = arith.mulf %523, %551 : vector<5x128xf32>
    %cst_338 = arith.constant 1.000000e+00 : f32
    %553 = vector.broadcast %cst_338 : f32 to vector<5x128xf32>
    %554 = arith.addf %553, %552 : vector<5x128xf32>
    %555 = arith.mulf %516, %554 : vector<5x128xf32>
    %556 = arith.truncf %555 : vector<5x128xf32> to vector<5x128xbf16>
    %c0_339 = arith.constant 0 : index
    %c0_340 = arith.constant 0 : index
    %557 = vector.load %arg36[%c0_339, %c0_340] : memref<128x32xbf16, #tpu.memory_space<vmem>>, vector<128x32xbf16>
    %cst_341 = arith.constant dense<0.000000e+00> : vector<5x32xf32>
    %558 = tpu.matmul %556, %557, %cst_341 {dimension_numbers = #tpu.dot_dimension_numbers<[1], [0], [0], [1], [0, 0, 1, 1], [], []>} : vector<5x128xbf16>, vector<128x32xbf16>, vector<5x32xf32> -> vector<5x32xf32>
    %c0_342 = arith.constant 0 : index
    %c0_343 = arith.constant 0 : index
    %559 = vector.load %arg37[%c0_342, %c0_343] : memref<1x32xf32, #tpu.memory_space<vmem>>, vector<1x32xf32>
    %560 = vector.broadcast %559 : vector<1x32xf32> to vector<5x32xf32>
    %561 = arith.addf %558, %560 : vector<5x32xf32>
    %562 = arith.addf %486, %561 : vector<5x32xf32>
    %563 = vector.extract_strided_slice %562 {offsets = [0, 0], sizes = [1, 32], strides = [1, 1]} : vector<5x32xf32> to vector<1x32xf32>
    %c0_344 = arith.constant 0 : index
    %c0_345 = arith.constant 0 : index
    %564 = vector.load %arg38[%c0_344, %c0_345] : memref<1x32xf32, #tpu.memory_space<vmem>>, vector<1x32xf32>
    %c0_346 = arith.constant 0 : index
    %c0_347 = arith.constant 0 : index
    %565 = vector.load %arg39[%c0_346, %c0_347] : memref<1x32xf32, #tpu.memory_space<vmem>>, vector<1x32xf32>
    %cst_348 = arith.constant dense<0.000000e+00> : vector<1xf32>
    %566 = vector.multi_reduction <add>, %563, %cst_348 [1] : vector<1x32xf32> to vector<1xf32>
    %567 = vector.shape_cast %566 : vector<1xf32> to vector<1x1xf32>
    %cst_349 = arith.constant 3.200000e+01 : f32
    %568 = vector.broadcast %cst_349 : f32 to vector<1x1xf32>
    %569 = arith.divf %567, %568 : vector<1x1xf32>
    %570 = vector.broadcast %569 : vector<1x1xf32> to vector<1x32xf32>
    %571 = arith.subf %563, %570 : vector<1x32xf32>
    %572 = arith.mulf %571, %571 : vector<1x32xf32>
    %cst_350 = arith.constant dense<0.000000e+00> : vector<1xf32>
    %573 = vector.multi_reduction <add>, %572, %cst_350 [1] : vector<1x32xf32> to vector<1xf32>
    %574 = vector.shape_cast %573 : vector<1xf32> to vector<1x1xf32>
    %cst_351 = arith.constant 3.200000e+01 : f32
    %575 = vector.broadcast %cst_351 : f32 to vector<1x1xf32>
    %576 = arith.divf %574, %575 : vector<1x1xf32>
    %cst_352 = arith.constant 9.99999997E-7 : f32
    %577 = vector.broadcast %cst_352 : f32 to vector<1x1xf32>
    %578 = arith.addf %576, %577 : vector<1x1xf32>
    %579 = math.rsqrt %578 : vector<1x1xf32>
    %580 = vector.broadcast %579 : vector<1x1xf32> to vector<1x32xf32>
    %581 = arith.mulf %571, %580 : vector<1x32xf32>
    %582 = arith.mulf %581, %564 : vector<1x32xf32>
    %583 = arith.addf %582, %565 : vector<1x32xf32>
    %c0_353 = arith.constant 0 : index
    %c0_354 = arith.constant 0 : index
    %c0_355 = arith.constant 0 : index
    %584 = vector.load %arg40[%c0_353, %c0_354, %c0_355] : memref<1x1x32xf32, #tpu.memory_space<vmem>>, vector<1x1x32xf32>
    %585 = vector.shape_cast %584 : vector<1x1x32xf32> to vector<1x32xf32>
    %586 = vector.shape_cast %583 : vector<1x32xf32> to vector<1x1x32xf32>
    tpu.vector_store %arg40[%c0_353, %c0_354, %c0_355], %586 {strides = array<i32>} : memref<1x1x32xf32, #tpu.memory_space<vmem>>, vector<1x1x32xf32>,
    return
  }
  func.func @transform_0(%arg0: i32) -> (i32, i32, i32) {
    %c0_i32 = arith.constant 0 : i32
    %c0_i32_0 = arith.constant 0 : i32
    %c0_i32_1 = arith.constant 0 : i32
    return %arg0, %c0_i32, %c0_i32_0 : i32, i32, i32
  }
  func.func @transform_1(%arg0: i32) -> (i32, i32) {
    %c0_i32 = arith.constant 0 : i32
    %c0_i32_0 = arith.constant 0 : i32
    %c0_i32_1 = arith.constant 0 : i32
    return %c0_i32, %c0_i32_0 : i32, i32
  }
  func.func @transform_2(%arg0: i32) -> (i32, i32) {
    %c0_i32 = arith.constant 0 : i32
    %c0_i32_0 = arith.constant 0 : i32
    %c0_i32_1 = arith.constant 0 : i32
    return %c0_i32, %c0_i32_0 : i32, i32
  }
  func.func @transform_3(%arg0: i32) -> (i32, i32, i32) {
    %c0_i32 = arith.constant 0 : i32
    %c0_i32_0 = arith.constant 0 : i32
    %c0_i32_1 = arith.constant 0 : i32
    %c0_i32_2 = arith.constant 0 : i32
    return %c0_i32, %c0_i32_0, %c0_i32_1 : i32, i32, i32
  }
  func.func @transform_4(%arg0: i32) -> (i32, i32, i32) {
    %c0_i32 = arith.constant 0 : i32
    %c0_i32_0 = arith.constant 0 : i32
    %c0_i32_1 = arith.constant 0 : i32
    %c0_i32_2 = arith.constant 0 : i32
    return %c0_i32, %c0_i32_0, %c0_i32_1 : i32, i32, i32
  }
  func.func @transform_5(%arg0: i32) -> (i32, i32) {
    %c0_i32 = arith.constant 0 : i32
    %c0_i32_0 = arith.constant 0 : i32
    %c0_i32_1 = arith.constant 0 : i32
    return %c0_i32, %c0_i32_0 : i32, i32
  }
  func.func @transform_6(%arg0: i32) -> (i32, i32) {
    %c0_i32 = arith.constant 0 : i32
    %c0_i32_0 = arith.constant 0 : i32
    %c0_i32_1 = arith.constant 0 : i32
    return %c0_i32, %c0_i32_0 : i32, i32
  }
  func.func @transform_7(%arg0: i32) -> (i32, i32, i32) {
    %c0_i32 = arith.constant 0 : i32
    %c0_i32_0 = arith.constant 0 : i32
    %c0_i32_1 = arith.constant 0 : i32
    %c0_i32_2 = arith.constant 0 : i32
    return %c0_i32, %c0_i32_0, %c0_i32_1 : i32, i32, i32
  }
  func.func @transform_8(%arg0: i32) -> (i32, i32, i32) {
    %c0_i32 = arith.constant 0 : i32
    %c0_i32_0 = arith.constant 0 : i32
    %c0_i32_1 = arith.constant 0 : i32
    %c0_i32_2 = arith.constant 0 : i32
    return %c0_i32, %c0_i32_0, %c0_i32_1 : i32, i32, i32
  }
  func.func @transform_9(%arg0: i32) -> (i32, i32, i32) {
    %c0_i32 = arith.constant 0 : i32
    %c0_i32_0 = arith.constant 0 : i32
    %c0_i32_1 = arith.constant 0 : i32
    %c0_i32_2 = arith.constant 0 : i32
    return %c0_i32, %c0_i32_0, %c0_i32_1 : i32, i32, i32
  }
  func.func @transform_10(%arg0: i32) -> (i32, i32, i32) {
    %c0_i32 = arith.constant 0 : i32
    %c0_i32_0 = arith.constant 0 : i32
    %c0_i32_1 = arith.constant 0 : i32
    %c0_i32_2 = arith.constant 0 : i32
    return %c0_i32, %c0_i32_0, %c0_i32_1 : i32, i32, i32
  }
  func.func @transform_11(%arg0: i32) -> (i32, i32, i32) {
    %c0_i32 = arith.constant 0 : i32
    %c0_i32_0 = arith.constant 0 : i32
    %c0_i32_1 = arith.constant 0 : i32
    %c0_i32_2 = arith.constant 0 : i32
    return %c0_i32, %c0_i32_0, %c0_i32_1 : i32, i32, i32
  }
  func.func @transform_12(%arg0: i32) -> (i32, i32, i32) {
    %c0_i32 = arith.constant 0 : i32
    %c0_i32_0 = arith.constant 0 : i32
    %c0_i32_1 = arith.constant 0 : i32
    %c0_i32_2 = arith.constant 0 : i32
    return %c0_i32, %c0_i32_0, %c0_i32_1 : i32, i32, i32
  }
  func.func @transform_13(%arg0: i32) -> (i32, i32, i32) {
    %c0_i32 = arith.constant 0 : i32
    %c0_i32_0 = arith.constant 0 : i32
    %c0_i32_1 = arith.constant 0 : i32
    %c0_i32_2 = arith.constant 0 : i32
    return %c0_i32, %c0_i32_0, %c0_i32_1 : i32, i32, i32
  }
  func.func @transform_14(%arg0: i32) -> (i32, i32) {
    %c0_i32 = arith.constant 0 : i32
    %c0_i32_0 = arith.constant 0 : i32
    %c0_i32_1 = arith.constant 0 : i32
    return %c0_i32, %c0_i32_0 : i32, i32
  }
  func.func @transform_15(%arg0: i32) -> (i32, i32) {
    %c0_i32 = arith.constant 0 : i32
    %c0_i32_0 = arith.constant 0 : i32
    %c0_i32_1 = arith.constant 0 : i32
    return %c0_i32, %c0_i32_0 : i32, i32
  }
  func.func @transform_16(%arg0: i32) -> (i32, i32) {
    %c0_i32 = arith.constant 0 : i32
    %c0_i32_0 = arith.constant 0 : i32
    %c0_i32_1 = arith.constant 0 : i32
    return %c0_i32, %c0_i32_0 : i32, i32
  }
  func.func @transform_17(%arg0: i32) -> (i32, i32) {
    %c0_i32 = arith.constant 0 : i32
    %c0_i32_0 = arith.constant 0 : i32
    %c0_i32_1 = arith.constant 0 : i32
    return %c0_i32, %c0_i32_0 : i32, i32
  }
  func.func @transform_18(%arg0: i32) -> (i32, i32) {
    %c0_i32 = arith.constant 0 : i32
    %c0_i32_0 = arith.constant 0 : i32
    %c0_i32_1 = arith.constant 0 : i32
    return %c0_i32, %c0_i32_0 : i32, i32
  }
  func.func @transform_19(%arg0: i32) -> (i32, i32) {
    %c0_i32 = arith.constant 0 : i32
    %c0_i32_0 = arith.constant 0 : i32
    %c0_i32_1 = arith.constant 0 : i32
    return %c0_i32, %c0_i32_0 : i32, i32
  }
  func.func @transform_20(%arg0: i32) -> (i32, i32) {
    %c0_i32 = arith.constant 0 : i32
    %c0_i32_0 = arith.constant 0 : i32
    %c0_i32_1 = arith.constant 0 : i32
    return %c0_i32, %c0_i32_0 : i32, i32
  }
  func.func @transform_21(%arg0: i32) -> (i32, i32) {
    %c0_i32 = arith.constant 0 : i32
    %c0_i32_0 = arith.constant 0 : i32
    %c0_i32_1 = arith.constant 0 : i32
    return %c0_i32, %c0_i32_0 : i32, i32
  }
  func.func @transform_22(%arg0: i32) -> (i32, i32) {
    %c0_i32 = arith.constant 0 : i32
    %c0_i32_0 = arith.constant 0 : i32
    %c0_i32_1 = arith.constant 0 : i32
    return %c0_i32, %c0_i32_0 : i32, i32
  }
  func.func @transform_23(%arg0: i32) -> (i32, i32, i32) {
    %c0_i32 = arith.constant 0 : i32
    %c0_i32_0 = arith.constant 0 : i32
    %c0_i32_1 = arith.constant 0 : i32
    %c0_i32_2 = arith.constant 0 : i32
    return %c0_i32, %c0_i32_0, %c0_i32_1 : i32, i32, i32
  }
  func.func @transform_24(%arg0: i32) -> (i32, i32, i32) {
    %c0_i32 = arith.constant 0 : i32
    %c0_i32_0 = arith.constant 0 : i32
    %c0_i32_1 = arith.constant 0 : i32
    %c0_i32_2 = arith.constant 0 : i32
    return %c0_i32, %c0_i32_0, %c0_i32_1 : i32, i32, i32
  }
  func.func @transform_25(%arg0: i32) -> (i32, i32, i32) {
    %c0_i32 = arith.constant 0 : i32
    %c0_i32_0 = arith.constant 0 : i32
    %c0_i32_1 = arith.constant 0 : i32
    %c0_i32_2 = arith.constant 0 : i32
    return %c0_i32, %c0_i32_0, %c0_i32_1 : i32, i32, i32
  }
  func.func @transform_26(%arg0: i32) -> (i32, i32, i32) {
    %c0_i32 = arith.constant 0 : i32
    %c0_i32_0 = arith.constant 0 : i32
    %c0_i32_1 = arith.constant 0 : i32
    %c0_i32_2 = arith.constant 0 : i32
    return %c0_i32, %c0_i32_0, %c0_i32_1 : i32, i32, i32
  }
  func.func @transform_27(%arg0: i32) -> (i32, i32, i32) {
    %c0_i32 = arith.constant 0 : i32
    %c0_i32_0 = arith.constant 0 : i32
    %c0_i32_1 = arith.constant 0 : i32
    %c0_i32_2 = arith.constant 0 : i32
    return %c0_i32, %c0_i32_0, %c0_i32_1 : i32, i32, i32
  }
  func.func @transform_28(%arg0: i32) -> (i32, i32, i32) {
    %c0_i32 = arith.constant 0 : i32
    %c0_i32_0 = arith.constant 0 : i32
    %c0_i32_1 = arith.constant 0 : i32
    %c0_i32_2 = arith.constant 0 : i32
    return %c0_i32, %c0_i32_0, %c0_i32_1 : i32, i32, i32
  }
  func.func @transform_29(%arg0: i32) -> (i32, i32, i32) {
    %c0_i32 = arith.constant 0 : i32
    %c0_i32_0 = arith.constant 0 : i32
    %c0_i32_1 = arith.constant 0 : i32
    %c0_i32_2 = arith.constant 0 : i32
    return %c0_i32, %c0_i32_0, %c0_i32_1 : i32, i32, i32
  }
  func.func @transform_30(%arg0: i32) -> (i32, i32) {
    %c0_i32 = arith.constant 0 : i32
    %c0_i32_0 = arith.constant 0 : i32
    %c0_i32_1 = arith.constant 0 : i32
    return %c0_i32, %c0_i32_0 : i32, i32
  }
  func.func @transform_31(%arg0: i32) -> (i32, i32) {
    %c0_i32 = arith.constant 0 : i32
    %c0_i32_0 = arith.constant 0 : i32
    %c0_i32_1 = arith.constant 0 : i32
    return %c0_i32, %c0_i32_0 : i32, i32
  }
  func.func @transform_32(%arg0: i32) -> (i32, i32) {
    %c0_i32 = arith.constant 0 : i32
    %c0_i32_0 = arith.constant 0 : i32
    %c0_i32_1 = arith.constant 0 : i32
    return %c0_i32, %c0_i32_0 : i32, i32
  }
  func.func @transform_33(%arg0: i32) -> (i32, i32) {
    %c0_i32 = arith.constant 0 : i32
    %c0_i32_0 = arith.constant 0 : i32
    %c0_i32_1 = arith.constant 0 : i32
    return %c0_i32, %c0_i32_0 : i32, i32
  }
  func.func @transform_34(%arg0: i32) -> (i32, i32) {
    %c0_i32 = arith.constant 0 : i32
    %c0_i32_0 = arith.constant 0 : i32
    %c0_i32_1 = arith.constant 0 : i32
    return %c0_i32, %c0_i32_0 : i32, i32
  }
  func.func @transform_35(%arg0: i32) -> (i32, i32) {
    %c0_i32 = arith.constant 0 : i32
    %c0_i32_0 = arith.constant 0 : i32
    %c0_i32_1 = arith.constant 0 : i32
    return %c0_i32, %c0_i32_0 : i32, i32
  }
  func.func @transform_36(%arg0: i32) -> (i32, i32) {
    %c0_i32 = arith.constant 0 : i32
    %c0_i32_0 = arith.constant 0 : i32
    %c0_i32_1 = arith.constant 0 : i32
    return %c0_i32, %c0_i32_0 : i32, i32
  }
  func.func @transform_37(%arg0: i32) -> (i32, i32) {
    %c0_i32 = arith.constant 0 : i32
    %c0_i32_0 = arith.constant 0 : i32
    %c0_i32_1 = arith.constant 0 : i32
    return %c0_i32, %c0_i32_0 : i32, i32
  }
  func.func @transform_38(%arg0: i32) -> (i32, i32) {
    %c0_i32 = arith.constant 0 : i32
    %c0_i32_0 = arith.constant 0 : i32
    %c0_i32_1 = arith.constant 0 : i32
    return %c0_i32, %c0_i32_0 : i32, i32
  }
  func.func @transform_39(%arg0: i32) -> (i32, i32, i32) {
    %c0_i32 = arith.constant 0 : i32
    %c0_i32_0 = arith.constant 0 : i32
    %c0_i32_1 = arith.constant 0 : i32
    return %arg0, %c0_i32, %c0_i32_0 : i32, i32, i32
  }
}

</mosaic_0001>

<llo_original>
// kernel: forward.1
$region0: #{forward.1}
  #allocation0 [shape = 'u32[]', space=smem, size = 0x4, offset = 0x4, fixed_abs, tag = 'smem constant byte address 0x4 - core index']
  #allocation1 [shape = 'u32[144,128]{1,0:T(1,128)}', space=vmem, size = 0x12000, scoped, tag = 'internal scratch']
  #allocation2 [shape = 'f32[5,32]{1,0:T(8,128)}', space=vmem, size = 0x1000, scoped, tag = 'scratch operand']
  %s0 = inlined_call_operand.smem [shape: u32[40], index: -1, kind: input, shape index: {}]
  %s1 = sld [smem:[%s0]]
  %s2 = scalar_lea.smem %s0, 1
  %s3 = sld [smem:[%s2]]
  %s4 = scalar_lea.smem %s0, 2
  %s5 = sld [smem:[%s4]]
  %s6 = scalar_lea.smem %s0, 3
  %s7 = sld [smem:[%s6]]
  %s8 = scalar_lea.smem %s0, 4
  %s9 = sld [smem:[%s8]]
  %s10 = scalar_lea.smem %s0, 5
  %s11 = sld [smem:[%s10]]
  %s12 = scalar_lea.smem %s0, 6
  %s13 = sld [smem:[%s12]]
  %s14 = scalar_lea.smem %s0, 7
  %s15 = sld [smem:[%s14]]
  %s16 = scalar_lea.smem %s0, 8
  %s17 = sld [smem:[%s16]]
  %s18 = scalar_lea.smem %s0, 9
  %s19 = sld [smem:[%s18]]
  %s20 = scalar_lea.smem %s0, 10
  %s21 = sld [smem:[%s20]]
  %s22 = scalar_lea.smem %s0, 11
  %s23 = sld [smem:[%s22]]
  %s24 = scalar_lea.smem %s0, 12
  %s25 = sld [smem:[%s24]]
  %s26 = scalar_lea.smem %s0, 13
  %s27 = sld [smem:[%s26]]
  %s28 = scalar_lea.smem %s0, 14
  %s29 = sld [smem:[%s28]]
  %s30 = scalar_lea.smem %s0, 15
  %s31 = sld [smem:[%s30]]
  %s32 = scalar_lea.smem %s0, 16
  %s33 = sld [smem:[%s32]]
  %s34 = scalar_lea.smem %s0, 17
  %s35 = sld [smem:[%s34]]
  %s36 = scalar_lea.smem %s0, 18
  %s37 = sld [smem:[%s36]]
  %s38 = scalar_lea.smem %s0, 19
  %s39 = sld [smem:[%s38]]
  %s40 = scalar_lea.smem %s0, 20
  %s41 = sld [smem:[%s40]]
  %s42 = scalar_lea.smem %s0, 21
  %s43 = sld [smem:[%s42]]
  %s44 = scalar_lea.smem %s0, 22
  %s45 = sld [smem:[%s44]]
  %s46 = scalar_lea.smem %s0, 23
  %s47 = sld [smem:[%s46]]
  %s48 = scalar_lea.smem %s0, 24
  %s49 = sld [smem:[%s48]]
  %s50 = scalar_lea.smem %s0, 25
  %s51 = sld [smem:[%s50]]
  %s52 = scalar_lea.smem %s0, 26
  %s53 = sld [smem:[%s52]]
  %s54 = scalar_lea.smem %s0, 27
  %s55 = sld [smem:[%s54]]
  %s56 = scalar_lea.smem %s0, 28
  %s57 = sld [smem:[%s56]]
  %s58 = scalar_lea.smem %s0, 29
  %s59 = sld [smem:[%s58]]
  %s60 = scalar_lea.smem %s0, 30
  %s61 = sld [smem:[%s60]]
  %s62 = scalar_lea.smem %s0, 31
  %s63 = sld [smem:[%s62]]
  %s64 = scalar_lea.smem %s0, 32
  %s65 = sld [smem:[%s64]]
  %s66 = scalar_lea.smem %s0, 33
  %s67 = sld [smem:[%s66]]
  %s68 = scalar_lea.smem %s0, 34
  %s69 = sld [smem:[%s68]]
  %s70 = scalar_lea.smem %s0, 35
  %s71 = sld [smem:[%s70]]
  %s72 = scalar_lea.smem %s0, 36
  %s73 = sld [smem:[%s72]]
  %s74 = scalar_lea.smem %s0, 37
  %s75 = sld [smem:[%s74]]
  %s76 = scalar_lea.smem %s0, 38
  %s77 = sld [smem:[%s76]]
  %s78 = scalar_lea.smem %s0, 39
  %s79 = sld [smem:[%s78]]
  %s80 = sld [smem:[#allocation0]]
  $region189: #{forward.1} parent=0
    _
  %s82 = ssub.s32 1, %s80
  %s83 = scalar_select 0, %s82, %s80
  $region1: #{forward.1} parent=0
    #allocation3 [shape = 'u8[1024]{0}', space=vmem, size = 0x400, scoped, tag = 'output window, operand 0']
    #allocation4 [shape = 's32[2]{0}', space=sflag, size = 0x8, scoped, tag = 'scoped memory for forward.1']
    %84 = vsyncpa [#allocation4], 0
    %s85 = scalar_lea.sflag [#allocation4], 1
    %86 = vsyncpa %s85, 0
    loop: start=0, step=1, limit=4
    $region2: #{forward.1} parent=1 // loop_pre_header
      _
    $region3: #{forward.1} parent=1 // loop_header
      %s88 = sphi 0, %s92
      %p89 = scmp.ge.s32.totalorder %s88, 4
      %s98 = sphi 0, %s100
      %s101 = sphi 0, %s98
      %s102 = sphi 0, %s101
      %s118 = sphi 0, %s102
      %s122 = sphi 0, %s122
      %s124 = sphi 0, %s122
      %s125 = sphi 0, %s124
      %s139 = sphi 0, %s125
      %s143 = sphi 0, %s143
      %s145 = sphi 0, %s143
      %s146 = sphi 0, %s145
      %s160 = sphi 0, %s146
      %s164 = sphi 0, %s164
      %s166 = sphi 0, %s164
      %s167 = sphi 0, %s166
      %s181 = sphi 0, %s167
      %s185 = sphi 0, %s185
      %s187 = sphi 0, %s185
      %s188 = sphi 0, %s187
      %s202 = sphi 0, %s188
      %s206 = sphi 0, %s206
      %s208 = sphi 0, %s206
      %s209 = sphi 0, %s208
      %s223 = sphi 0, %s209
      %s227 = sphi 0, %s227
      %s229 = sphi 0, %s227
      %s230 = sphi 0, %s229
      %s244 = sphi 0, %s230
      %s248 = sphi 0, %s248
      %s250 = sphi 0, %s248
      %s251 = sphi 0, %s250
      %s265 = sphi 0, %s251
      %s269 = sphi 0, %s269
      %s271 = sphi 0, %s269
      %s272 = sphi 0, %s271
      %s286 = sphi 0, %s272
      %s290 = sphi 0, %s290
      %s292 = sphi 0, %s290
      %s293 = sphi 0, %s292
      %s307 = sphi 0, %s293
      %s311 = sphi 0, %s311
      %s313 = sphi 0, %s311
      %s314 = sphi 0, %s313
      %s328 = sphi 0, %s314
      %s332 = sphi 0, %s332
      %s334 = sphi 0, %s332
      %s335 = sphi 0, %s334
      %s349 = sphi 0, %s335
      %s353 = sphi 0, %s353
      %s355 = sphi 0, %s353
      %s356 = sphi 0, %s355
      %s370 = sphi 0, %s356
      %s374 = sphi 0, %s374
      %s376 = sphi 0, %s374
      %s377 = sphi 0, %s376
      %s391 = sphi 0, %s377
      %s395 = sphi 0, %s395
      %s397 = sphi 0, %s395
      %s398 = sphi 0, %s397
      %s412 = sphi 0, %s398
      %s416 = sphi 0, %s416
      %s418 = sphi 0, %s416
      %s419 = sphi 0, %s418
      %s433 = sphi 0, %s419
      %s437 = sphi 0, %s437
      %s439 = sphi 0, %s437
      %s440 = sphi 0, %s439
      %s454 = sphi 0, %s440
      %s458 = sphi 0, %s458
      %s460 = sphi 0, %s458
      %s461 = sphi 0, %s460
      %s475 = sphi 0, %s461
      %s479 = sphi 0, %s479
      %s481 = sphi 0, %s479
      %s482 = sphi 0, %s481
      %s496 = sphi 0, %s482
      %s500 = sphi 0, %s500
      %s502 = sphi 0, %s500
      %s503 = sphi 0, %s502
      %s517 = sphi 0, %s503
      %s521 = sphi 0, %s521
      %s523 = sphi 0, %s521
      %s524 = sphi 0, %s523
      %s538 = sphi 0, %s524
      %s542 = sphi 0, %s542
      %s544 = sphi 0, %s542
      %s545 = sphi 0, %s544
      %s559 = sphi 0, %s545
      %s563 = sphi 0, %s563
      %s565 = sphi 0, %s563
      %s566 = sphi 0, %s565
      %s580 = sphi 0, %s566
      %s584 = sphi 0, %s584
      %s586 = sphi 0, %s584
      %s587 = sphi 0, %s586
      %s601 = sphi 0, %s587
      %s605 = sphi 0, %s605
      %s607 = sphi 0, %s605
      %s608 = sphi 0, %s607
      %s622 = sphi 0, %s608
      %s626 = sphi 0, %s626
      %s628 = sphi 0, %s626
      %s629 = sphi 0, %s628
      %s643 = sphi 0, %s629
      %s647 = sphi 0, %s647
      %s649 = sphi 0, %s647
      %s650 = sphi 0, %s649
      %s664 = sphi 0, %s650
      %s668 = sphi 0, %s668
      %s670 = sphi 0, %s668
      %s671 = sphi 0, %s670
      %s685 = sphi 0, %s671
      %s689 = sphi 0, %s689
      %s691 = sphi 0, %s689
      %s692 = sphi 0, %s691
      %s706 = sphi 0, %s692
      %s710 = sphi 0, %s710
      %s712 = sphi 0, %s710
      %s713 = sphi 0, %s712
      %s727 = sphi 0, %s713
      %s731 = sphi 0, %s731
      %s733 = sphi 0, %s731
      %s734 = sphi 0, %s733
      %s748 = sphi 0, %s734
      %s752 = sphi 0, %s752
      %s754 = sphi 0, %s752
      %s755 = sphi 0, %s754
      %s769 = sphi 0, %s755
      %s773 = sphi 0, %s773
      %s775 = sphi 0, %s773
      %s776 = sphi 0, %s775
      %s790 = sphi 0, %s776
      %s794 = sphi 0, %s794
      %s796 = sphi 0, %s794
      %s797 = sphi 0, %s796
      %s811 = sphi 0, %s797
      %s815 = sphi 0, %s815
      %s817 = sphi 0, %s815
      %s818 = sphi 0, %s817
      %s832 = sphi 0, %s818
      %s836 = sphi 0, %s836
      %s838 = sphi 0, %s836
      %s839 = sphi 0, %s838
      %s853 = sphi 0, %s839
      %s857 = sphi 0, %s857
      %s859 = sphi 0, %s857
      %s860 = sphi 0, %s859
      %s874 = sphi 0, %s860
      %s878 = sphi 0, %s878
      %s880 = sphi 0, %s878
      %s881 = sphi 0, %s880
      %s895 = sphi 0, %s881
      %s899 = sphi 0, %s899
      %s901 = sphi 0, %s899
      %s902 = sphi 0, %s901
      %s916 = sphi 0, %s902
      %s922 = sphi 0, %s924
      %s925 = sphi 0, %s922
      %s926 = sphi 0, %s925
      %s942 = sphi 0, %s926
    $region4: #{forward.1} parent=1 // loop_header_branch
      %91 = sbr.rel (%p89) target = $region8
    $region5: #{forward.1} parent=1 // loop_body
      %s93 = ssub.s32 %s88, 1
      %s94 = ssub.s32 %s88, 2
      %s95 = sadd.s32 %s88, 1
      %s96 = ssub.s32 %s88, %s95
      %p97 = scmp.eq.s32.totalorder %s96, 0
      %s99 = sadd.s32 %s98, 1
      %s100 = scalar_select %p97, %s98, %s99
      %p103 = pneg %p97
      %p104 = scmp.eq.s32.totalorder %s88, 1
      %p105 = por %p103, %p104
      %p106 = scmp.ne.s32.totalorder %s98, %s101
      %p107 = scmp.eq.s32.totalorder %s88, 0
      %p108 = por %p106, %p107
      %p109 = scmp.ne.s32.totalorder %s98, %s101
      %p110 = scmp.eq.s32.totalorder %s93, 1
      %p111 = por %p109, %p110
      %p112 = scmp.ne.s32.totalorder %s101, %s102
      %p113 = scmp.eq.s32.totalorder %s93, 0
      %p114 = por %p112, %p113
      %p115 = scmp.ne.s32.totalorder %s101, %s102
      %p116 = scmp.eq.s32.totalorder %s94, 1
      %p117 = por %p115, %p116
      %p119 = scmp.ne.s32.totalorder %s102, %s118
      %p120 = scmp.eq.s32.totalorder %s94, 0
      %p121 = por %p119, %p120
      %s123 = sadd.s32 %s122, 1
      %p126 = scmp.eq.s32.totalorder %s88, 1
      %p127 = scmp.ne.s32.totalorder %s122, %s124
      %p128 = scmp.eq.s32.totalorder %s88, 0
      %p129 = por %p127, %p128
      %p130 = scmp.ne.s32.totalorder %s122, %s124
      %p131 = scmp.eq.s32.totalorder %s93, 1
      %p132 = por %p130, %p131
      %p133 = scmp.ne.s32.totalorder %s124, %s125
      %p134 = scmp.eq.s32.totalorder %s93, 0
      %p135 = por %p133, %p134
      %p136 = scmp.ne.s32.totalorder %s124, %s125
      %p137 = scmp.eq.s32.totalorder %s94, 1
      %p138 = por %p136, %p137
      %p140 = scmp.ne.s32.totalorder %s125, %s139
      %p141 = scmp.eq.s32.totalorder %s94, 0
      %p142 = por %p140, %p141
      %s144 = sadd.s32 %s143, 1
      %p147 = scmp.eq.s32.totalorder %s88, 1
      %p148 = scmp.ne.s32.totalorder %s143, %s145
      %p149 = scmp.eq.s32.totalorder %s88, 0
      %p150 = por %p148, %p149
      %p151 = scmp.ne.s32.totalorder %s143, %s145
      %p152 = scmp.eq.s32.totalorder %s93, 1
      %p153 = por %p151, %p152
      %p154 = scmp.ne.s32.totalorder %s145, %s146
      %p155 = scmp.eq.s32.totalorder %s93, 0
      %p156 = por %p154, %p155
      %p157 = scmp.ne.s32.totalorder %s145, %s146
      %p158 = scmp.eq.s32.totalorder %s94, 1
      %p159 = por %p157, %p158
      %p161 = scmp.ne.s32.totalorder %s146, %s160
      %p162 = scmp.eq.s32.totalorder %s94, 0
      %p163 = por %p161, %p162
      %s165 = sadd.s32 %s164, 1
      %p168 = scmp.eq.s32.totalorder %s88, 1
      %p169 = scmp.ne.s32.totalorder %s164, %s166
      %p170 = scmp.eq.s32.totalorder %s88, 0
      %p171 = por %p169, %p170
      %p172 = scmp.ne.s32.totalorder %s164, %s166
      %p173 = scmp.eq.s32.totalorder %s93, 1
      %p174 = por %p172, %p173
      %p175 = scmp.ne.s32.totalorder %s166, %s167
      %p176 = scmp.eq.s32.totalorder %s93, 0
      %p177 = por %p175, %p176
      %p178 = scmp.ne.s32.totalorder %s166, %s167
      %p179 = scmp.eq.s32.totalorder %s94, 1
      %p180 = por %p178, %p179
      %p182 = scmp.ne.s32.totalorder %s167, %s181
      %p183 = scmp.eq.s32.totalorder %s94, 0
      %p184 = por %p182, %p183
      %s186 = sadd.s32 %s185, 1
      %p189 = scmp.eq.s32.totalorder %s88, 1
      %p190 = scmp.ne.s32.totalorder %s185, %s187
      %p191 = scmp.eq.s32.totalorder %s88, 0
      %p192 = por %p190, %p191
      %p193 = scmp.ne.s32.totalorder %s185, %s187
      %p194 = scmp.eq.s32.totalorder %s93, 1
      %p195 = por %p193, %p194
      %p196 = scmp.ne.s32.totalorder %s187, %s188
      %p197 = scmp.eq.s32.totalorder %s93, 0
      %p198 = por %p196, %p197
      %p199 = scmp.ne.s32.totalorder %s187, %s188
      %p200 = scmp.eq.s32.totalorder %s94, 1
      %p201 = por %p199, %p200
      %p203 = scmp.ne.s32.totalorder %s188, %s202
      %p204 = scmp.eq.s32.totalorder %s94, 0
      %p205 = por %p203, %p204
      %s207 = sadd.s32 %s206, 1
      %p210 = scmp.eq.s32.totalorder %s88, 1
      %p211 = scmp.ne.s32.totalorder %s206, %s208
      %p212 = scmp.eq.s32.totalorder %s88, 0
      %p213 = por %p211, %p212
      %p214 = scmp.ne.s32.totalorder %s206, %s208
      %p215 = scmp.eq.s32.totalorder %s93, 1
      %p216 = por %p214, %p215
      %p217 = scmp.ne.s32.totalorder %s208, %s209
      %p218 = scmp.eq.s32.totalorder %s93, 0
      %p219 = por %p217, %p218
      %p220 = scmp.ne.s32.totalorder %s208, %s209
      %p221 = scmp.eq.s32.totalorder %s94, 1
      %p222 = por %p220, %p221
      %p224 = scmp.ne.s32.totalorder %s209, %s223
      %p225 = scmp.eq.s32.totalorder %s94, 0
      %p226 = por %p224, %p225
      %s228 = sadd.s32 %s227, 1
      %p231 = scmp.eq.s32.totalorder %s88, 1
      %p232 = scmp.ne.s32.totalorder %s227, %s229
      %p233 = scmp.eq.s32.totalorder %s88, 0
      %p234 = por %p232, %p233
      %p235 = scmp.ne.s32.totalorder %s227, %s229
      %p236 = scmp.eq.s32.totalorder %s93, 1
      %p237 = por %p235, %p236
      %p238 = scmp.ne.s32.totalorder %s229, %s230
      %p239 = scmp.eq.s32.totalorder %s93, 0
      %p240 = por %p238, %p239
      %p241 = scmp.ne.s32.totalorder %s229, %s230
      %p242 = scmp.eq.s32.totalorder %s94, 1
      %p243 = por %p241, %p242
      %p245 = scmp.ne.s32.totalorder %s230, %s244
      %p246 = scmp.eq.s32.totalorder %s94, 0
      %p247 = por %p245, %p246
      %s249 = sadd.s32 %s248, 1
      %p252 = scmp.eq.s32.totalorder %s88, 1
      %p253 = scmp.ne.s32.totalorder %s248, %s250
      %p254 = scmp.eq.s32.totalorder %s88, 0
      %p255 = por %p253, %p254
      %p256 = scmp.ne.s32.totalorder %s248, %s250
      %p257 = scmp.eq.s32.totalorder %s93, 1
      %p258 = por %p256, %p257
      %p259 = scmp.ne.s32.totalorder %s250, %s251
      %p260 = scmp.eq.s32.totalorder %s93, 0
      %p261 = por %p259, %p260
      %p262 = scmp.ne.s32.totalorder %s250, %s251
      %p263 = scmp.eq.s32.totalorder %s94, 1
      %p264 = por %p262, %p263
      %p266 = scmp.ne.s32.totalorder %s251, %s265
      %p267 = scmp.eq.s32.totalorder %s94, 0
      %p268 = por %p266, %p267
      %s270 = sadd.s32 %s269, 1
      %p273 = scmp.eq.s32.totalorder %s88, 1
      %p274 = scmp.ne.s32.totalorder %s269, %s271
      %p275 = scmp.eq.s32.totalorder %s88, 0
      %p276 = por %p274, %p275
      %p277 = scmp.ne.s32.totalorder %s269, %s271
      %p278 = scmp.eq.s32.totalorder %s93, 1
      %p279 = por %p277, %p278
      %p280 = scmp.ne.s32.totalorder %s271, %s272
      %p281 = scmp.eq.s32.totalorder %s93, 0
      %p282 = por %p280, %p281
      %p283 = scmp.ne.s32.totalorder %s271, %s272
      %p284 = scmp.eq.s32.totalorder %s94, 1
      %p285 = por %p283, %p284
      %p287 = scmp.ne.s32.totalorder %s272, %s286
      %p288 = scmp.eq.s32.totalorder %s94, 0
      %p289 = por %p287, %p288
      %s291 = sadd.s32 %s290, 1
      %p294 = scmp.eq.s32.totalorder %s88, 1
      %p295 = scmp.ne.s32.totalorder %s290, %s292
      %p296 = scmp.eq.s32.totalorder %s88, 0
      %p297 = por %p295, %p296
      %p298 = scmp.ne.s32.totalorder %s290, %s292
      %p299 = scmp.eq.s32.totalorder %s93, 1
      %p300 = por %p298, %p299
      %p301 = scmp.ne.s32.totalorder %s292, %s293
      %p302 = scmp.eq.s32.totalorder %s93, 0
      %p303 = por %p301, %p302
      %p304 = scmp.ne.s32.totalorder %s292, %s293
      %p305 = scmp.eq.s32.totalorder %s94, 1
      %p306 = por %p304, %p305
      %p308 = scmp.ne.s32.totalorder %s293, %s307
      %p309 = scmp.eq.s32.totalorder %s94, 0
      %p310 = por %p308, %p309
      %s312 = sadd.s32 %s311, 1
      %p315 = scmp.eq.s32.totalorder %s88, 1
      %p316 = scmp.ne.s32.totalorder %s311, %s313
      %p317 = scmp.eq.s32.totalorder %s88, 0
      %p318 = por %p316, %p317
      %p319 = scmp.ne.s32.totalorder %s311, %s313
      %p320 = scmp.eq.s32.totalorder %s93, 1
      %p321 = por %p319, %p320
      %p322 = scmp.ne.s32.totalorder %s313, %s314
      %p323 = scmp.eq.s32.totalorder %s93, 0
      %p324 = por %p322, %p323
      %p325 = scmp.ne.s32.totalorder %s313, %s314
      %p326 = scmp.eq.s32.totalorder %s94, 1
      %p327 = por %p325, %p326
      %p329 = scmp.ne.s32.totalorder %s314, %s328
      %p330 = scmp.eq.s32.totalorder %s94, 0
      %p331 = por %p329, %p330
      %s333 = sadd.s32 %s332, 1
      %p336 = scmp.eq.s32.totalorder %s88, 1
      %p337 = scmp.ne.s32.totalorder %s332, %s334
      %p338 = scmp.eq.s32.totalorder %s88, 0
      %p339 = por %p337, %p338
      %p340 = scmp.ne.s32.totalorder %s332, %s334
      %p341 = scmp.eq.s32.totalorder %s93, 1
      %p342 = por %p340, %p341
      %p343 = scmp.ne.s32.totalorder %s334, %s335
      %p344 = scmp.eq.s32.totalorder %s93, 0
      %p345 = por %p343, %p344
      %p346 = scmp.ne.s32.totalorder %s334, %s335
      %p347 = scmp.eq.s32.totalorder %s94, 1
      %p348 = por %p346, %p347
      %p350 = scmp.ne.s32.totalorder %s335, %s349
      %p351 = scmp.eq.s32.totalorder %s94, 0
      %p352 = por %p350, %p351
      %s354 = sadd.s32 %s353, 1
      %p357 = scmp.eq.s32.totalorder %s88, 1
      %p358 = scmp.ne.s32.totalorder %s353, %s355
      %p359 = scmp.eq.s32.totalorder %s88, 0
      %p360 = por %p358, %p359
      %p361 = scmp.ne.s32.totalorder %s353, %s355
      %p362 = scmp.eq.s32.totalorder %s93, 1
      %p363 = por %p361, %p362
      %p364 = scmp.ne.s32.totalorder %s355, %s356
      %p365 = scmp.eq.s32.totalorder %s93, 0
      %p366 = por %p364, %p365
      %p367 = scmp.ne.s32.totalorder %s355, %s356
      %p368 = scmp.eq.s32.totalorder %s94, 1
      %p369 = por %p367, %p368
      %p371 = scmp.ne.s32.totalorder %s356, %s370
      %p372 = scmp.eq.s32.totalorder %s94, 0
      %p373 = por %p371, %p372
      %s375 = sadd.s32 %s374, 1
      %p378 = scmp.eq.s32.totalorder %s88, 1
      %p379 = scmp.ne.s32.totalorder %s374, %s376
      %p380 = scmp.eq.s32.totalorder %s88, 0
      %p381 = por %p379, %p380
      %p382 = scmp.ne.s32.totalorder %s374, %s376
      %p383 = scmp.eq.s32.totalorder %s93, 1
      %p384 = por %p382, %p383
      %p385 = scmp.ne.s32.totalorder %s376, %s377
      %p386 = scmp.eq.s32.totalorder %s93, 0
      %p387 = por %p385, %p386
      %p388 = scmp.ne.s32.totalorder %s376, %s377
      %p389 = scmp.eq.s32.totalorder %s94, 1
      %p390 = por %p388, %p389
      %p392 = scmp.ne.s32.totalorder %s377, %s391
      %p393 = scmp.eq.s32.totalorder %s94, 0
      %p394 = por %p392, %p393
      %s396 = sadd.s32 %s395, 1
      %p399 = scmp.eq.s32.totalorder %s88, 1
      %p400 = scmp.ne.s32.totalorder %s395, %s397
      %p401 = scmp.eq.s32.totalorder %s88, 0
      %p402 = por %p400, %p401
      %p403 = scmp.ne.s32.totalorder %s395, %s397
      %p404 = scmp.eq.s32.totalorder %s93, 1
      %p405 = por %p403, %p404
      %p406 = scmp.ne.s32.totalorder %s397, %s398
      %p407 = scmp.eq.s32.totalorder %s93, 0
      %p408 = por %p406, %p407
      %p409 = scmp.ne.s32.totalorder %s397, %s398
      %p410 = scmp.eq.s32.totalorder %s94, 1
      %p411 = por %p409, %p410
      %p413 = scmp.ne.s32.totalorder %s398, %s412
      %p414 = scmp.eq.s32.totalorder %s94, 0
      %p415 = por %p413, %p414
      %s417 = sadd.s32 %s416, 1
      %p420 = scmp.eq.s32.totalorder %s88, 1
      %p421 = scmp.ne.s32.totalorder %s416, %s418
      %p422 = scmp.eq.s32.totalorder %s88, 0
      %p423 = por %p421, %p422
      %p424 = scmp.ne.s32.totalorder %s416, %s418
      %p425 = scmp.eq.s32.totalorder %s93, 1
      %p426 = por %p424, %p425
      %p427 = scmp.ne.s32.totalorder %s418, %s419
      %p428 = scmp.eq.s32.totalorder %s93, 0
      %p429 = por %p427, %p428
      %p430 = scmp.ne.s32.totalorder %s418, %s419
      %p431 = scmp.eq.s32.totalorder %s94, 1
      %p432 = por %p430, %p431
      %p434 = scmp.ne.s32.totalorder %s419, %s433
      %p435 = scmp.eq.s32.totalorder %s94, 0
      %p436 = por %p434, %p435
      %s438 = sadd.s32 %s437, 1
      %p441 = scmp.eq.s32.totalorder %s88, 1
      %p442 = scmp.ne.s32.totalorder %s437, %s439
      %p443 = scmp.eq.s32.totalorder %s88, 0
      %p444 = por %p442, %p443
      %p445 = scmp.ne.s32.totalorder %s437, %s439
      %p446 = scmp.eq.s32.totalorder %s93, 1
      %p447 = por %p445, %p446
      %p448 = scmp.ne.s32.totalorder %s439, %s440
      %p449 = scmp.eq.s32.totalorder %s93, 0
      %p450 = por %p448, %p449
      %p451 = scmp.ne.s32.totalorder %s439, %s440
      %p452 = scmp.eq.s32.totalorder %s94, 1
      %p453 = por %p451, %p452
      %p455 = scmp.ne.s32.totalorder %s440, %s454
      %p456 = scmp.eq.s32.totalorder %s94, 0
      %p457 = por %p455, %p456
      %s459 = sadd.s32 %s458, 1
      %p462 = scmp.eq.s32.totalorder %s88, 1
      %p463 = scmp.ne.s32.totalorder %s458, %s460
      %p464 = scmp.eq.s32.totalorder %s88, 0
      %p465 = por %p463, %p464
      %p466 = scmp.ne.s32.totalorder %s458, %s460
      %p467 = scmp.eq.s32.totalorder %s93, 1
      %p468 = por %p466, %p467
      %p469 = scmp.ne.s32.totalorder %s460, %s461
      %p470 = scmp.eq.s32.totalorder %s93, 0
      %p471 = por %p469, %p470
      %p472 = scmp.ne.s32.totalorder %s460, %s461
      %p473 = scmp.eq.s32.totalorder %s94, 1
      %p474 = por %p472, %p473
      %p476 = scmp.ne.s32.totalorder %s461, %s475
      %p477 = scmp.eq.s32.totalorder %s94, 0
      %p478 = por %p476, %p477
      %s480 = sadd.s32 %s479, 1
      %p483 = scmp.eq.s32.totalorder %s88, 1
      %p484 = scmp.ne.s32.totalorder %s479, %s481
      %p485 = scmp.eq.s32.totalorder %s88, 0
      %p486 = por %p484, %p485
      %p487 = scmp.ne.s32.totalorder %s479, %s481
      %p488 = scmp.eq.s32.totalorder %s93, 1
      %p489 = por %p487, %p488
      %p490 = scmp.ne.s32.totalorder %s481, %s482
      %p491 = scmp.eq.s32.totalorder %s93, 0
      %p492 = por %p490, %p491
      %p493 = scmp.ne.s32.totalorder %s481, %s482
      %p494 = scmp.eq.s32.totalorder %s94, 1
      %p495 = por %p493, %p494
      %p497 = scmp.ne.s32.totalorder %s482, %s496
      %p498 = scmp.eq.s32.totalorder %s94, 0
      %p499 = por %p497, %p498
      %s501 = sadd.s32 %s500, 1
      %p504 = scmp.eq.s32.totalorder %s88, 1
      %p505 = scmp.ne.s32.totalorder %s500, %s502
      %p506 = scmp.eq.s32.totalorder %s88, 0
      %p507 = por %p505, %p506
      %p508 = scmp.ne.s32.totalorder %s500, %s502
      %p509 = scmp.eq.s32.totalorder %s93, 1
      %p510 = por %p508, %p509
      %p511 = scmp.ne.s32.totalorder %s502, %s503
      %p512 = scmp.eq.s32.totalorder %s93, 0
      %p513 = por %p511, %p512
      %p514 = scmp.ne.s32.totalorder %s502, %s503
      %p515 = scmp.eq.s32.totalorder %s94, 1
      %p516 = por %p514, %p515
      %p518 = scmp.ne.s32.totalorder %s503, %s517
      %p519 = scmp.eq.s32.totalorder %s94, 0
      %p520 = por %p518, %p519
      %s522 = sadd.s32 %s521, 1
      %p525 = scmp.eq.s32.totalorder %s88, 1
      %p526 = scmp.ne.s32.totalorder %s521, %s523
      %p527 = scmp.eq.s32.totalorder %s88, 0
      %p528 = por %p526, %p527
      %p529 = scmp.ne.s32.totalorder %s521, %s523
      %p530 = scmp.eq.s32.totalorder %s93, 1
      %p531 = por %p529, %p530
      %p532 = scmp.ne.s32.totalorder %s523, %s524
      %p533 = scmp.eq.s32.totalorder %s93, 0
      %p534 = por %p532, %p533
      %p535 = scmp.ne.s32.totalorder %s523, %s524
      %p536 = scmp.eq.s32.totalorder %s94, 1
      %p537 = por %p535, %p536
      %p539 = scmp.ne.s32.totalorder %s524, %s538
      %p540 = scmp.eq.s32.totalorder %s94, 0
      %p541 = por %p539, %p540
      %s543 = sadd.s32 %s542, 1
      %p546 = scmp.eq.s32.totalorder %s88, 1
      %p547 = scmp.ne.s32.totalorder %s542, %s544
      %p548 = scmp.eq.s32.totalorder %s88, 0
      %p549 = por %p547, %p548
      %p550 = scmp.ne.s32.totalorder %s542, %s544
      %p551 = scmp.eq.s32.totalorder %s93, 1
      %p552 = por %p550, %p551
      %p553 = scmp.ne.s32.totalorder %s544, %s545
      %p554 = scmp.eq.s32.totalorder %s93, 0
      %p555 = por %p553, %p554
      %p556 = scmp.ne.s32.totalorder %s544, %s545
      %p557 = scmp.eq.s32.totalorder %s94, 1
      %p558 = por %p556, %p557
      %p560 = scmp.ne.s32.totalorder %s545, %s559
      %p561 = scmp.eq.s32.totalorder %s94, 0
      %p562 = por %p560, %p561
      %s564 = sadd.s32 %s563, 1
      %p567 = scmp.eq.s32.totalorder %s88, 1
      %p568 = scmp.ne.s32.totalorder %s563, %s565
      %p569 = scmp.eq.s32.totalorder %s88, 0
      %p570 = por %p568, %p569
      %p571 = scmp.ne.s32.totalorder %s563, %s565
      %p572 = scmp.eq.s32.totalorder %s93, 1
      %p573 = por %p571, %p572
      %p574 = scmp.ne.s32.totalorder %s565, %s566
      %p575 = scmp.eq.s32.totalorder %s93, 0
      %p576 = por %p574, %p575
      %p577 = scmp.ne.s32.totalorder %s565, %s566
      %p578 = scmp.eq.s32.totalorder %s94, 1
      %p579 = por %p577, %p578
      %p581 = scmp.ne.s32.totalorder %s566, %s580
      %p582 = scmp.eq.s32.totalorder %s94, 0
      %p583 = por %p581, %p582
      %s585 = sadd.s32 %s584, 1
      %p588 = scmp.eq.s32.totalorder %s88, 1
      %p589 = scmp.ne.s32.totalorder %s584, %s586
      %p590 = scmp.eq.s32.totalorder %s88, 0
      %p591 = por %p589, %p590
      %p592 = scmp.ne.s32.totalorder %s584, %s586
      %p593 = scmp.eq.s32.totalorder %s93, 1
      %p594 = por %p592, %p593
      %p595 = scmp.ne.s32.totalorder %s586, %s587
      %p596 = scmp.eq.s32.totalorder %s93, 0
      %p597 = por %p595, %p596
      %p598 = scmp.ne.s32.totalorder %s586, %s587
      %p599 = scmp.eq.s32.totalorder %s94, 1
      %p600 = por %p598, %p599
      %p602 = scmp.ne.s32.totalorder %s587, %s601
      %p603 = scmp.eq.s32.totalorder %s94, 0
      %p604 = por %p602, %p603
      %s606 = sadd.s32 %s605, 1
      %p609 = scmp.eq.s32.totalorder %s88, 1
      %p610 = scmp.ne.s32.totalorder %s605, %s607
      %p611 = scmp.eq.s32.totalorder %s88, 0
      %p612 = por %p610, %p611
      %p613 = scmp.ne.s32.totalorder %s605, %s607
      %p614 = scmp.eq.s32.totalorder %s93, 1
      %p615 = por %p613, %p614
      %p616 = scmp.ne.s32.totalorder %s607, %s608
      %p617 = scmp.eq.s32.totalorder %s93, 0
      %p618 = por %p616, %p617
      %p619 = scmp.ne.s32.totalorder %s607, %s608
      %p620 = scmp.eq.s32.totalorder %s94, 1
      %p621 = por %p619, %p620
      %p623 = scmp.ne.s32.totalorder %s608, %s622
      %p624 = scmp.eq.s32.totalorder %s94, 0
      %p625 = por %p623, %p624
      %s627 = sadd.s32 %s626, 1
      %p630 = scmp.eq.s32.totalorder %s88, 1
      %p631 = scmp.ne.s32.totalorder %s626, %s628
      %p632 = scmp.eq.s32.totalorder %s88, 0
      %p633 = por %p631, %p632
      %p634 = scmp.ne.s32.totalorder %s626, %s628
      %p635 = scmp.eq.s32.totalorder %s93, 1
      %p636 = por %p634, %p635
      %p637 = scmp.ne.s32.totalorder %s628, %s629
      %p638 = scmp.eq.s32.totalorder %s93, 0
      %p639 = por %p637, %p638
      %p640 = scmp.ne.s32.totalorder %s628, %s629
      %p641 = scmp.eq.s32.totalorder %s94, 1
      %p642 = por %p640, %p641
      %p644 = scmp.ne.s32.totalorder %s629, %s643
      %p645 = scmp.eq.s32.totalorder %s94, 0
      %p646 = por %p644, %p645
      %s648 = sadd.s32 %s647, 1
      %p651 = scmp.eq.s32.totalorder %s88, 1
      %p652 = scmp.ne.s32.totalorder %s647, %s649
      %p653 = scmp.eq.s32.totalorder %s88, 0
      %p654 = por %p652, %p653
      %p655 = scmp.ne.s32.totalorder %s647, %s649
      %p656 = scmp.eq.s32.totalorder %s93, 1
      %p657 = por %p655, %p656
      %p658 = scmp.ne.s32.totalorder %s649, %s650
      %p659 = scmp.eq.s32.totalorder %s93, 0
      %p660 = por %p658, %p659
      %p661 = scmp.ne.s32.totalorder %s649, %s650
      %p662 = scmp.eq.s32.totalorder %s94, 1
      %p663 = por %p661, %p662
      %p665 = scmp.ne.s32.totalorder %s650, %s664
      %p666 = scmp.eq.s32.totalorder %s94, 0
      %p667 = por %p665, %p666
      %s669 = sadd.s32 %s668, 1
      %p672 = scmp.eq.s32.totalorder %s88, 1
      %p673 = scmp.ne.s32.totalorder %s668, %s670
      %p674 = scmp.eq.s32.totalorder %s88, 0
      %p675 = por %p673, %p674
      %p676 = scmp.ne.s32.totalorder %s668, %s670
      %p677 = scmp.eq.s32.totalorder %s93, 1
      %p678 = por %p676, %p677
      %p679 = scmp.ne.s32.totalorder %s670, %s671
      %p680 = scmp.eq.s32.totalorder %s93, 0
      %p681 = por %p679, %p680
      %p682 = scmp.ne.s32.totalorder %s670, %s671
      %p683 = scmp.eq.s32.totalorder %s94, 1
      %p684 = por %p682, %p683
      %p686 = scmp.ne.s32.totalorder %s671, %s685
      %p687 = scmp.eq.s32.totalorder %s94, 0
      %p688 = por %p686, %p687
      %s690 = sadd.s32 %s689, 1
      %p693 = scmp.eq.s32.totalorder %s88, 1
      %p694 = scmp.ne.s32.totalorder %s689, %s691
      %p695 = scmp.eq.s32.totalorder %s88, 0
      %p696 = por %p694, %p695
      %p697 = scmp.ne.s32.totalorder %s689, %s691
      %p698 = scmp.eq.s32.totalorder %s93, 1
      %p699 = por %p697, %p698
      %p700 = scmp.ne.s32.totalorder %s691, %s692
      %p701 = scmp.eq.s32.totalorder %s93, 0
      %p702 = por %p700, %p701
      %p703 = scmp.ne.s32.totalorder %s691, %s692
      %p704 = scmp.eq.s32.totalorder %s94, 1
      %p705 = por %p703, %p704
      %p707 = scmp.ne.s32.totalorder %s692, %s706
      %p708 = scmp.eq.s32.totalorder %s94, 0
      %p709 = por %p707, %p708
      %s711 = sadd.s32 %s710, 1
      %p714 = scmp.eq.s32.totalorder %s88, 1
      %p715 = scmp.ne.s32.totalorder %s710, %s712
      %p716 = scmp.eq.s32.totalorder %s88, 0
      %p717 = por %p715, %p716
      %p718 = scmp.ne.s32.totalorder %s710, %s712
      %p719 = scmp.eq.s32.totalorder %s93, 1
      %p720 = por %p718, %p719
      %p721 = scmp.ne.s32.totalorder %s712, %s713
      %p722 = scmp.eq.s32.totalorder %s93, 0
      %p723 = por %p721, %p722
      %p724 = scmp.ne.s32.totalorder %s712, %s713
      %p725 = scmp.eq.s32.totalorder %s94, 1
      %p726 = por %p724, %p725
      %p728 = scmp.ne.s32.totalorder %s713, %s727
      %p729 = scmp.eq.s32.totalorder %s94, 0
      %p730 = por %p728, %p729
      %s732 = sadd.s32 %s731, 1
      %p735 = scmp.eq.s32.totalorder %s88, 1
      %p736 = scmp.ne.s32.totalorder %s731, %s733
      %p737 = scmp.eq.s32.totalorder %s88, 0
      %p738 = por %p736, %p737
      %p739 = scmp.ne.s32.totalorder %s731, %s733
      %p740 = scmp.eq.s32.totalorder %s93, 1
      %p741 = por %p739, %p740
      %p742 = scmp.ne.s32.totalorder %s733, %s734
      %p743 = scmp.eq.s32.totalorder %s93, 0
      %p744 = por %p742, %p743
      %p745 = scmp.ne.s32.totalorder %s733, %s734
      %p746 = scmp.eq.s32.totalorder %s94, 1
      %p747 = por %p745, %p746
      %p749 = scmp.ne.s32.totalorder %s734, %s748
      %p750 = scmp.eq.s32.totalorder %s94, 0
      %p751 = por %p749, %p750
      %s753 = sadd.s32 %s752, 1
      %p756 = scmp.eq.s32.totalorder %s88, 1
      %p757 = scmp.ne.s32.totalorder %s752, %s754
      %p758 = scmp.eq.s32.totalorder %s88, 0
      %p759 = por %p757, %p758
      %p760 = scmp.ne.s32.totalorder %s752, %s754
      %p761 = scmp.eq.s32.totalorder %s93, 1
      %p762 = por %p760, %p761
      %p763 = scmp.ne.s32.totalorder %s754, %s755
      %p764 = scmp.eq.s32.totalorder %s93, 0
      %p765 = por %p763, %p764
      %p766 = scmp.ne.s32.totalorder %s754, %s755
      %p767 = scmp.eq.s32.totalorder %s94, 1
      %p768 = por %p766, %p767
      %p770 = scmp.ne.s32.totalorder %s755, %s769
      %p771 = scmp.eq.s32.totalorder %s94, 0
      %p772 = por %p770, %p771
      %s774 = sadd.s32 %s773, 1
      %p777 = scmp.eq.s32.totalorder %s88, 1
      %p778 = scmp.ne.s32.totalorder %s773, %s775
      %p779 = scmp.eq.s32.totalorder %s88, 0
      %p780 = por %p778, %p779
      %p781 = scmp.ne.s32.totalorder %s773, %s775
      %p782 = scmp.eq.s32.totalorder %s93, 1
      %p783 = por %p781, %p782
      %p784 = scmp.ne.s32.totalorder %s775, %s776
      %p785 = scmp.eq.s32.totalorder %s93, 0
      %p786 = por %p784, %p785
      %p787 = scmp.ne.s32.totalorder %s775, %s776
      %p788 = scmp.eq.s32.totalorder %s94, 1
      %p789 = por %p787, %p788
      %p791 = scmp.ne.s32.totalorder %s776, %s790
      %p792 = scmp.eq.s32.totalorder %s94, 0
      %p793 = por %p791, %p792
      %s795 = sadd.s32 %s794, 1
      %p798 = scmp.eq.s32.totalorder %s88, 1
      %p799 = scmp.ne.s32.totalorder %s794, %s796
      %p800 = scmp.eq.s32.totalorder %s88, 0
      %p801 = por %p799, %p800
      %p802 = scmp.ne.s32.totalorder %s794, %s796
      %p803 = scmp.eq.s32.totalorder %s93, 1
      %p804 = por %p802, %p803
      %p805 = scmp.ne.s32.totalorder %s796, %s797
      %p806 = scmp.eq.s32.totalorder %s93, 0
      %p807 = por %p805, %p806
      %p808 = scmp.ne.s32.totalorder %s796, %s797
      %p809 = scmp.eq.s32.totalorder %s94, 1
      %p810 = por %p808, %p809
      %p812 = scmp.ne.s32.totalorder %s797, %s811
      %p813 = scmp.eq.s32.totalorder %s94, 0
      %p814 = por %p812, %p813
      %s816 = sadd.s32 %s815, 1
      %p819 = scmp.eq.s32.totalorder %s88, 1
      %p820 = scmp.ne.s32.totalorder %s815, %s817
      %p821 = scmp.eq.s32.totalorder %s88, 0
      %p822 = por %p820, %p821
      %p823 = scmp.ne.s32.totalorder %s815, %s817
      %p824 = scmp.eq.s32.totalorder %s93, 1
      %p825 = por %p823, %p824
      %p826 = scmp.ne.s32.totalorder %s817, %s818
      %p827 = scmp.eq.s32.totalorder %s93, 0
      %p828 = por %p826, %p827
      %p829 = scmp.ne.s32.totalorder %s817, %s818
      %p830 = scmp.eq.s32.totalorder %s94, 1
      %p831 = por %p829, %p830
      %p833 = scmp.ne.s32.totalorder %s818, %s832
      %p834 = scmp.eq.s32.totalorder %s94, 0
      %p835 = por %p833, %p834
      %s837 = sadd.s32 %s836, 1
      %p840 = scmp.eq.s32.totalorder %s88, 1
      %p841 = scmp.ne.s32.totalorder %s836, %s838
      %p842 = scmp.eq.s32.totalorder %s88, 0
      %p843 = por %p841, %p842
      %p844 = scmp.ne.s32.totalorder %s836, %s838
      %p845 = scmp.eq.s32.totalorder %s93, 1
      %p846 = por %p844, %p845
      %p847 = scmp.ne.s32.totalorder %s838, %s839
      %p848 = scmp.eq.s32.totalorder %s93, 0
      %p849 = por %p847, %p848
      %p850 = scmp.ne.s32.totalorder %s838, %s839
      %p851 = scmp.eq.s32.totalorder %s94, 1
      %p852 = por %p850, %p851
      %p854 = scmp.ne.s32.totalorder %s839, %s853
      %p855 = scmp.eq.s32.totalorder %s94, 0
      %p856 = por %p854, %p855
      %s858 = sadd.s32 %s857, 1
      %p861 = scmp.eq.s32.totalorder %s88, 1
      %p862 = scmp.ne.s32.totalorder %s857, %s859
      %p863 = scmp.eq.s32.totalorder %s88, 0
      %p864 = por %p862, %p863
      %p865 = scmp.ne.s32.totalorder %s857, %s859
      %p866 = scmp.eq.s32.totalorder %s93, 1
      %p867 = por %p865, %p866
      %p868 = scmp.ne.s32.totalorder %s859, %s860
      %p869 = scmp.eq.s32.totalorder %s93, 0
      %p870 = por %p868, %p869
      %p871 = scmp.ne.s32.totalorder %s859, %s860
      %p872 = scmp.eq.s32.totalorder %s94, 1
      %p873 = por %p871, %p872
      %p875 = scmp.ne.s32.totalorder %s860, %s874
      %p876 = scmp.eq.s32.totalorder %s94, 0
      %p877 = por %p875, %p876
      %s879 = sadd.s32 %s878, 1
      %p882 = scmp.eq.s32.totalorder %s88, 1
      %p883 = scmp.ne.s32.totalorder %s878, %s880
      %p884 = scmp.eq.s32.totalorder %s88, 0
      %p885 = por %p883, %p884
      %p886 = scmp.ne.s32.totalorder %s878, %s880
      %p887 = scmp.eq.s32.totalorder %s93, 1
      %p888 = por %p886, %p887
      %p889 = scmp.ne.s32.totalorder %s880, %s881
      %p890 = scmp.eq.s32.totalorder %s93, 0
      %p891 = por %p889, %p890
      %p892 = scmp.ne.s32.totalorder %s880, %s881
      %p893 = scmp.eq.s32.totalorder %s94, 1
      %p894 = por %p892, %p893
      %p896 = scmp.ne.s32.totalorder %s881, %s895
      %p897 = scmp.eq.s32.totalorder %s94, 0
      %p898 = por %p896, %p897
      %s900 = sadd.s32 %s899, 1
      %p903 = scmp.eq.s32.totalorder %s88, 1
      %p904 = scmp.ne.s32.totalorder %s899, %s901
      %p905 = scmp.eq.s32.totalorder %s88, 0
      %p906 = por %p904, %p905
      %p907 = scmp.ne.s32.totalorder %s899, %s901
      %p908 = scmp.eq.s32.totalorder %s93, 1
      %p909 = por %p907, %p908
      %p910 = scmp.ne.s32.totalorder %s901, %s902
      %p911 = scmp.eq.s32.totalorder %s93, 0
      %p912 = por %p910, %p911
      %p913 = scmp.ne.s32.totalorder %s901, %s902
      %p914 = scmp.eq.s32.totalorder %s94, 1
      %p915 = por %p913, %p914
      %p917 = scmp.ne.s32.totalorder %s902, %s916
      %p918 = scmp.eq.s32.totalorder %s94, 0
      %p919 = por %p917, %p918
      %s920 = ssub.s32 %s88, %s95
      %p921 = scmp.eq.s32.totalorder %s920, 0
      %s923 = sadd.s32 %s922, 1
      %s924 = scalar_select %p921, %s922, %s923
      %p927 = pneg %p921
      %p928 = scmp.eq.s32.totalorder %s88, 1
      %p929 = por %p927, %p928
      %p930 = scmp.ne.s32.totalorder %s922, %s925
      %p931 = scmp.eq.s32.totalorder %s88, 0
      %p932 = por %p930, %p931
      %p933 = scmp.ne.s32.totalorder %s922, %s925
      %p934 = scmp.eq.s32.totalorder %s93, 1
      %p935 = por %p933, %p934
      %p936 = scmp.ne.s32.totalorder %s925, %s926
      %p937 = scmp.eq.s32.totalorder %s93, 0
      %p938 = por %p936, %p937
      %p939 = scmp.ne.s32.totalorder %s925, %s926
      %p940 = scmp.eq.s32.totalorder %s94, 1
      %p941 = por %p939, %p940
      %p943 = scmp.ne.s32.totalorder %s926, %s942
      %p944 = scmp.eq.s32.totalorder %s94, 0
      %p945 = por %p943, %p944
      %p946 = scmp.le.s32.totalorder 1, %s88
      %p947 = scmp.lt.s32.totalorder %s88, 3
      %p948 = pnand %p946, %p947
      %p949 = pneg %p948
      // Predicated region
      $region9: #{forward.1} parent=5 // pred_check
        _
      $region10: #{forward.1} parent=5 // pred_check_branch
        %951 = sbr.rel (%p948) target = $region12
      $region11: #{forward.1} parent=5 // pred_region
        %s952 = ssub.s32 %s88, 1
        // Predicated region
        $region13: #{forward.1} parent=11 // pred_check
          %p953 = pneg %p135
        $region14: #{forward.1} parent=11 // pred_check_branch
          %955 = sbr.rel (%p953) target = $region16
        $region15: #{forward.1} parent=11 // pred_region
          _
        $region16: #{forward.1} parent=11 // pred_fallthru
          _
        // Predicated region
        $region17: #{forward.1} parent=11 // pred_check
          %p956 = pneg %p156
        $region18: #{forward.1} parent=11 // pred_check_branch
          %958 = sbr.rel (%p956) target = $region20
        $region19: #{forward.1} parent=11 // pred_region
          _
        $region20: #{forward.1} parent=11 // pred_fallthru
          _
        // Predicated region
        $region21: #{forward.1} parent=11 // pred_check
          %p959 = pneg %p177
        $region22: #{forward.1} parent=11 // pred_check_branch
          %961 = sbr.rel (%p959) target = $region24
        $region23: #{forward.1} parent=11 // pred_region
          _
        $region24: #{forward.1} parent=11 // pred_fallthru
          _
        // Predicated region
        $region25: #{forward.1} parent=11 // pred_check
          %p962 = pneg %p198
        $region26: #{forward.1} parent=11 // pred_check_branch
          %964 = sbr.rel (%p962) target = $region28
        $region27: #{forward.1} parent=11 // pred_region
          _
        $region28: #{forward.1} parent=11 // pred_fallthru
          _
        // Predicated region
        $region29: #{forward.1} parent=11 // pred_check
          %p965 = pneg %p219
        $region30: #{forward.1} parent=11 // pred_check_branch
          %967 = sbr.rel (%p965) target = $region32
        $region31: #{forward.1} parent=11 // pred_region
          _
        $region32: #{forward.1} parent=11 // pred_fallthru
          _
        // Predicated region
        $region33: #{forward.1} parent=11 // pred_check
          %p968 = pneg %p240
        $region34: #{forward.1} parent=11 // pred_check_branch
          %970 = sbr.rel (%p968) target = $region36
        $region35: #{forward.1} parent=11 // pred_region
          _
        $region36: #{forward.1} parent=11 // pred_fallthru
          _
        // Predicated region
        $region37: #{forward.1} parent=11 // pred_check
          %p971 = pneg %p261
        $region38: #{forward.1} parent=11 // pred_check_branch
          %973 = sbr.rel (%p971) target = $region40
        $region39: #{forward.1} parent=11 // pred_region
          _
        $region40: #{forward.1} parent=11 // pred_fallthru
          _
        // Predicated region
        $region41: #{forward.1} parent=11 // pred_check
          %p974 = pneg %p282
        $region42: #{forward.1} parent=11 // pred_check_branch
          %976 = sbr.rel (%p974) target = $region44
        $region43: #{forward.1} parent=11 // pred_region
          _
        $region44: #{forward.1} parent=11 // pred_fallthru
          _
        // Predicated region
        $region45: #{forward.1} parent=11 // pred_check
          %p977 = pneg %p303
        $region46: #{forward.1} parent=11 // pred_check_branch
          %979 = sbr.rel (%p977) target = $region48
        $region47: #{forward.1} parent=11 // pred_region
          _
        $region48: #{forward.1} parent=11 // pred_fallthru
          _
        // Predicated region
        $region49: #{forward.1} parent=11 // pred_check
          %p980 = pneg %p324
        $region50: #{forward.1} parent=11 // pred_check_branch
          %982 = sbr.rel (%p980) target = $region52
        $region51: #{forward.1} parent=11 // pred_region
          _
        $region52: #{forward.1} parent=11 // pred_fallthru
          _
        // Predicated region
        $region53: #{forward.1} parent=11 // pred_check
          %p983 = pneg %p345
        $region54: #{forward.1} parent=11 // pred_check_branch
          %985 = sbr.rel (%p983) target = $region56
        $region55: #{forward.1} parent=11 // pred_region
          _
        $region56: #{forward.1} parent=11 // pred_fallthru
          _
        // Predicated region
        $region57: #{forward.1} parent=11 // pred_check
          %p986 = pneg %p366
        $region58: #{forward.1} parent=11 // pred_check_branch
          %988 = sbr.rel (%p986) target = $region60
        $region59: #{forward.1} parent=11 // pred_region
          _
        $region60: #{forward.1} parent=11 // pred_fallthru
          _
        // Predicated region
        $region61: #{forward.1} parent=11 // pred_check
          %p989 = pneg %p387
        $region62: #{forward.1} parent=11 // pred_check_branch
          %991 = sbr.rel (%p989) target = $region64
        $region63: #{forward.1} parent=11 // pred_region
          _
        $region64: #{forward.1} parent=11 // pred_fallthru
          _
        // Predicated region
        $region65: #{forward.1} parent=11 // pred_check
          %p992 = pneg %p408
        $region66: #{forward.1} parent=11 // pred_check_branch
          %994 = sbr.rel (%p992) target = $region68
        $region67: #{forward.1} parent=11 // pred_region
          _
        $region68: #{forward.1} parent=11 // pred_fallthru
          _
        // Predicated region
        $region69: #{forward.1} parent=11 // pred_check
          %p995 = pneg %p429
        $region70: #{forward.1} parent=11 // pred_check_branch
          %997 = sbr.rel (%p995) target = $region72
        $region71: #{forward.1} parent=11 // pred_region
          _
        $region72: #{forward.1} parent=11 // pred_fallthru
          _
        // Predicated region
        $region73: #{forward.1} parent=11 // pred_check
          %p998 = pneg %p450
        $region74: #{forward.1} parent=11 // pred_check_branch
          %1000 = sbr.rel (%p998) target = $region76
        $region75: #{forward.1} parent=11 // pred_region
          _
        $region76: #{forward.1} parent=11 // pred_fallthru
          _
        // Predicated region
        $region77: #{forward.1} parent=11 // pred_check
          %p1001 = pneg %p471
        $region78: #{forward.1} parent=11 // pred_check_branch
          %1003 = sbr.rel (%p1001) target = $region80
        $region79: #{forward.1} parent=11 // pred_region
          _
        $region80: #{forward.1} parent=11 // pred_fallthru
          _
        // Predicated region
        $region81: #{forward.1} parent=11 // pred_check
          %p1004 = pneg %p492
        $region82: #{forward.1} parent=11 // pred_check_branch
          %1006 = sbr.rel (%p1004) target = $region84
        $region83: #{forward.1} parent=11 // pred_region
          _
        $region84: #{forward.1} parent=11 // pred_fallthru
          _
        // Predicated region
        $region85: #{forward.1} parent=11 // pred_check
          %p1007 = pneg %p513
        $region86: #{forward.1} parent=11 // pred_check_branch
          %1009 = sbr.rel (%p1007) target = $region88
        $region87: #{forward.1} parent=11 // pred_region
          _
        $region88: #{forward.1} parent=11 // pred_fallthru
          _
        // Predicated region
        $region89: #{forward.1} parent=11 // pred_check
          %p1010 = pneg %p534
        $region90: #{forward.1} parent=11 // pred_check_branch
          %1012 = sbr.rel (%p1010) target = $region92
        $region91: #{forward.1} parent=11 // pred_region
          _
        $region92: #{forward.1} parent=11 // pred_fallthru
          _
        // Predicated region
        $region93: #{forward.1} parent=11 // pred_check
          %p1013 = pneg %p555
        $region94: #{forward.1} parent=11 // pred_check_branch
          %1015 = sbr.rel (%p1013) target = $region96
        $region95: #{forward.1} parent=11 // pred_region
          _
        $region96: #{forward.1} parent=11 // pred_fallthru
          _
        // Predicated region
        $region97: #{forward.1} parent=11 // pred_check
          %p1016 = pneg %p576
        $region98: #{forward.1} parent=11 // pred_check_branch
          %1018 = sbr.rel (%p1016) target = $region100
        $region99: #{forward.1} parent=11 // pred_region
          _
        $region100: #{forward.1} parent=11 // pred_fallthru
          _
        // Predicated region
        $region101: #{forward.1} parent=11 // pred_check
          %p1019 = pneg %p597
        $region102: #{forward.1} parent=11 // pred_check_branch
          %1021 = sbr.rel (%p1019) target = $region104
        $region103: #{forward.1} parent=11 // pred_region
          _
        $region104: #{forward.1} parent=11 // pred_fallthru
          _
        // Predicated region
        $region105: #{forward.1} parent=11 // pred_check
          %p1022 = pneg %p618
        $region106: #{forward.1} parent=11 // pred_check_branch
          %1024 = sbr.rel (%p1022) target = $region108
        $region107: #{forward.1} parent=11 // pred_region
          _
        $region108: #{forward.1} parent=11 // pred_fallthru
          _
        // Predicated region
        $region109: #{forward.1} parent=11 // pred_check
          %p1025 = pneg %p639
        $region110: #{forward.1} parent=11 // pred_check_branch
          %1027 = sbr.rel (%p1025) target = $region112
        $region111: #{forward.1} parent=11 // pred_region
          _
        $region112: #{forward.1} parent=11 // pred_fallthru
          _
        // Predicated region
        $region113: #{forward.1} parent=11 // pred_check
          %p1028 = pneg %p660
        $region114: #{forward.1} parent=11 // pred_check_branch
          %1030 = sbr.rel (%p1028) target = $region116
        $region115: #{forward.1} parent=11 // pred_region
          _
        $region116: #{forward.1} parent=11 // pred_fallthru
          _
        // Predicated region
        $region117: #{forward.1} parent=11 // pred_check
          %p1031 = pneg %p681
        $region118: #{forward.1} parent=11 // pred_check_branch
          %1033 = sbr.rel (%p1031) target = $region120
        $region119: #{forward.1} parent=11 // pred_region
          _
        $region120: #{forward.1} parent=11 // pred_fallthru
          _
        // Predicated region
        $region121: #{forward.1} parent=11 // pred_check
          %p1034 = pneg %p702
        $region122: #{forward.1} parent=11 // pred_check_branch
          %1036 = sbr.rel (%p1034) target = $region124
        $region123: #{forward.1} parent=11 // pred_region
          _
        $region124: #{forward.1} parent=11 // pred_fallthru
          _
        // Predicated region
        $region125: #{forward.1} parent=11 // pred_check
          %p1037 = pneg %p723
        $region126: #{forward.1} parent=11 // pred_check_branch
          %1039 = sbr.rel (%p1037) target = $region128
        $region127: #{forward.1} parent=11 // pred_region
          _
        $region128: #{forward.1} parent=11 // pred_fallthru
          _
        // Predicated region
        $region129: #{forward.1} parent=11 // pred_check
          %p1040 = pneg %p744
        $region130: #{forward.1} parent=11 // pred_check_branch
          %1042 = sbr.rel (%p1040) target = $region132
        $region131: #{forward.1} parent=11 // pred_region
          _
        $region132: #{forward.1} parent=11 // pred_fallthru
          _
        // Predicated region
        $region133: #{forward.1} parent=11 // pred_check
          %p1043 = pneg %p765
        $region134: #{forward.1} parent=11 // pred_check_branch
          %1045 = sbr.rel (%p1043) target = $region136
        $region135: #{forward.1} parent=11 // pred_region
          _
        $region136: #{forward.1} parent=11 // pred_fallthru
          _
        // Predicated region
        $region137: #{forward.1} parent=11 // pred_check
          %p1046 = pneg %p786
        $region138: #{forward.1} parent=11 // pred_check_branch
          %1048 = sbr.rel (%p1046) target = $region140
        $region139: #{forward.1} parent=11 // pred_region
          _
        $region140: #{forward.1} parent=11 // pred_fallthru
          _
        // Predicated region
        $region141: #{forward.1} parent=11 // pred_check
          %p1049 = pneg %p807
        $region142: #{forward.1} parent=11 // pred_check_branch
          %1051 = sbr.rel (%p1049) target = $region144
        $region143: #{forward.1} parent=11 // pred_region
          _
        $region144: #{forward.1} parent=11 // pred_fallthru
          _
        // Predicated region
        $region145: #{forward.1} parent=11 // pred_check
          %p1052 = pneg %p828
        $region146: #{forward.1} parent=11 // pred_check_branch
          %1054 = sbr.rel (%p1052) target = $region148
        $region147: #{forward.1} parent=11 // pred_region
          _
        $region148: #{forward.1} parent=11 // pred_fallthru
          _
        // Predicated region
        $region149: #{forward.1} parent=11 // pred_check
          %p1055 = pneg %p849
        $region150: #{forward.1} parent=11 // pred_check_branch
          %1057 = sbr.rel (%p1055) target = $region152
        $region151: #{forward.1} parent=11 // pred_region
          _
        $region152: #{forward.1} parent=11 // pred_fallthru
          _
        // Predicated region
        $region153: #{forward.1} parent=11 // pred_check
          %p1058 = pneg %p870
        $region154: #{forward.1} parent=11 // pred_check_branch
          %1060 = sbr.rel (%p1058) target = $region156
        $region155: #{forward.1} parent=11 // pred_region
          _
        $region156: #{forward.1} parent=11 // pred_fallthru
          _
        // Predicated region
        $region157: #{forward.1} parent=11 // pred_check
          %p1061 = pneg %p891
        $region158: #{forward.1} parent=11 // pred_check_branch
          %1063 = sbr.rel (%p1061) target = $region160
        $region159: #{forward.1} parent=11 // pred_region
          _
        $region160: #{forward.1} parent=11 // pred_fallthru
          _
        // Predicated region
        $region161: #{forward.1} parent=11 // pred_check
          %p1064 = pneg %p912
        $region162: #{forward.1} parent=11 // pred_check_branch
          %1066 = sbr.rel (%p1064) target = $region164
        $region163: #{forward.1} parent=11 // pred_region
          _
        $region164: #{forward.1} parent=11 // pred_fallthru
          _
      $region12: #{forward.1} parent=5 // pred_fallthru
        _
      %p1067 = scmp.lt.s32.totalorder %s88, 2
      // Predicated region
      $region165: #{forward.1} parent=5 // pred_check
        %p1068 = pneg %p1067
      $region166: #{forward.1} parent=5 // pred_check_branch
        %1070 = sbr.rel (%p1068) target = $region168
      $region167: #{forward.1} parent=5 // pred_region
        // Predicated region
        $region169: #{forward.1} parent=167 // pred_check
          %p1071 = pneg %p108
        $region170: #{forward.1} parent=167 // pred_check_branch
          %1073 = sbr.rel (%p1071) target = $region172
        $region171: #{forward.1} parent=167 // pred_region
          %p1074 = scmp.lt.s32.totalorder %s88, 1
          %s1075 = scalar_select %p1074, %s88, 1
          %s1076 = smul.addr %s1075, 2
          %s1077 = smul.addr %s1076, 4
          %s1078 = scalar_lea.vmem %s1, %s1077
        $region172: #{forward.1} parent=167 // pred_fallthru
          _
      $region168: #{forward.1} parent=5 // pred_fallthru
        _
      %p1079 = scmp.le.s32.totalorder 1, %s88
      %p1080 = scmp.lt.s32.totalorder %s88, 3
      %p1081 = pnand %p1079, %p1080
      %p1082 = pneg %p1081
      // Predicated region
      $region173: #{forward.1} parent=5 // pred_check
        _
      $region174: #{forward.1} parent=5 // pred_check_branch
        %1084 = sbr.rel (%p1081) target = $region176
      $region175: #{forward.1} parent=5 // pred_region
        %s1085 = ssub.s32 %s88, 1
        %p1086 = scmp.lt.s32.totalorder %s93, 1
        %s1087 = scalar_select %p1086, %s93, 1
        %s1088 = smul.addr %s1087, 2
        %s1089 = smul.addr %s1088, 4
        %s1090 = scalar_lea.vmem %s1, %s1089
        %p1091 = pneg %p114
        %p1092 = pneg %p111
        %p1093 = pneg %p135
        %p1094 = pneg %p132
        %p1095 = pneg %p156
        %p1096 = pneg %p153
        %p1097 = pneg %p177
        %p1098 = pneg %p174
        %p1099 = pneg %p198
        %p1100 = pneg %p195
        %p1101 = pneg %p219
        %p1102 = pneg %p216
        %p1103 = pneg %p240
        %p1104 = pneg %p237
        %p1105 = pneg %p261
        %p1106 = pneg %p258
        %p1107 = pneg %p282
        %p1108 = pneg %p279
        %p1109 = pneg %p303
        %p1110 = pneg %p300
        %p1111 = pneg %p324
        %p1112 = pneg %p321
        %p1113 = pneg %p345
        %p1114 = pneg %p342
        %p1115 = pneg %p366
        %p1116 = pneg %p363
        %p1117 = pneg %p387
        %p1118 = pneg %p384
        %p1119 = pneg %p408
        %p1120 = pneg %p405
        %p1121 = pneg %p429
        %p1122 = pneg %p426
        %p1123 = pneg %p450
        %p1124 = pneg %p447
        %p1125 = pneg %p471
        %p1126 = pneg %p468
        %p1127 = pneg %p492
        %p1128 = pneg %p489
        %p1129 = pneg %p513
        %p1130 = pneg %p510
        %p1131 = pneg %p534
        %p1132 = pneg %p531
        %p1133 = pneg %p555
        %p1134 = pneg %p552
        %p1135 = pneg %p576
        %p1136 = pneg %p573
        %p1137 = pneg %p597
        %p1138 = pneg %p594
        %p1139 = pneg %p618
        %p1140 = pneg %p615
        %p1141 = pneg %p639
        %p1142 = pneg %p636
        %p1143 = pneg %p660
        %p1144 = pneg %p657
        %p1145 = pneg %p681
        %p1146 = pneg %p678
        %p1147 = pneg %p702
        %p1148 = pneg %p699
        %p1149 = pneg %p723
        %p1150 = pneg %p720
        %p1151 = pneg %p744
        %p1152 = pneg %p741
        %p1153 = pneg %p765
        %p1154 = pneg %p762
        %p1155 = pneg %p786
        %p1156 = pneg %p783
        %p1157 = pneg %p807
        %p1158 = pneg %p804
        %p1159 = pneg %p828
        %p1160 = pneg %p825
        %p1161 = pneg %p849
        %p1162 = pneg %p846
        %p1163 = pneg %p870
        %p1164 = pneg %p867
        %p1165 = pneg %p891
        %p1166 = pneg %p888
        %p1167 = pneg %p912
        %p1168 = pneg %p909
        %p1169 = pneg %p938
        %p1170 = pneg %p935
        %s1171 = sand.u32 %s925, 1
        %s1172 = scalar_lea.sflag [#allocation4], %s1171
        %s1173 = sand.u32 %s925, 1
        %s1174 = scalar_lea.vmem [#allocation3], %s1173
        %p1175 = scmp.lt.s32.totalorder %s93, 1
        %s1176 = scalar_select %p1175, %s93, 1
        %s1177 = smul.addr %s1176, 2
        %s1178 = smul.addr %s1177, 4
        %s1179 = scalar_lea.vmem %s1, %s1178
        %v1181 = vld [vmem:[%s1179] sm:$0xff]
        %v1183 = vcombine.high %v1181, %v1181
        %v1185 = vpack.c.bf16 %v1181, %v1181
        %v1186 = vpack.c.bf16 %v1183, %v1183
        %v1187 = vld [vmem:[%s3] sm:$0xf]
        %v1188 = vld [vmem:[%s3 + $0x4] sm:$0xf]
        %v1189 = vld [vmem:[%s3 + $0x8] sm:$0xf]
        %v1190 = vld [vmem:[%s3 + $0xc] sm:$0xf]
        %v1191 = vld [vmem:[%s3 + $0x10] sm:$0xf]
        %v1192 = vld [vmem:[%s3 + $0x14] sm:$0xf]
        %v1193 = vld [vmem:[%s3 + $0x18] sm:$0xf]
        %v1194 = vld [vmem:[%s3 + $0x1c] sm:$0xf]
        %v1195 = vld [vmem:[%s3 + $0x20] sm:$0xf]
        %v1196 = vld [vmem:[%s3 + $0x24] sm:$0xf]
        %v1197 = vld [vmem:[%s3 + $0x28] sm:$0xf]
        %v1198 = vld [vmem:[%s3 + $0x2c] sm:$0xf]
        %v1199 = vld [vmem:[%s3 + $0x30] sm:$0xf]
        %v1200 = vld [vmem:[%s3 + $0x34] sm:$0xf]
        %v1201 = vld [vmem:[%s3 + $0x38] sm:$0xf]
        %v1202 = vld [vmem:[%s3 + $0x3c] sm:$0xf]
        %v1203 = vld [vmem:[%s3 + $0x40] sm:$0xf]
        %v1204 = vld [vmem:[%s3 + $0x44] sm:$0xf]
        %v1205 = vld [vmem:[%s3 + $0x48] sm:$0xf]
        %v1206 = vld [vmem:[%s3 + $0x4c] sm:$0xf]
        %v1207 = vld [vmem:[%s3 + $0x50] sm:$0xf]
        %v1208 = vld [vmem:[%s3 + $0x54] sm:$0xf]
        %v1209 = vld [vmem:[%s3 + $0x58] sm:$0xf]
        %v1210 = vld [vmem:[%s3 + $0x5c] sm:$0xf]
        %v1211 = vld [vmem:[%s5] sm:$0x1]
        %v1213 = vlaneseq
        %v1214 = vshrl.u32 %v1213, 7
        %v1215 = vsub.s32 0, %v1214
        %v1216 = vrot.slane %v1211, %v1215
        %v1242 = vunpack.c.l.b16 %v1187
        %v1243 = vunpack.c.l.b16 %v1188
        %v1244 = vunpack.c.l.b16 %v1189
        %v1245 = vunpack.c.l.b16 %v1190
        %v1246 = vunpack.c.l.b16 %v1191
        %v1247 = vunpack.c.l.b16 %v1192
        %v1248 = vunpack.c.l.b16 %v1193
        %v1249 = vunpack.c.l.b16 %v1194
        %v1250 = vunpack.c.l.b16 %v1195
        %v1251 = vunpack.c.l.b16 %v1196
        %v1252 = vunpack.c.l.b16 %v1197
        %v1253 = vunpack.c.l.b16 %v1198
        %v1254 = vunpack.c.l.b16 %v1199
        %v1255 = vunpack.c.l.b16 %v1200
        %v1256 = vunpack.c.l.b16 %v1201
        %v1257 = vunpack.c.l.b16 %v1202
        %v1258 = vunpack.c.l.b16 %v1203
        %v1259 = vunpack.c.l.b16 %v1204
        %v1260 = vunpack.c.l.b16 %v1205
        %v1261 = vunpack.c.l.b16 %v1206
        %v1262 = vunpack.c.l.b16 %v1207
        %v1263 = vunpack.c.l.b16 %v1208
        %v1264 = vunpack.c.l.b16 %v1209
        %v1265 = vunpack.c.l.b16 %v1210
        %v1266 = vpack.c.b16 %v1243, %v1242
        %v1267 = vpack.c.b16 %v1245, %v1244
        %v1268 = vpack.c.b16 %v1247, %v1246
        %v1269 = vpack.c.b16 %v1249, %v1248
        %v1270 = vpack.c.b16 %v1251, %v1250
        %v1271 = vpack.c.b16 %v1253, %v1252
        %v1272 = vpack.c.b16 %v1255, %v1254
        %v1273 = vpack.c.b16 %v1257, %v1256
        %v1274 = vpack.c.b16 %v1259, %v1258
        %v1275 = vpack.c.b16 %v1261, %v1260
        %v1276 = vpack.c.b16 %v1263, %v1262
        %v1277 = vpack.c.b16 %v1265, %v1264
        %vm1290 = vcmask 523264
        %v1292 = vsel %vm1290, %v1186, 0
        %1294 = vmatprep.subr.bf16.mxu0 0
        %1295 = vmatpush1.bf16.msra.mxu0 %v1273
        %1296 = vmatprep.subr.bf16.mxu0 0
        %1297 = vmatpush1.bf16.msra.mxu0 %v1272
        %1298 = vmatprep.subr.bf16.mxu0 0
        %1299 = vmatpush1.bf16.msra.mxu0 %v1271
        %1300 = vmatprep.subr.bf16.mxu0 0
        %1301 = vmatpush1.bf16.msra.mxu0 %v1270
        %1302 = vmatprep.subr.bf16.mxu0 0
        %1303 = vmatpush1.bf16.msra.mxu0 %v1269
        %1304 = vmatprep.subr.bf16.mxu0 0
        %1305 = vmatpush1.bf16.msra.mxu0 %v1268
        %1306 = vmatprep.subr.bf16.mxu0 0
        %1307 = vmatpush1.bf16.msra.mxu0 %v1267
        %1308 = vmatprep.subr.bf16.mxu0 0
        %1309 = vmatpush1.bf16.msra.mxu0 %v1266
        %1310 = vmatprep.subr.bf16.mxu0 0
        %1311 = vmatpush2.bf16.msra.mxu0 0
        %1312 = vmatprep.subr.bf16.mxu0 0
        %1313 = vmatpush2.bf16.msra.mxu0 0
        %1314 = vmatprep.subr.bf16.mxu0 0
        %1315 = vmatpush2.bf16.msra.mxu0 0
        %1316 = vmatprep.subr.bf16.mxu0 0
        %1317 = vmatpush2.bf16.msra.mxu0 0
        %1318 = vmatprep.subr.bf16.mxu0 0
        %1319 = vmatpush2.bf16.msra.mxu0 %v1277
        %1320 = vmatprep.subr.bf16.mxu0 0
        %1321 = vmatpush2.bf16.msra.mxu0 %v1276
        %1322 = vmatprep.subr.bf16.mxu0 0
        %1323 = vmatpush2.bf16.msra.mxu0 %v1275
        %1324 = vmatprep.subr.bf16.mxu0 0
        %1325 = vmatpush2.bf16.msra.mxu0 %v1274
        %1326 = vmatprep.mubr.bf16.mxu0 %v1292
        %1327 = vmatmul.mubr.bf16.gmra.mxu0 %v1185
        %v1328 = vpop.f32.mrf.mxu0
        %v1329 = vadd.f32 %v1216, %v1328
        %v1330 = vpop.f32.mrf.mxu0
        %v1331 = vpop.f32.mrf.mxu0
        %v1332 = vpop.f32.mrf.mxu0
        %1333 = vdwg.mxu0
        %v1334 = vld [vmem:[%s7] sm:$0x1]
        %v1335 = vld [vmem:[%s9] sm:$0x1]
        %v1336 = vadd.f32 %v1334, %v1335
        %vm1337 = vcmask 253952
        %1338 = vst.msk [vmem:[#allocation2] sm:$0x1] %vm1337, %v1336
        %v1339 = vld [vmem:[%s9 + $0x1] sm:$0xf]
        %v1340 = vadd.f32 %v1329, %v1339
        %vm1341 = vcmask 257024
        %1342 = vst.msk [vmem:[#allocation2 + $0x1] sm:$0xf] %vm1341, %v1340
        %v1343 = vld [vmem:[#allocation2] sm:$0x1f]
        %v1344 = vld [vmem:[%s11] sm:$0x1]
        %v1345 = vld [vmem:[%s13] sm:$0x1]
        %vm1346 = vcmask 258048
        %v1347 = vsel %vm1346, %v1343, 0.0
        %1348 = vadd.xlane.f32.xlu0 %v1347
        %v1349 = vpop.xlane.xlu0 %1348
        %v1350 = vrcp.pop 32.0
        %v1351 = vmul.f32 %v1349, %v1350
        %v1352 = vsub.f32 %v1343, %v1351
        %v1353 = vmul.f32 %v1352, %v1352
        %v1354 = vsel %vm1346, %v1353, 0.0
        %1355 = vadd.xlane.f32.xlu0 %v1354
        %v1356 = vpop.xlane.xlu0 %1355
        %v1357 = vmul.f32 %v1356, %v1350
        %v1358 = vadd.f32 %v1357, 1e-06
        %v1359 = vrsqrt.pop %v1358
        %v1360 = vmul.f32 %v1352, %v1359
        %v1362 = vlaneseq
        %v1363 = vshrl.u32 %v1362, 7
        %v1364 = vsub.s32 0, %v1363
        %v1365 = vrot.slane %v1344, %v1364
        %v1367 = vmul.f32 %v1360, %v1365
        %v1369 = vlaneseq
        %v1370 = vshrl.u32 %v1369, 7
        %v1371 = vsub.s32 0, %v1370
        %v1372 = vrot.slane %v1345, %v1371
        %v1374 = vadd.f32 %v1367, %v1372
        %v1375 = vpack.c.bf16 %v1374, %v1374
        %v1376 = vld [vmem:[%s15] sm:$0xf]
        %v1377 = vld [vmem:[%s15 + $0x4] sm:$0xf]
        %v1378 = vld [vmem:[%s15 + $0x8] sm:$0xf]
        %v1379 = vld [vmem:[%s15 + $0xc] sm:$0xf]
        %v1380 = vld [vmem:[%s17] sm:$0x1]
        %v1382 = vlaneseq
        %v1383 = vshrl.u32 %v1382, 7
        %v1384 = vsub.s32 0, %v1383
        %v1385 = vrot.slane %v1380, %v1384
        %v1391 = vunpack.c.l.b16 %v1376
        %v1392 = vunpack.c.l.b16 %v1377
        %v1393 = vunpack.c.l.b16 %v1378
        %v1394 = vunpack.c.l.b16 %v1379
        %v1395 = vpack.c.b16 %v1392, %v1391
        %v1396 = vpack.c.b16 %v1394, %v1393
        %vm1399 = vcmask 261120
        %v1401 = vsel %vm1399, %v1375, 0
        %1403 = vmatprep.subr.bf16.mxu0 0
        %1404 = vmatpush1.bf16.msra.mxu0 0
        %1405 = vmatprep.subr.bf16.mxu0 0
        %1406 = vmatpush1.bf16.msra.mxu0 0
        %1407 = vmatprep.subr.bf16.mxu0 0
        %1408 = vmatpush1.bf16.msra.mxu0 0
        %1409 = vmatprep.subr.bf16.mxu0 0
        %1410 = vmatpush1.bf16.msra.mxu0 0
        %1411 = vmatprep.subr.bf16.mxu0 0
        %1412 = vmatpush1.bf16.msra.mxu0 0
        %1413 = vmatprep.subr.bf16.mxu0 0
        %1414 = vmatpush1.bf16.msra.mxu0 0
        %1415 = vmatprep.subr.bf16.mxu0 0
        %1416 = vmatpush1.bf16.msra.mxu0 %v1396
        %1417 = vmatprep.subr.bf16.mxu0 0
        %1418 = vmatpush1.bf16.msra.mxu0 %v1395
        %1419 = vmatprep.subr.bf16.mxu0 0
        %1420 = vmatpush2.bf16.msra.mxu0 0
        %1421 = vmatprep.subr.bf16.mxu0 0
        %1422 = vmatpush2.bf16.msra.mxu0 0
        %1423 = vmatprep.subr.bf16.mxu0 0
        %1424 = vmatpush2.bf16.msra.mxu0 0
        %1425 = vmatprep.subr.bf16.mxu0 0
        %1426 = vmatpush2.bf16.msra.mxu0 0
        %1427 = vmatprep.subr.bf16.mxu0 0
        %1428 = vmatpush2.bf16.msra.mxu0 0
        %1429 = vmatprep.subr.bf16.mxu0 0
        %1430 = vmatpush2.bf16.msra.mxu0 0
        %1431 = vmatprep.subr.bf16.mxu0 0
        %1432 = vmatpush2.bf16.msra.mxu0 0
        %1433 = vmatprep.subr.bf16.mxu0 0
        %1434 = vmatpush2.bf16.msra.mxu0 0
        %1435 = vmatprep.mubr.bf16.mxu0 0
        %1436 = vmatmul.mubr.bf16.gmra.mxu0 %v1401
        %v1437 = vpop.f32.mrf.mxu0
        %v1438 = vadd.f32 %v1385, %v1437
        %v1439 = vpop.f32.mrf.mxu0
        %v1440 = vpop.f32.mrf.mxu0
        %v1441 = vpop.f32.mrf.mxu0
        %1442 = vdwg.mxu0
        %v1443 = vld [vmem:[%s19] sm:$0xf]
        %v1444 = vld [vmem:[%s19 + $0x4] sm:$0xf]
        %v1445 = vld [vmem:[%s19 + $0x8] sm:$0xf]
        %v1446 = vld [vmem:[%s19 + $0xc] sm:$0xf]
        %v1447 = vld [vmem:[%s21] sm:$0x1]
        %v1449 = vlaneseq
        %v1450 = vshrl.u32 %v1449, 7
        %v1451 = vsub.s32 0, %v1450
        %v1452 = vrot.slane %v1447, %v1451
        %v1458 = vunpack.c.l.b16 %v1443
        %v1459 = vunpack.c.l.b16 %v1444
        %v1460 = vunpack.c.l.b16 %v1445
        %v1461 = vunpack.c.l.b16 %v1446
        %v1462 = vpack.c.b16 %v1459, %v1458
        %v1463 = vpack.c.b16 %v1461, %v1460
        %1466 = vmatprep.subr.bf16.mxu0 0
        %1467 = vmatpush1.bf16.msra.mxu0 0
        %1468 = vmatprep.subr.bf16.mxu0 0
        %1469 = vmatpush1.bf16.msra.mxu0 0
        %1470 = vmatprep.subr.bf16.mxu0 0
        %1471 = vmatpush1.bf16.msra.mxu0 0
        %1472 = vmatprep.subr.bf16.mxu0 0
        %1473 = vmatpush1.bf16.msra.mxu0 0
        %1474 = vmatprep.subr.bf16.mxu0 0
        %1475 = vmatpush1.bf16.msra.mxu0 0
        %1476 = vmatprep.subr.bf16.mxu0 0
        %1477 = vmatpush1.bf16.msra.mxu0 0
        %1478 = vmatprep.subr.bf16.mxu0 0
        %1479 = vmatpush1.bf16.msra.mxu0 %v1463
        %1480 = vmatprep.subr.bf16.mxu0 0
        %1481 = vmatpush1.bf16.msra.mxu0 %v1462
        %1482 = vmatprep.subr.bf16.mxu0 0
        %1483 = vmatpush2.bf16.msra.mxu0 0
        %1484 = vmatprep.subr.bf16.mxu0 0
        %1485 = vmatpush2.bf16.msra.mxu0 0
        %1486 = vmatprep.subr.bf16.mxu0 0
        %1487 = vmatpush2.bf16.msra.mxu0 0
        %1488 = vmatprep.subr.bf16.mxu0 0
        %1489 = vmatpush2.bf16.msra.mxu0 0
        %1490 = vmatprep.subr.bf16.mxu0 0
        %1491 = vmatpush2.bf16.msra.mxu0 0
        %1492 = vmatprep.subr.bf16.mxu0 0
        %1493 = vmatpush2.bf16.msra.mxu0 0
        %1494 = vmatprep.subr.bf16.mxu0 0
        %1495 = vmatpush2.bf16.msra.mxu0 0
        %1496 = vmatprep.subr.bf16.mxu0 0
        %1497 = vmatpush2.bf16.msra.mxu0 0
        %1498 = vmatprep.mubr.bf16.mxu0 0
        %1499 = vmatmul.mubr.bf16.gmra.mxu0 %v1401
        %v1500 = vpop.f32.mrf.mxu0
        %v1501 = vadd.f32 %v1452, %v1500
        %v1502 = vpop.f32.mrf.mxu0
        %v1503 = vpop.f32.mrf.mxu0
        %v1504 = vpop.f32.mrf.mxu0
        %1505 = vdwg.mxu0
        %v1506 = vld [vmem:[%s23] sm:$0xf]
        %v1507 = vld [vmem:[%s23 + $0x4] sm:$0xf]
        %v1508 = vld [vmem:[%s23 + $0x8] sm:$0xf]
        %v1509 = vld [vmem:[%s23 + $0xc] sm:$0xf]
        %v1510 = vld [vmem:[%s25] sm:$0x1]
        %v1512 = vlaneseq
        %v1513 = vshrl.u32 %v1512, 7
        %v1514 = vsub.s32 0, %v1513
        %v1515 = vrot.slane %v1510, %v1514
        %v1521 = vunpack.c.l.b16 %v1506
        %v1522 = vunpack.c.l.b16 %v1507
        %v1523 = vunpack.c.l.b16 %v1508
        %v1524 = vunpack.c.l.b16 %v1509
        %v1525 = vpack.c.b16 %v1522, %v1521
        %v1526 = vpack.c.b16 %v1524, %v1523
        %1529 = vmatprep.subr.bf16.mxu0 0
        %1530 = vmatpush1.bf16.msra.mxu0 0
        %1531 = vmatprep.subr.bf16.mxu0 0
        %1532 = vmatpush1.bf16.msra.mxu0 0
        %1533 = vmatprep.subr.bf16.mxu0 0
        %1534 = vmatpush1.bf16.msra.mxu0 0
        %1535 = vmatprep.subr.bf16.mxu0 0
        %1536 = vmatpush1.bf16.msra.mxu0 0
        %1537 = vmatprep.subr.bf16.mxu0 0
        %1538 = vmatpush1.bf16.msra.mxu0 0
        %1539 = vmatprep.subr.bf16.mxu0 0
        %1540 = vmatpush1.bf16.msra.mxu0 0
        %1541 = vmatprep.subr.bf16.mxu0 0
        %1542 = vmatpush1.bf16.msra.mxu0 %v1526
        %1543 = vmatprep.subr.bf16.mxu0 0
        %1544 = vmatpush1.bf16.msra.mxu0 %v1525
        %1545 = vmatprep.subr.bf16.mxu0 0
        %1546 = vmatpush2.bf16.msra.mxu0 0
        %1547 = vmatprep.subr.bf16.mxu0 0
        %1548 = vmatpush2.bf16.msra.mxu0 0
        %1549 = vmatprep.subr.bf16.mxu0 0
        %1550 = vmatpush2.bf16.msra.mxu0 0
        %1551 = vmatprep.subr.bf16.mxu0 0
        %1552 = vmatpush2.bf16.msra.mxu0 0
        %1553 = vmatprep.subr.bf16.mxu0 0
        %1554 = vmatpush2.bf16.msra.mxu0 0
        %1555 = vmatprep.subr.bf16.mxu0 0
        %1556 = vmatpush2.bf16.msra.mxu0 0
        %1557 = vmatprep.subr.bf16.mxu0 0
        %1558 = vmatpush2.bf16.msra.mxu0 0
        %1559 = vmatprep.subr.bf16.mxu0 0
        %1560 = vmatpush2.bf16.msra.mxu0 0
        %1561 = vmatprep.mubr.bf16.mxu0 0
        %1562 = vmatmul.mubr.bf16.gmra.mxu0 %v1401
        %v1563 = vpop.f32.mrf.mxu0
        %v1564 = vadd.f32 %v1515, %v1563
        %v1565 = vpop.f32.mrf.mxu0
        %v1566 = vpop.f32.mrf.mxu0
        %v1567 = vpop.f32.mrf.mxu0
        %1568 = vdwg.mxu0
        %v1569 = vpack.c.bf16 %v1438, %v1438
        %v1570 = vpack.c.bf16 %v1501, %v1501
        %vm1571 = vcmask 64512
        %v1573 = vsel %vm1571, %v1569, 0
        %v1576 = vsel %vm1571, %v1570, 0
        %1578 = vmatprep.subr.bf16.mxu0 0
        %1579 = vmatpush1.bf16.xpose.msra.mxu0 0
        %1580 = vmatprep.subr.bf16.mxu0 0
        %1581 = vmatpush1.bf16.xpose.msra.mxu0 0
        %1582 = vmatprep.subr.bf16.mxu0 0
        %1583 = vmatpush1.bf16.xpose.msra.mxu0 0
        %1584 = vmatprep.subr.bf16.mxu0 0
        %1585 = vmatpush1.bf16.xpose.msra.mxu0 0
        %1586 = vmatprep.subr.bf16.mxu0 0
        %1587 = vmatpush1.bf16.xpose.msra.mxu0 0
        %1588 = vmatprep.subr.bf16.mxu0 0
        %1589 = vmatpush1.bf16.xpose.msra.mxu0 0
        %1590 = vmatprep.subr.bf16.mxu0 0
        %1591 = vmatpush1.bf16.xpose.msra.mxu0 0
        %1592 = vmatprep.subr.bf16.mxu0 0
        %1593 = vmatpush1.bf16.xpose.msra.mxu0 %v1576
        %1594 = vmatprep.subr.bf16.mxu0 0
        %1595 = vmatpush2.bf16.xpose.msra.mxu0 0
        %1596 = vmatprep.subr.bf16.mxu0 0
        %1597 = vmatpush2.bf16.xpose.msra.mxu0 0
        %1598 = vmatprep.subr.bf16.mxu0 0
        %1599 = vmatpush2.bf16.xpose.msra.mxu0 0
        %1600 = vmatprep.subr.bf16.mxu0 0
        %1601 = vmatpush2.bf16.xpose.msra.mxu0 0
        %1602 = vmatprep.subr.bf16.mxu0 0
        %1603 = vmatpush2.bf16.xpose.msra.mxu0 0
        %1604 = vmatprep.subr.bf16.mxu0 0
        %1605 = vmatpush2.bf16.xpose.msra.mxu0 0
        %1606 = vmatprep.subr.bf16.mxu0 0
        %1607 = vmatpush2.bf16.xpose.msra.mxu0 0
        %1608 = vmatprep.subr.bf16.mxu0 0
        %1609 = vmatpush2.bf16.xpose.msra.mxu0 0
        %1610 = vmatprep.mubr.bf16.mxu0 0
        %1611 = vmatmul.mubr.bf16.gmra.mxu0 %v1573
        %v1612 = vpop.f32.mrf.mxu0
        %v1613 = vadd.f32 0.0, %v1612
        %v1614 = vpop.f32.mrf.mxu0
        %v1615 = vpop.f32.mrf.mxu0
        %v1616 = vpop.f32.mrf.mxu0
        %1617 = vdwg.mxu0
        %vm1618 = vcmask 36864
        %v1619 = vsel %vm1618, %v1613, -inf
        %1620 = vmax.xlane.f32.xlu0 %v1619
        %v1621 = vpop.xlane.xlu0 %1620
        %v1622 = vsub.f32 %v1613, %v1621
        %v1623 = vmul.f32 %v1622, 1.442695
        %v1624 = vpow.pop %v1623
        %v1625 = vsel %vm1618, %v1624, 0.0
        %1626 = vadd.xlane.f32.xlu0 %v1625
        %v1627 = vpop.xlane.xlu0 %1626
        %v1628 = vrcp.pop %v1627
        %v1629 = vmul.f32 %v1624, %v1628
        %v1630 = vpack.c.bf16 %v1629, %v1629
        %v1631 = vpack.c.bf16 %v1564, %v1564
        %vm1632 = vcmask 39936
        %v1634 = vsel %vm1632, %v1630, 0
        %vm1636 = vcmask 1041408
        %vm1637 = vcmask 1042432
        %v1638 = vsel %vm1636, 4294967295, 65535
        %v1639 = vsel %vm1637, %v1638, 0
        %v1641 = vand.u32 %v1631, %v1639
        %1643 = vmatprep.subr.bf16.mxu0 0
        %1644 = vmatpush1.bf16.msra.mxu0 0
        %1645 = vmatprep.subr.bf16.mxu0 0
        %1646 = vmatpush1.bf16.msra.mxu0 0
        %1647 = vmatprep.subr.bf16.mxu0 0
        %1648 = vmatpush1.bf16.msra.mxu0 0
        %1649 = vmatprep.subr.bf16.mxu0 0
        %1650 = vmatpush1.bf16.msra.mxu0 0
        %1651 = vmatprep.subr.bf16.mxu0 0
        %1652 = vmatpush1.bf16.msra.mxu0 0
        %1653 = vmatprep.subr.bf16.mxu0 0
        %1654 = vmatpush1.bf16.msra.mxu0 0
        %1655 = vmatprep.subr.bf16.mxu0 0
        %1656 = vmatpush1.bf16.msra.mxu0 0
        %1657 = vmatprep.subr.bf16.mxu0 0
        %1658 = vmatpush1.bf16.msra.mxu0 %v1641
        %1659 = vmatprep.subr.bf16.mxu0 0
        %1660 = vmatpush2.bf16.msra.mxu0 0
        %1661 = vmatprep.subr.bf16.mxu0 0
        %1662 = vmatpush2.bf16.msra.mxu0 0
        %1663 = vmatprep.subr.bf16.mxu0 0
        %1664 = vmatpush2.bf16.msra.mxu0 0
        %1665 = vmatprep.subr.bf16.mxu0 0
        %1666 = vmatpush2.bf16.msra.mxu0 0
        %1667 = vmatprep.subr.bf16.mxu0 0
        %1668 = vmatpush2.bf16.msra.mxu0 0
        %1669 = vmatprep.subr.bf16.mxu0 0
        %1670 = vmatpush2.bf16.msra.mxu0 0
        %1671 = vmatprep.subr.bf16.mxu0 0
        %1672 = vmatpush2.bf16.msra.mxu0 0
        %1673 = vmatprep.subr.bf16.mxu0 0
        %1674 = vmatpush2.bf16.msra.mxu0 0
        %1675 = vmatprep.mubr.bf16.mxu0 0
        %1676 = vmatmul.mubr.bf16.gmra.mxu0 %v1634
        %v1677 = vpop.f32.mrf.mxu0
        %v1678 = vadd.f32 0.0, %v1677
        %v1679 = vpop.f32.mrf.mxu0
        %v1680 = vpop.f32.mrf.mxu0
        %v1681 = vpop.f32.mrf.mxu0
        %1682 = vdwg.mxu0
        %v1683 = vpack.c.bf16 %v1678, %v1678
        %v1684 = vld [vmem:[%s27] sm:$0xf]
        %s1685 = scalar_lea.vmem %s15, 16
        %v1686 = vld [vmem:[%s1685] sm:$0xf]
        %v1687 = vld [vmem:[%s1685 + $0x4] sm:$0xf]
        %v1688 = vld [vmem:[%s1685 + $0x8] sm:$0xf]
        %v1689 = vld [vmem:[%s1685 + $0xc] sm:$0xf]
        %s1690 = scalar_lea.vmem %s17, 1
        %v1691 = vld [vmem:[%s1690] sm:$0x1]
        %v1693 = vlaneseq
        %v1694 = vshrl.u32 %v1693, 7
        %v1695 = vsub.s32 0, %v1694
        %v1696 = vrot.slane %v1691, %v1695
        %v1702 = vunpack.c.l.b16 %v1686
        %v1703 = vunpack.c.l.b16 %v1687
        %v1704 = vunpack.c.l.b16 %v1688
        %v1705 = vunpack.c.l.b16 %v1689
        %v1706 = vpack.c.b16 %v1703, %v1702
        %v1707 = vpack.c.b16 %v1705, %v1704
        %1710 = vmatprep.subr.bf16.mxu0 0
        %1711 = vmatpush1.bf16.msra.mxu0 0
        %1712 = vmatprep.subr.bf16.mxu0 0
        %1713 = vmatpush1.bf16.msra.mxu0 0
        %1714 = vmatprep.subr.bf16.mxu0 0
        %1715 = vmatpush1.bf16.msra.mxu0 0
        %1716 = vmatprep.subr.bf16.mxu0 0
        %1717 = vmatpush1.bf16.msra.mxu0 0
        %1718 = vmatprep.subr.bf16.mxu0 0
        %1719 = vmatpush1.bf16.msra.mxu0 0
        %1720 = vmatprep.subr.bf16.mxu0 0
        %1721 = vmatpush1.bf16.msra.mxu0 0
        %1722 = vmatprep.subr.bf16.mxu0 0
        %1723 = vmatpush1.bf16.msra.mxu0 %v1707
        %1724 = vmatprep.subr.bf16.mxu0 0
        %1725 = vmatpush1.bf16.msra.mxu0 %v1706
        %1726 = vmatprep.subr.bf16.mxu0 0
        %1727 = vmatpush2.bf16.msra.mxu0 0
        %1728 = vmatprep.subr.bf16.mxu0 0
        %1729 = vmatpush2.bf16.msra.mxu0 0
        %1730 = vmatprep.subr.bf16.mxu0 0
        %1731 = vmatpush2.bf16.msra.mxu0 0
        %1732 = vmatprep.subr.bf16.mxu0 0
        %1733 = vmatpush2.bf16.msra.mxu0 0
        %1734 = vmatprep.subr.bf16.mxu0 0
        %1735 = vmatpush2.bf16.msra.mxu0 0
        %1736 = vmatprep.subr.bf16.mxu0 0
        %1737 = vmatpush2.bf16.msra.mxu0 0
        %1738 = vmatprep.subr.bf16.mxu0 0
        %1739 = vmatpush2.bf16.msra.mxu0 0
        %1740 = vmatprep.subr.bf16.mxu0 0
        %1741 = vmatpush2.bf16.msra.mxu0 0
        %1742 = vmatprep.mubr.bf16.mxu0 0
        %1743 = vmatmul.mubr.bf16.gmra.mxu0 %v1401
        %v1744 = vpop.f32.mrf.mxu0
        %v1745 = vadd.f32 %v1696, %v1744
        %v1746 = vpop.f32.mrf.mxu0
        %v1747 = vpop.f32.mrf.mxu0
        %v1748 = vpop.f32.mrf.mxu0
        %1749 = vdwg.mxu0
        %s1750 = scalar_lea.vmem %s19, 16
        %v1751 = vld [vmem:[%s1750] sm:$0xf]
        %v1752 = vld [vmem:[%s1750 + $0x4] sm:$0xf]
        %v1753 = vld [vmem:[%s1750 + $0x8] sm:$0xf]
        %v1754 = vld [vmem:[%s1750 + $0xc] sm:$0xf]
        %s1755 = scalar_lea.vmem %s21, 1
        %v1756 = vld [vmem:[%s1755] sm:$0x1]
        %v1758 = vlaneseq
        %v1759 = vshrl.u32 %v1758, 7
        %v1760 = vsub.s32 0, %v1759
        %v1761 = vrot.slane %v1756, %v1760
        %v1767 = vunpack.c.l.b16 %v1751
        %v1768 = vunpack.c.l.b16 %v1752
        %v1769 = vunpack.c.l.b16 %v1753
        %v1770 = vunpack.c.l.b16 %v1754
        %v1771 = vpack.c.b16 %v1768, %v1767
        %v1772 = vpack.c.b16 %v1770, %v1769
        %1775 = vmatprep.subr.bf16.mxu0 0
        %1776 = vmatpush1.bf16.msra.mxu0 0
        %1777 = vmatprep.subr.bf16.mxu0 0
        %1778 = vmatpush1.bf16.msra.mxu0 0
        %1779 = vmatprep.subr.bf16.mxu0 0
        %1780 = vmatpush1.bf16.msra.mxu0 0
        %1781 = vmatprep.subr.bf16.mxu0 0
        %1782 = vmatpush1.bf16.msra.mxu0 0
        %1783 = vmatprep.subr.bf16.mxu0 0
        %1784 = vmatpush1.bf16.msra.mxu0 0
        %1785 = vmatprep.subr.bf16.mxu0 0
        %1786 = vmatpush1.bf16.msra.mxu0 0
        %1787 = vmatprep.subr.bf16.mxu0 0
        %1788 = vmatpush1.bf16.msra.mxu0 %v1772
        %1789 = vmatprep.subr.bf16.mxu0 0
        %1790 = vmatpush1.bf16.msra.mxu0 %v1771
        %1791 = vmatprep.subr.bf16.mxu0 0
        %1792 = vmatpush2.bf16.msra.mxu0 0
        %1793 = vmatprep.subr.bf16.mxu0 0
        %1794 = vmatpush2.bf16.msra.mxu0 0
        %1795 = vmatprep.subr.bf16.mxu0 0
        %1796 = vmatpush2.bf16.msra.mxu0 0
        %1797 = vmatprep.subr.bf16.mxu0 0
        %1798 = vmatpush2.bf16.msra.mxu0 0
        %1799 = vmatprep.subr.bf16.mxu0 0
        %1800 = vmatpush2.bf16.msra.mxu0 0
        %1801 = vmatprep.subr.bf16.mxu0 0
        %1802 = vmatpush2.bf16.msra.mxu0 0
        %1803 = vmatprep.subr.bf16.mxu0 0
        %1804 = vmatpush2.bf16.msra.mxu0 0
        %1805 = vmatprep.subr.bf16.mxu0 0
        %1806 = vmatpush2.bf16.msra.mxu0 0
        %1807 = vmatprep.mubr.bf16.mxu0 0
        %1808 = vmatmul.mubr.bf16.gmra.mxu0 %v1401
        %v1809 = vpop.f32.mrf.mxu0
        %v1810 = vadd.f32 %v1761, %v1809
        %v1811 = vpop.f32.mrf.mxu0
        %v1812 = vpop.f32.mrf.mxu0
        %v1813 = vpop.f32.mrf.mxu0
        %1814 = vdwg.mxu0
        %s1815 = scalar_lea.vmem %s23, 16
        %v1816 = vld [vmem:[%s1815] sm:$0xf]
        %v1817 = vld [vmem:[%s1815 + $0x4] sm:$0xf]
        %v1818 = vld [vmem:[%s1815 + $0x8] sm:$0xf]
        %v1819 = vld [vmem:[%s1815 + $0xc] sm:$0xf]
        %s1820 = scalar_lea.vmem %s25, 1
        %v1821 = vld [vmem:[%s1820] sm:$0x1]
        %v1823 = vlaneseq
        %v1824 = vshrl.u32 %v1823, 7
        %v1825 = vsub.s32 0, %v1824
        %v1826 = vrot.slane %v1821, %v1825
        %v1832 = vunpack.c.l.b16 %v1816
        %v1833 = vunpack.c.l.b16 %v1817
        %v1834 = vunpack.c.l.b16 %v1818
        %v1835 = vunpack.c.l.b16 %v1819
        %v1836 = vpack.c.b16 %v1833, %v1832
        %v1837 = vpack.c.b16 %v1835, %v1834
        %1840 = vmatprep.subr.bf16.mxu0 0
        %1841 = vmatpush1.bf16.msra.mxu0 0
        %1842 = vmatprep.subr.bf16.mxu0 0
        %1843 = vmatpush1.bf16.msra.mxu0 0
        %1844 = vmatprep.subr.bf16.mxu0 0
        %1845 = vmatpush1.bf16.msra.mxu0 0
        %1846 = vmatprep.subr.bf16.mxu0 0
        %1847 = vmatpush1.bf16.msra.mxu0 0
        %1848 = vmatprep.subr.bf16.mxu0 0
        %1849 = vmatpush1.bf16.msra.mxu0 0
        %1850 = vmatprep.subr.bf16.mxu0 0
        %1851 = vmatpush1.bf16.msra.mxu0 0
        %1852 = vmatprep.subr.bf16.mxu0 0
        %1853 = vmatpush1.bf16.msra.mxu0 %v1837
        %1854 = vmatprep.subr.bf16.mxu0 0
        %1855 = vmatpush1.bf16.msra.mxu0 %v1836
        %1856 = vmatprep.subr.bf16.mxu0 0
        %1857 = vmatpush2.bf16.msra.mxu0 0
        %1858 = vmatprep.subr.bf16.mxu0 0
        %1859 = vmatpush2.bf16.msra.mxu0 0
        %1860 = vmatprep.subr.bf16.mxu0 0
        %1861 = vmatpush2.bf16.msra.mxu0 0
        %1862 = vmatprep.subr.bf16.mxu0 0
        %1863 = vmatpush2.bf16.msra.mxu0 0
        %1864 = vmatprep.subr.bf16.mxu0 0
        %1865 = vmatpush2.bf16.msra.mxu0 0
        %1866 = vmatprep.subr.bf16.mxu0 0
        %1867 = vmatpush2.bf16.msra.mxu0 0
        %1868 = vmatprep.subr.bf16.mxu0 0
        %1869 = vmatpush2.bf16.msra.mxu0 0
        %1870 = vmatprep.subr.bf16.mxu0 0
        %1871 = vmatpush2.bf16.msra.mxu0 0
        %1872 = vmatprep.mubr.bf16.mxu0 0
        %1873 = vmatmul.mubr.bf16.gmra.mxu0 %v1401
        %v1874 = vpop.f32.mrf.mxu0
        %v1875 = vadd.f32 %v1826, %v1874
        %v1876 = vpop.f32.mrf.mxu0
        %v1877 = vpop.f32.mrf.mxu0
        %v1878 = vpop.f32.mrf.mxu0
        %1879 = vdwg.mxu0
        %v1880 = vpack.c.bf16 %v1745, %v1745
        %v1881 = vpack.c.bf16 %v1810, %v1810
        %v1883 = vsel %vm1571, %v1880, 0
        %v1886 = vsel %vm1571, %v1881, 0
        %1888 = vmatprep.subr.bf16.mxu0 0
        %1889 = vmatpush1.bf16.xpose.msra.mxu0 0
        %1890 = vmatprep.subr.bf16.mxu0 0
        %1891 = vmatpush1.bf16.xpose.msra.mxu0 0
        %1892 = vmatprep.subr.bf16.mxu0 0
        %1893 = vmatpush1.bf16.xpose.msra.mxu0 0
        %1894 = vmatprep.subr.bf16.mxu0 0
        %1895 = vmatpush1.bf16.xpose.msra.mxu0 0
        %1896 = vmatprep.subr.bf16.mxu0 0
        %1897 = vmatpush1.bf16.xpose.msra.mxu0 0
        %1898 = vmatprep.subr.bf16.mxu0 0
        %1899 = vmatpush1.bf16.xpose.msra.mxu0 0
        %1900 = vmatprep.subr.bf16.mxu0 0
        %1901 = vmatpush1.bf16.xpose.msra.mxu0 0
        %1902 = vmatprep.subr.bf16.mxu0 0
        %1903 = vmatpush1.bf16.xpose.msra.mxu0 %v1886
        %1904 = vmatprep.subr.bf16.mxu0 0
        %1905 = vmatpush2.bf16.xpose.msra.mxu0 0
        %1906 = vmatprep.subr.bf16.mxu0 0
        %1907 = vmatpush2.bf16.xpose.msra.mxu0 0
        %1908 = vmatprep.subr.bf16.mxu0 0
        %1909 = vmatpush2.bf16.xpose.msra.mxu0 0
        %1910 = vmatprep.subr.bf16.mxu0 0
        %1911 = vmatpush2.bf16.xpose.msra.mxu0 0
        %1912 = vmatprep.subr.bf16.mxu0 0
        %1913 = vmatpush2.bf16.xpose.msra.mxu0 0
        %1914 = vmatprep.subr.bf16.mxu0 0
        %1915 = vmatpush2.bf16.xpose.msra.mxu0 0
        %1916 = vmatprep.subr.bf16.mxu0 0
        %1917 = vmatpush2.bf16.xpose.msra.mxu0 0
        %1918 = vmatprep.subr.bf16.mxu0 0
        %1919 = vmatpush2.bf16.xpose.msra.mxu0 0
        %1920 = vmatprep.mubr.bf16.mxu0 0
        %1921 = vmatmul.mubr.bf16.gmra.mxu0 %v1883
        %v1922 = vpop.f32.mrf.mxu0
        %v1923 = vadd.f32 0.0, %v1922
        %v1924 = vpop.f32.mrf.mxu0
        %v1925 = vpop.f32.mrf.mxu0
        %v1926 = vpop.f32.mrf.mxu0
        %1927 = vdwg.mxu0
        %v1928 = vsel %vm1618, %v1923, -inf
        %1929 = vmax.xlane.f32.xlu0 %v1928
        %v1930 = vpop.xlane.xlu0 %1929
        %v1931 = vsub.f32 %v1923, %v1930
        %v1932 = vmul.f32 %v1931, 1.442695
        %v1933 = vpow.pop %v1932
        %v1934 = vsel %vm1618, %v1933, 0.0
        %1935 = vadd.xlane.f32.xlu0 %v1934
        %v1936 = vpop.xlane.xlu0 %1935
        %v1937 = vrcp.pop %v1936
        %v1938 = vmul.f32 %v1933, %v1937
        %v1939 = vpack.c.bf16 %v1938, %v1938
        %v1940 = vpack.c.bf16 %v1875, %v1875
        %v1942 = vsel %vm1632, %v1939, 0
        %v1945 = vand.u32 %v1940, %v1639
        %1947 = vmatprep.subr.bf16.mxu0 0
        %1948 = vmatpush1.bf16.msra.mxu0 0
        %1949 = vmatprep.subr.bf16.mxu0 0
        %1950 = vmatpush1.bf16.msra.mxu0 0
        %1951 = vmatprep.subr.bf16.mxu0 0
        %1952 = vmatpush1.bf16.msra.mxu0 0
        %1953 = vmatprep.subr.bf16.mxu0 0
        %1954 = vmatpush1.bf16.msra.mxu0 0
        %1955 = vmatprep.subr.bf16.mxu0 0
        %1956 = vmatpush1.bf16.msra.mxu0 0
        %1957 = vmatprep.subr.bf16.mxu0 0
        %1958 = vmatpush1.bf16.msra.mxu0 0
        %1959 = vmatprep.subr.bf16.mxu0 0
        %1960 = vmatpush1.bf16.msra.mxu0 0
        %1961 = vmatprep.subr.bf16.mxu0 0
        %1962 = vmatpush1.bf16.msra.mxu0 %v1945
        %1963 = vmatprep.subr.bf16.mxu0 0
        %1964 = vmatpush2.bf16.msra.mxu0 0
        %1965 = vmatprep.subr.bf16.mxu0 0
        %1966 = vmatpush2.bf16.msra.mxu0 0
        %1967 = vmatprep.subr.bf16.mxu0 0
        %1968 = vmatpush2.bf16.msra.mxu0 0
        %1969 = vmatprep.subr.bf16.mxu0 0
        %1970 = vmatpush2.bf16.msra.mxu0 0
        %1971 = vmatprep.subr.bf16.mxu0 0
        %1972 = vmatpush2.bf16.msra.mxu0 0
        %1973 = vmatprep.subr.bf16.mxu0 0
        %1974 = vmatpush2.bf16.msra.mxu0 0
        %1975 = vmatprep.subr.bf16.mxu0 0
        %1976 = vmatpush2.bf16.msra.mxu0 0
        %1977 = vmatprep.subr.bf16.mxu0 0
        %1978 = vmatpush2.bf16.msra.mxu0 0
        %1979 = vmatprep.mubr.bf16.mxu0 0
        %1980 = vmatmul.mubr.bf16.gmra.mxu0 %v1942
        %v1981 = vpop.f32.mrf.mxu0
        %v1982 = vadd.f32 0.0, %v1981
        %v1983 = vpop.f32.mrf.mxu0
        %v1984 = vpop.f32.mrf.mxu0
        %v1985 = vpop.f32.mrf.mxu0
        %1986 = vdwg.mxu0
        %v1987 = vpack.c.bf16 %v1982, %v1982
        %s1988 = scalar_lea.vmem %s27, 4
        %v1989 = vld [vmem:[%s1988] sm:$0xf]
        %v1991 = vsel %vm1571, %v1987, 0
        %vm1993 = vcmask 1043456
        %v1995 = vsel %vm1993, %v1989, 0
        %1997 = vmatprep.subr.bf16.mxu0 0
        %1998 = vmatpush1.bf16.msra.mxu0 0
        %1999 = vmatprep.subr.bf16.mxu0 0
        %2000 = vmatpush1.bf16.msra.mxu0 0
        %2001 = vmatprep.subr.bf16.mxu0 0
        %2002 = vmatpush1.bf16.msra.mxu0 0
        %2003 = vmatprep.subr.bf16.mxu0 0
        %2004 = vmatpush1.bf16.msra.mxu0 0
        %2005 = vmatprep.subr.bf16.mxu0 0
        %2006 = vmatpush1.bf16.msra.mxu0 0
        %2007 = vmatprep.subr.bf16.mxu0 0
        %2008 = vmatpush1.bf16.msra.mxu0 0
        %2009 = vmatprep.subr.bf16.mxu0 0
        %2010 = vmatpush1.bf16.msra.mxu0 0
        %2011 = vmatprep.subr.bf16.mxu0 0
        %2012 = vmatpush1.bf16.msra.mxu0 %v1995
        %2013 = vmatprep.subr.bf16.mxu0 0
        %2014 = vmatpush2.bf16.msra.mxu0 0
        %2015 = vmatprep.subr.bf16.mxu0 0
        %2016 = vmatpush2.bf16.msra.mxu0 0
        %2017 = vmatprep.subr.bf16.mxu0 0
        %2018 = vmatpush2.bf16.msra.mxu0 0
        %2019 = vmatprep.subr.bf16.mxu0 0
        %2020 = vmatpush2.bf16.msra.mxu0 0
        %2021 = vmatprep.subr.bf16.mxu0 0
        %2022 = vmatpush2.bf16.msra.mxu0 0
        %2023 = vmatprep.subr.bf16.mxu0 0
        %2024 = vmatpush2.bf16.msra.mxu0 0
        %2025 = vmatprep.subr.bf16.mxu0 0
        %2026 = vmatpush2.bf16.msra.mxu0 0
        %2027 = vmatprep.subr.bf16.mxu0 0
        %2028 = vmatpush2.bf16.msra.mxu0 0
        %2029 = vmatprep.mubr.bf16.mxu0 0
        %2030 = vmatmul.mubr.bf16.gmra.mxu0 %v1991
        %v2031 = vpop.f32.mrf.mxu0
        %v2032 = vadd.f32 0.0, %v2031
        %v2033 = vpop.f32.mrf.mxu0
        %v2034 = vpop.f32.mrf.mxu0
        %v2035 = vpop.f32.mrf.mxu0
        %2036 = vdwg.mxu0
        %v2038 = vsel %vm1571, %v1683, 0
        %v2041 = vsel %vm1993, %v1684, 0
        %2043 = vmatprep.subr.bf16.mxu0 0
        %2044 = vmatpush1.bf16.msra.mxu0 0
        %2045 = vmatprep.subr.bf16.mxu0 0
        %2046 = vmatpush1.bf16.msra.mxu0 0
        %2047 = vmatprep.subr.bf16.mxu0 0
        %2048 = vmatpush1.bf16.msra.mxu0 0
        %2049 = vmatprep.subr.bf16.mxu0 0
        %2050 = vmatpush1.bf16.msra.mxu0 0
        %2051 = vmatprep.subr.bf16.mxu0 0
        %2052 = vmatpush1.bf16.msra.mxu0 0
        %2053 = vmatprep.subr.bf16.mxu0 0
        %2054 = vmatpush1.bf16.msra.mxu0 0
        %2055 = vmatprep.subr.bf16.mxu0 0
        %2056 = vmatpush1.bf16.msra.mxu0 0
        %2057 = vmatprep.subr.bf16.mxu0 0
        %2058 = vmatpush1.bf16.msra.mxu0 %v2041
        %2059 = vmatprep.subr.bf16.mxu0 0
        %2060 = vmatpush2.bf16.msra.mxu0 0
        %2061 = vmatprep.subr.bf16.mxu0 0
        %2062 = vmatpush2.bf16.msra.mxu0 0
        %2063 = vmatprep.subr.bf16.mxu0 0
        %2064 = vmatpush2.bf16.msra.mxu0 0
        %2065 = vmatprep.subr.bf16.mxu0 0
        %2066 = vmatpush2.bf16.msra.mxu0 0
        %2067 = vmatprep.subr.bf16.mxu0 0
        %2068 = vmatpush2.bf16.msra.mxu0 0
        %2069 = vmatprep.subr.bf16.mxu0 0
        %2070 = vmatpush2.bf16.msra.mxu0 0
        %2071 = vmatprep.subr.bf16.mxu0 0
        %2072 = vmatpush2.bf16.msra.mxu0 0
        %2073 = vmatprep.subr.bf16.mxu0 0
        %2074 = vmatpush2.bf16.msra.mxu0 0
        %2075 = vmatprep.mubr.bf16.mxu0 0
        %2076 = vmatmul.mubr.bf16.gmra.mxu0 %v2038
        %v2077 = vpop.f32.mrf.mxu0
        %v2078 = vadd.f32 %v2032, %v2077
        %v2079 = vpop.f32.mrf.mxu0
        %v2080 = vpop.f32.mrf.mxu0
        %v2081 = vpop.f32.mrf.mxu0
        %2082 = vdwg.mxu0
        %s2083 = scalar_lea.vmem %s15, 32
        %v2084 = vld [vmem:[%s2083] sm:$0xf]
        %v2085 = vld [vmem:[%s2083 + $0x4] sm:$0xf]
        %v2086 = vld [vmem:[%s2083 + $0x8] sm:$0xf]
        %v2087 = vld [vmem:[%s2083 + $0xc] sm:$0xf]
        %s2088 = scalar_lea.vmem %s17, 2
        %v2089 = vld [vmem:[%s2088] sm:$0x1]
        %v2091 = vlaneseq
        %v2092 = vshrl.u32 %v2091, 7
        %v2093 = vsub.s32 0, %v2092
        %v2094 = vrot.slane %v2089, %v2093
        %v2100 = vunpack.c.l.b16 %v2084
        %v2101 = vunpack.c.l.b16 %v2085
        %v2102 = vunpack.c.l.b16 %v2086
        %v2103 = vunpack.c.l.b16 %v2087
        %v2104 = vpack.c.b16 %v2101, %v2100
        %v2105 = vpack.c.b16 %v2103, %v2102
        %2108 = vmatprep.subr.bf16.mxu0 0
        %2109 = vmatpush1.bf16.msra.mxu0 0
        %2110 = vmatprep.subr.bf16.mxu0 0
        %2111 = vmatpush1.bf16.msra.mxu0 0
        %2112 = vmatprep.subr.bf16.mxu0 0
        %2113 = vmatpush1.bf16.msra.mxu0 0
        %2114 = vmatprep.subr.bf16.mxu0 0
        %2115 = vmatpush1.bf16.msra.mxu0 0
        %2116 = vmatprep.subr.bf16.mxu0 0
        %2117 = vmatpush1.bf16.msra.mxu0 0
        %2118 = vmatprep.subr.bf16.mxu0 0
        %2119 = vmatpush1.bf16.msra.mxu0 0
        %2120 = vmatprep.subr.bf16.mxu0 0
        %2121 = vmatpush1.bf16.msra.mxu0 %v2105
        %2122 = vmatprep.subr.bf16.mxu0 0
        %2123 = vmatpush1.bf16.msra.mxu0 %v2104
        %2124 = vmatprep.subr.bf16.mxu0 0
        %2125 = vmatpush2.bf16.msra.mxu0 0
        %2126 = vmatprep.subr.bf16.mxu0 0
        %2127 = vmatpush2.bf16.msra.mxu0 0
        %2128 = vmatprep.subr.bf16.mxu0 0
        %2129 = vmatpush2.bf16.msra.mxu0 0
        %2130 = vmatprep.subr.bf16.mxu0 0
        %2131 = vmatpush2.bf16.msra.mxu0 0
        %2132 = vmatprep.subr.bf16.mxu0 0
        %2133 = vmatpush2.bf16.msra.mxu0 0
        %2134 = vmatprep.subr.bf16.mxu0 0
        %2135 = vmatpush2.bf16.msra.mxu0 0
        %2136 = vmatprep.subr.bf16.mxu0 0
        %2137 = vmatpush2.bf16.msra.mxu0 0
        %2138 = vmatprep.subr.bf16.mxu0 0
        %2139 = vmatpush2.bf16.msra.mxu0 0
        %2140 = vmatprep.mubr.bf16.mxu0 0
        %2141 = vmatmul.mubr.bf16.gmra.mxu0 %v1401
        %v2142 = vpop.f32.mrf.mxu0
        %v2143 = vadd.f32 %v2094, %v2142
        %v2144 = vpop.f32.mrf.mxu0
        %v2145 = vpop.f32.mrf.mxu0
        %v2146 = vpop.f32.mrf.mxu0
        %2147 = vdwg.mxu0
        %s2148 = scalar_lea.vmem %s19, 32
        %v2149 = vld [vmem:[%s2148] sm:$0xf]
        %v2150 = vld [vmem:[%s2148 + $0x4] sm:$0xf]
        %v2151 = vld [vmem:[%s2148 + $0x8] sm:$0xf]
        %v2152 = vld [vmem:[%s2148 + $0xc] sm:$0xf]
        %s2153 = scalar_lea.vmem %s21, 2
        %v2154 = vld [vmem:[%s2153] sm:$0x1]
        %v2156 = vlaneseq
        %v2157 = vshrl.u32 %v2156, 7
        %v2158 = vsub.s32 0, %v2157
        %v2159 = vrot.slane %v2154, %v2158
        %v2165 = vunpack.c.l.b16 %v2149
        %v2166 = vunpack.c.l.b16 %v2150
        %v2167 = vunpack.c.l.b16 %v2151
        %v2168 = vunpack.c.l.b16 %v2152
        %v2169 = vpack.c.b16 %v2166, %v2165
        %v2170 = vpack.c.b16 %v2168, %v2167
        %2173 = vmatprep.subr.bf16.mxu0 0
        %2174 = vmatpush1.bf16.msra.mxu0 0
        %2175 = vmatprep.subr.bf16.mxu0 0
        %2176 = vmatpush1.bf16.msra.mxu0 0
        %2177 = vmatprep.subr.bf16.mxu0 0
        %2178 = vmatpush1.bf16.msra.mxu0 0
        %2179 = vmatprep.subr.bf16.mxu0 0
        %2180 = vmatpush1.bf16.msra.mxu0 0
        %2181 = vmatprep.subr.bf16.mxu0 0
        %2182 = vmatpush1.bf16.msra.mxu0 0
        %2183 = vmatprep.subr.bf16.mxu0 0
        %2184 = vmatpush1.bf16.msra.mxu0 0
        %2185 = vmatprep.subr.bf16.mxu0 0
        %2186 = vmatpush1.bf16.msra.mxu0 %v2170
        %2187 = vmatprep.subr.bf16.mxu0 0
        %2188 = vmatpush1.bf16.msra.mxu0 %v2169
        %2189 = vmatprep.subr.bf16.mxu0 0
        %2190 = vmatpush2.bf16.msra.mxu0 0
        %2191 = vmatprep.subr.bf16.mxu0 0
        %2192 = vmatpush2.bf16.msra.mxu0 0
        %2193 = vmatprep.subr.bf16.mxu0 0
        %2194 = vmatpush2.bf16.msra.mxu0 0
        %2195 = vmatprep.subr.bf16.mxu0 0
        %2196 = vmatpush2.bf16.msra.mxu0 0
        %2197 = vmatprep.subr.bf16.mxu0 0
        %2198 = vmatpush2.bf16.msra.mxu0 0
        %2199 = vmatprep.subr.bf16.mxu0 0
        %2200 = vmatpush2.bf16.msra.mxu0 0
        %2201 = vmatprep.subr.bf16.mxu0 0
        %2202 = vmatpush2.bf16.msra.mxu0 0
        %2203 = vmatprep.subr.bf16.mxu0 0
        %2204 = vmatpush2.bf16.msra.mxu0 0
        %2205 = vmatprep.mubr.bf16.mxu0 0
        %2206 = vmatmul.mubr.bf16.gmra.mxu0 %v1401
        %v2207 = vpop.f32.mrf.mxu0
        %v2208 = vadd.f32 %v2159, %v2207
        %v2209 = vpop.f32.mrf.mxu0
        %v2210 = vpop.f32.mrf.mxu0
        %v2211 = vpop.f32.mrf.mxu0
        %2212 = vdwg.mxu0
        %s2213 = scalar_lea.vmem %s23, 32
        %v2214 = vld [vmem:[%s2213] sm:$0xf]
        %v2215 = vld [vmem:[%s2213 + $0x4] sm:$0xf]
        %v2216 = vld [vmem:[%s2213 + $0x8] sm:$0xf]
        %v2217 = vld [vmem:[%s2213 + $0xc] sm:$0xf]
        %s2218 = scalar_lea.vmem %s25, 2
        %v2219 = vld [vmem:[%s2218] sm:$0x1]
        %v2221 = vlaneseq
        %v2222 = vshrl.u32 %v2221, 7
        %v2223 = vsub.s32 0, %v2222
        %v2224 = vrot.slane %v2219, %v2223
        %v2230 = vunpack.c.l.b16 %v2214
        %v2231 = vunpack.c.l.b16 %v2215
        %v2232 = vunpack.c.l.b16 %v2216
        %v2233 = vunpack.c.l.b16 %v2217
        %v2234 = vpack.c.b16 %v2231, %v2230
        %v2235 = vpack.c.b16 %v2233, %v2232
        %2238 = vmatprep.subr.bf16.mxu0 0
        %2239 = vmatpush1.bf16.msra.mxu0 0
        %2240 = vmatprep.subr.bf16.mxu0 0
        %2241 = vmatpush1.bf16.msra.mxu0 0
        %2242 = vmatprep.subr.bf16.mxu0 0
        %2243 = vmatpush1.bf16.msra.mxu0 0
        %2244 = vmatprep.subr.bf16.mxu0 0
        %2245 = vmatpush1.bf16.msra.mxu0 0
        %2246 = vmatprep.subr.bf16.mxu0 0
        %2247 = vmatpush1.bf16.msra.mxu0 0
        %2248 = vmatprep.subr.bf16.mxu0 0
        %2249 = vmatpush1.bf16.msra.mxu0 0
        %2250 = vmatprep.subr.bf16.mxu0 0
        %2251 = vmatpush1.bf16.msra.mxu0 %v2235
        %2252 = vmatprep.subr.bf16.mxu0 0
        %2253 = vmatpush1.bf16.msra.mxu0 %v2234
        %2254 = vmatprep.subr.bf16.mxu0 0
        %2255 = vmatpush2.bf16.msra.mxu0 0
        %2256 = vmatprep.subr.bf16.mxu0 0
        %2257 = vmatpush2.bf16.msra.mxu0 0
        %2258 = vmatprep.subr.bf16.mxu0 0
        %2259 = vmatpush2.bf16.msra.mxu0 0
        %2260 = vmatprep.subr.bf16.mxu0 0
        %2261 = vmatpush2.bf16.msra.mxu0 0
        %2262 = vmatprep.subr.bf16.mxu0 0
        %2263 = vmatpush2.bf16.msra.mxu0 0
        %2264 = vmatprep.subr.bf16.mxu0 0
        %2265 = vmatpush2.bf16.msra.mxu0 0
        %2266 = vmatprep.subr.bf16.mxu0 0
        %2267 = vmatpush2.bf16.msra.mxu0 0
        %2268 = vmatprep.subr.bf16.mxu0 0
        %2269 = vmatpush2.bf16.msra.mxu0 0
        %2270 = vmatprep.mubr.bf16.mxu0 0
        %2271 = vmatmul.mubr.bf16.gmra.mxu0 %v1401
        %v2272 = vpop.f32.mrf.mxu0
        %v2273 = vadd.f32 %v2224, %v2272
        %v2274 = vpop.f32.mrf.mxu0
        %v2275 = vpop.f32.mrf.mxu0
        %v2276 = vpop.f32.mrf.mxu0
        %2277 = vdwg.mxu0
        %v2278 = vpack.c.bf16 %v2143, %v2143
        %v2279 = vpack.c.bf16 %v2208, %v2208
        %v2281 = vsel %vm1571, %v2278, 0
        %v2284 = vsel %vm1571, %v2279, 0
        %2286 = vmatprep.subr.bf16.mxu0 0
        %2287 = vmatpush1.bf16.xpose.msra.mxu0 0
        %2288 = vmatprep.subr.bf16.mxu0 0
        %2289 = vmatpush1.bf16.xpose.msra.mxu0 0
        %2290 = vmatprep.subr.bf16.mxu0 0
        %2291 = vmatpush1.bf16.xpose.msra.mxu0 0
        %2292 = vmatprep.subr.bf16.mxu0 0
        %2293 = vmatpush1.bf16.xpose.msra.mxu0 0
        %2294 = vmatprep.subr.bf16.mxu0 0
        %2295 = vmatpush1.bf16.xpose.msra.mxu0 0
        %2296 = vmatprep.subr.bf16.mxu0 0
        %2297 = vmatpush1.bf16.xpose.msra.mxu0 0
        %2298 = vmatprep.subr.bf16.mxu0 0
        %2299 = vmatpush1.bf16.xpose.msra.mxu0 0
        %2300 = vmatprep.subr.bf16.mxu0 0
        %2301 = vmatpush1.bf16.xpose.msra.mxu0 %v2284
        %2302 = vmatprep.subr.bf16.mxu0 0
        %2303 = vmatpush2.bf16.xpose.msra.mxu0 0
        %2304 = vmatprep.subr.bf16.mxu0 0
        %2305 = vmatpush2.bf16.xpose.msra.mxu0 0
        %2306 = vmatprep.subr.bf16.mxu0 0
        %2307 = vmatpush2.bf16.xpose.msra.mxu0 0
        %2308 = vmatprep.subr.bf16.mxu0 0
        %2309 = vmatpush2.bf16.xpose.msra.mxu0 0
        %2310 = vmatprep.subr.bf16.mxu0 0
        %2311 = vmatpush2.bf16.xpose.msra.mxu0 0
        %2312 = vmatprep.subr.bf16.mxu0 0
        %2313 = vmatpush2.bf16.xpose.msra.mxu0 0
        %2314 = vmatprep.subr.bf16.mxu0 0
        %2315 = vmatpush2.bf16.xpose.msra.mxu0 0
        %2316 = vmatprep.subr.bf16.mxu0 0
        %2317 = vmatpush2.bf16.xpose.msra.mxu0 0
        %2318 = vmatprep.mubr.bf16.mxu0 0
        %2319 = vmatmul.mubr.bf16.gmra.mxu0 %v2281
        %v2320 = vpop.f32.mrf.mxu0
        %v2321 = vadd.f32 0.0, %v2320
        %v2322 = vpop.f32.mrf.mxu0
        %v2323 = vpop.f32.mrf.mxu0
        %v2324 = vpop.f32.mrf.mxu0
        %2325 = vdwg.mxu0
        %v2326 = vsel %vm1618, %v2321, -inf
        %2327 = vmax.xlane.f32.xlu0 %v2326
        %v2328 = vpop.xlane.xlu0 %2327
        %v2329 = vsub.f32 %v2321, %v2328
        %v2330 = vmul.f32 %v2329, 1.442695
        %v2331 = vpow.pop %v2330
        %v2332 = vsel %vm1618, %v2331, 0.0
        %2333 = vadd.xlane.f32.xlu0 %v2332
        %v2334 = vpop.xlane.xlu0 %2333
        %v2335 = vrcp.pop %v2334
        %v2336 = vmul.f32 %v2331, %v2335
        %v2337 = vpack.c.bf16 %v2336, %v2336
        %v2338 = vpack.c.bf16 %v2273, %v2273
        %v2340 = vsel %vm1632, %v2337, 0
        %v2343 = vand.u32 %v2338, %v1639
        %2345 = vmatprep.subr.bf16.mxu0 0
        %2346 = vmatpush1.bf16.msra.mxu0 0
        %2347 = vmatprep.subr.bf16.mxu0 0
        %2348 = vmatpush1.bf16.msra.mxu0 0
        %2349 = vmatprep.subr.bf16.mxu0 0
        %2350 = vmatpush1.bf16.msra.mxu0 0
        %2351 = vmatprep.subr.bf16.mxu0 0
        %2352 = vmatpush1.bf16.msra.mxu0 0
        %2353 = vmatprep.subr.bf16.mxu0 0
        %2354 = vmatpush1.bf16.msra.mxu0 0
        %2355 = vmatprep.subr.bf16.mxu0 0
        %2356 = vmatpush1.bf16.msra.mxu0 0
        %2357 = vmatprep.subr.bf16.mxu0 0
        %2358 = vmatpush1.bf16.msra.mxu0 0
        %2359 = vmatprep.subr.bf16.mxu0 0
        %2360 = vmatpush1.bf16.msra.mxu0 %v2343
        %2361 = vmatprep.subr.bf16.mxu0 0
        %2362 = vmatpush2.bf16.msra.mxu0 0
        %2363 = vmatprep.subr.bf16.mxu0 0
        %2364 = vmatpush2.bf16.msra.mxu0 0
        %2365 = vmatprep.subr.bf16.mxu0 0
        %2366 = vmatpush2.bf16.msra.mxu0 0
        %2367 = vmatprep.subr.bf16.mxu0 0
        %2368 = vmatpush2.bf16.msra.mxu0 0
        %2369 = vmatprep.subr.bf16.mxu0 0
        %2370 = vmatpush2.bf16.msra.mxu0 0
        %2371 = vmatprep.subr.bf16.mxu0 0
        %2372 = vmatpush2.bf16.msra.mxu0 0
        %2373 = vmatprep.subr.bf16.mxu0 0
        %2374 = vmatpush2.bf16.msra.mxu0 0
        %2375 = vmatprep.subr.bf16.mxu0 0
        %2376 = vmatpush2.bf16.msra.mxu0 0
        %2377 = vmatprep.mubr.bf16.mxu0 0
        %2378 = vmatmul.mubr.bf16.gmra.mxu0 %v2340
        %v2379 = vpop.f32.mrf.mxu0
        %v2380 = vadd.f32 0.0, %v2379
        %v2381 = vpop.f32.mrf.mxu0
        %v2382 = vpop.f32.mrf.mxu0
        %v2383 = vpop.f32.mrf.mxu0
        %2384 = vdwg.mxu0
        %v2385 = vpack.c.bf16 %v2380, %v2380
        %s2386 = scalar_lea.vmem %s27, 8
        %v2387 = vld [vmem:[%s2386] sm:$0xf]
        %v2389 = vsel %vm1571, %v2385, 0
        %v2392 = vsel %vm1993, %v2387, 0
        %2394 = vmatprep.subr.bf16.mxu0 0
        %2395 = vmatpush1.bf16.msra.mxu0 0
        %2396 = vmatprep.subr.bf16.mxu0 0
        %2397 = vmatpush1.bf16.msra.mxu0 0
        %2398 = vmatprep.subr.bf16.mxu0 0
        %2399 = vmatpush1.bf16.msra.mxu0 0
        %2400 = vmatprep.subr.bf16.mxu0 0
        %2401 = vmatpush1.bf16.msra.mxu0 0
        %2402 = vmatprep.subr.bf16.mxu0 0
        %2403 = vmatpush1.bf16.msra.mxu0 0
        %2404 = vmatprep.subr.bf16.mxu0 0
        %2405 = vmatpush1.bf16.msra.mxu0 0
        %2406 = vmatprep.subr.bf16.mxu0 0
        %2407 = vmatpush1.bf16.msra.mxu0 0
        %2408 = vmatprep.subr.bf16.mxu0 0
        %2409 = vmatpush1.bf16.msra.mxu0 %v2392
        %2410 = vmatprep.subr.bf16.mxu0 0
        %2411 = vmatpush2.bf16.msra.mxu0 0
        %2412 = vmatprep.subr.bf16.mxu0 0
        %2413 = vmatpush2.bf16.msra.mxu0 0
        %2414 = vmatprep.subr.bf16.mxu0 0
        %2415 = vmatpush2.bf16.msra.mxu0 0
        %2416 = vmatprep.subr.bf16.mxu0 0
        %2417 = vmatpush2.bf16.msra.mxu0 0
        %2418 = vmatprep.subr.bf16.mxu0 0
        %2419 = vmatpush2.bf16.msra.mxu0 0
        %2420 = vmatprep.subr.bf16.mxu0 0
        %2421 = vmatpush2.bf16.msra.mxu0 0
        %2422 = vmatprep.subr.bf16.mxu0 0
        %2423 = vmatpush2.bf16.msra.mxu0 0
        %2424 = vmatprep.subr.bf16.mxu0 0
        %2425 = vmatpush2.bf16.msra.mxu0 0
        %2426 = vmatprep.mubr.bf16.mxu0 0
        %2427 = vmatmul.mubr.bf16.gmra.mxu0 %v2389
        %v2428 = vpop.f32.mrf.mxu0
        %v2429 = vadd.f32 0.0, %v2428
        %v2430 = vpop.f32.mrf.mxu0
        %v2431 = vpop.f32.mrf.mxu0
        %v2432 = vpop.f32.mrf.mxu0
        %2433 = vdwg.mxu0
        %v2434 = vadd.f32 %v2078, %v2429
        %s2435 = scalar_lea.vmem %s15, 48
        %v2436 = vld [vmem:[%s2435] sm:$0xf]
        %v2437 = vld [vmem:[%s2435 + $0x4] sm:$0xf]
        %v2438 = vld [vmem:[%s2435 + $0x8] sm:$0xf]
        %v2439 = vld [vmem:[%s2435 + $0xc] sm:$0xf]
        %s2440 = scalar_lea.vmem %s17, 3
        %v2441 = vld [vmem:[%s2440] sm:$0x1]
        %v2443 = vlaneseq
        %v2444 = vshrl.u32 %v2443, 7
        %v2445 = vsub.s32 0, %v2444
        %v2446 = vrot.slane %v2441, %v2445
        %v2452 = vunpack.c.l.b16 %v2436
        %v2453 = vunpack.c.l.b16 %v2437
        %v2454 = vunpack.c.l.b16 %v2438
        %v2455 = vunpack.c.l.b16 %v2439
        %v2456 = vpack.c.b16 %v2453, %v2452
        %v2457 = vpack.c.b16 %v2455, %v2454
        %2460 = vmatprep.subr.bf16.mxu0 0
        %2461 = vmatpush1.bf16.msra.mxu0 0
        %2462 = vmatprep.subr.bf16.mxu0 0
        %2463 = vmatpush1.bf16.msra.mxu0 0
        %2464 = vmatprep.subr.bf16.mxu0 0
        %2465 = vmatpush1.bf16.msra.mxu0 0
        %2466 = vmatprep.subr.bf16.mxu0 0
        %2467 = vmatpush1.bf16.msra.mxu0 0
        %2468 = vmatprep.subr.bf16.mxu0 0
        %2469 = vmatpush1.bf16.msra.mxu0 0
        %2470 = vmatprep.subr.bf16.mxu0 0
        %2471 = vmatpush1.bf16.msra.mxu0 0
        %2472 = vmatprep.subr.bf16.mxu0 0
        %2473 = vmatpush1.bf16.msra.mxu0 %v2457
        %2474 = vmatprep.subr.bf16.mxu0 0
        %2475 = vmatpush1.bf16.msra.mxu0 %v2456
        %2476 = vmatprep.subr.bf16.mxu0 0
        %2477 = vmatpush2.bf16.msra.mxu0 0
        %2478 = vmatprep.subr.bf16.mxu0 0
        %2479 = vmatpush2.bf16.msra.mxu0 0
        %2480 = vmatprep.subr.bf16.mxu0 0
        %2481 = vmatpush2.bf16.msra.mxu0 0
        %2482 = vmatprep.subr.bf16.mxu0 0
        %2483 = vmatpush2.bf16.msra.mxu0 0
        %2484 = vmatprep.subr.bf16.mxu0 0
        %2485 = vmatpush2.bf16.msra.mxu0 0
        %2486 = vmatprep.subr.bf16.mxu0 0
        %2487 = vmatpush2.bf16.msra.mxu0 0
        %2488 = vmatprep.subr.bf16.mxu0 0
        %2489 = vmatpush2.bf16.msra.mxu0 0
        %2490 = vmatprep.subr.bf16.mxu0 0
        %2491 = vmatpush2.bf16.msra.mxu0 0
        %2492 = vmatprep.mubr.bf16.mxu0 0
        %2493 = vmatmul.mubr.bf16.gmra.mxu0 %v1401
        %v2494 = vpop.f32.mrf.mxu0
        %v2495 = vadd.f32 %v2446, %v2494
        %v2496 = vpop.f32.mrf.mxu0
        %v2497 = vpop.f32.mrf.mxu0
        %v2498 = vpop.f32.mrf.mxu0
        %2499 = vdwg.mxu0
        %s2500 = scalar_lea.vmem %s19, 48
        %v2501 = vld [vmem:[%s2500] sm:$0xf]
        %v2502 = vld [vmem:[%s2500 + $0x4] sm:$0xf]
        %v2503 = vld [vmem:[%s2500 + $0x8] sm:$0xf]
        %v2504 = vld [vmem:[%s2500 + $0xc] sm:$0xf]
        %s2505 = scalar_lea.vmem %s21, 3
        %v2506 = vld [vmem:[%s2505] sm:$0x1]
        %v2508 = vlaneseq
        %v2509 = vshrl.u32 %v2508, 7
        %v2510 = vsub.s32 0, %v2509
        %v2511 = vrot.slane %v2506, %v2510
        %v2517 = vunpack.c.l.b16 %v2501
        %v2518 = vunpack.c.l.b16 %v2502
        %v2519 = vunpack.c.l.b16 %v2503
        %v2520 = vunpack.c.l.b16 %v2504
        %v2521 = vpack.c.b16 %v2518, %v2517
        %v2522 = vpack.c.b16 %v2520, %v2519
        %2525 = vmatprep.subr.bf16.mxu0 0
        %2526 = vmatpush1.bf16.msra.mxu0 0
        %2527 = vmatprep.subr.bf16.mxu0 0
        %2528 = vmatpush1.bf16.msra.mxu0 0
        %2529 = vmatprep.subr.bf16.mxu0 0
        %2530 = vmatpush1.bf16.msra.mxu0 0
        %2531 = vmatprep.subr.bf16.mxu0 0
        %2532 = vmatpush1.bf16.msra.mxu0 0
        %2533 = vmatprep.subr.bf16.mxu0 0
        %2534 = vmatpush1.bf16.msra.mxu0 0
        %2535 = vmatprep.subr.bf16.mxu0 0
        %2536 = vmatpush1.bf16.msra.mxu0 0
        %2537 = vmatprep.subr.bf16.mxu0 0
        %2538 = vmatpush1.bf16.msra.mxu0 %v2522
        %2539 = vmatprep.subr.bf16.mxu0 0
        %2540 = vmatpush1.bf16.msra.mxu0 %v2521
        %2541 = vmatprep.subr.bf16.mxu0 0
        %2542 = vmatpush2.bf16.msra.mxu0 0
        %2543 = vmatprep.subr.bf16.mxu0 0
        %2544 = vmatpush2.bf16.msra.mxu0 0
        %2545 = vmatprep.subr.bf16.mxu0 0
        %2546 = vmatpush2.bf16.msra.mxu0 0
        %2547 = vmatprep.subr.bf16.mxu0 0
        %2548 = vmatpush2.bf16.msra.mxu0 0
        %2549 = vmatprep.subr.bf16.mxu0 0
        %2550 = vmatpush2.bf16.msra.mxu0 0
        %2551 = vmatprep.subr.bf16.mxu0 0
        %2552 = vmatpush2.bf16.msra.mxu0 0
        %2553 = vmatprep.subr.bf16.mxu0 0
        %2554 = vmatpush2.bf16.msra.mxu0 0
        %2555 = vmatprep.subr.bf16.mxu0 0
        %2556 = vmatpush2.bf16.msra.mxu0 0
        %2557 = vmatprep.mubr.bf16.mxu0 0
        %2558 = vmatmul.mubr.bf16.gmra.mxu0 %v1401
        %v2559 = vpop.f32.mrf.mxu0
        %v2560 = vadd.f32 %v2511, %v2559
        %v2561 = vpop.f32.mrf.mxu0
        %v2562 = vpop.f32.mrf.mxu0
        %v2563 = vpop.f32.mrf.mxu0
        %2564 = vdwg.mxu0
        %s2565 = scalar_lea.vmem %s23, 48
        %v2566 = vld [vmem:[%s2565] sm:$0xf]
        %v2567 = vld [vmem:[%s2565 + $0x4] sm:$0xf]
        %v2568 = vld [vmem:[%s2565 + $0x8] sm:$0xf]
        %v2569 = vld [vmem:[%s2565 + $0xc] sm:$0xf]
        %s2570 = scalar_lea.vmem %s25, 3
        %v2571 = vld [vmem:[%s2570] sm:$0x1]
        %v2573 = vlaneseq
        %v2574 = vshrl.u32 %v2573, 7
        %v2575 = vsub.s32 0, %v2574
        %v2576 = vrot.slane %v2571, %v2575
        %v2582 = vunpack.c.l.b16 %v2566
        %v2583 = vunpack.c.l.b16 %v2567
        %v2584 = vunpack.c.l.b16 %v2568
        %v2585 = vunpack.c.l.b16 %v2569
        %v2586 = vpack.c.b16 %v2583, %v2582
        %v2587 = vpack.c.b16 %v2585, %v2584
        %2590 = vmatprep.subr.bf16.mxu0 0
        %2591 = vmatpush1.bf16.msra.mxu0 0
        %2592 = vmatprep.subr.bf16.mxu0 0
        %2593 = vmatpush1.bf16.msra.mxu0 0
        %2594 = vmatprep.subr.bf16.mxu0 0
        %2595 = vmatpush1.bf16.msra.mxu0 0
        %2596 = vmatprep.subr.bf16.mxu0 0
        %2597 = vmatpush1.bf16.msra.mxu0 0
        %2598 = vmatprep.subr.bf16.mxu0 0
        %2599 = vmatpush1.bf16.msra.mxu0 0
        %2600 = vmatprep.subr.bf16.mxu0 0
        %2601 = vmatpush1.bf16.msra.mxu0 0
        %2602 = vmatprep.subr.bf16.mxu0 0
        %2603 = vmatpush1.bf16.msra.mxu0 %v2587
        %2604 = vmatprep.subr.bf16.mxu0 0
        %2605 = vmatpush1.bf16.msra.mxu0 %v2586
        %2606 = vmatprep.subr.bf16.mxu0 0
        %2607 = vmatpush2.bf16.msra.mxu0 0
        %2608 = vmatprep.subr.bf16.mxu0 0
        %2609 = vmatpush2.bf16.msra.mxu0 0
        %2610 = vmatprep.subr.bf16.mxu0 0
        %2611 = vmatpush2.bf16.msra.mxu0 0
        %2612 = vmatprep.subr.bf16.mxu0 0
        %2613 = vmatpush2.bf16.msra.mxu0 0
        %2614 = vmatprep.subr.bf16.mxu0 0
        %2615 = vmatpush2.bf16.msra.mxu0 0
        %2616 = vmatprep.subr.bf16.mxu0 0
        %2617 = vmatpush2.bf16.msra.mxu0 0
        %2618 = vmatprep.subr.bf16.mxu0 0
        %2619 = vmatpush2.bf16.msra.mxu0 0
        %2620 = vmatprep.subr.bf16.mxu0 0
        %2621 = vmatpush2.bf16.msra.mxu0 0
        %2622 = vmatprep.mubr.bf16.mxu0 0
        %2623 = vmatmul.mubr.bf16.gmra.mxu0 %v1401
        %v2624 = vpop.f32.mrf.mxu0
        %v2625 = vadd.f32 %v2576, %v2624
        %v2626 = vpop.f32.mrf.mxu0
        %v2627 = vpop.f32.mrf.mxu0
        %v2628 = vpop.f32.mrf.mxu0
        %2629 = vdwg.mxu0
        %v2630 = vpack.c.bf16 %v2495, %v2495
        %v2631 = vpack.c.bf16 %v2560, %v2560
        %v2633 = vsel %vm1571, %v2630, 0
        %v2636 = vsel %vm1571, %v2631, 0
        %2638 = vmatprep.subr.bf16.mxu0 0
        %2639 = vmatpush1.bf16.xpose.msra.mxu0 0
        %2640 = vmatprep.subr.bf16.mxu0 0
        %2641 = vmatpush1.bf16.xpose.msra.mxu0 0
        %2642 = vmatprep.subr.bf16.mxu0 0
        %2643 = vmatpush1.bf16.xpose.msra.mxu0 0
        %2644 = vmatprep.subr.bf16.mxu0 0
        %2645 = vmatpush1.bf16.xpose.msra.mxu0 0
        %2646 = vmatprep.subr.bf16.mxu0 0
        %2647 = vmatpush1.bf16.xpose.msra.mxu0 0
        %2648 = vmatprep.subr.bf16.mxu0 0
        %2649 = vmatpush1.bf16.xpose.msra.mxu0 0
        %2650 = vmatprep.subr.bf16.mxu0 0
        %2651 = vmatpush1.bf16.xpose.msra.mxu0 0
        %2652 = vmatprep.subr.bf16.mxu0 0
        %2653 = vmatpush1.bf16.xpose.msra.mxu0 %v2636
        %2654 = vmatprep.subr.bf16.mxu0 0
        %2655 = vmatpush2.bf16.xpose.msra.mxu0 0
        %2656 = vmatprep.subr.bf16.mxu0 0
        %2657 = vmatpush2.bf16.xpose.msra.mxu0 0
        %2658 = vmatprep.subr.bf16.mxu0 0
        %2659 = vmatpush2.bf16.xpose.msra.mxu0 0
        %2660 = vmatprep.subr.bf16.mxu0 0
        %2661 = vmatpush2.bf16.xpose.msra.mxu0 0
        %2662 = vmatprep.subr.bf16.mxu0 0
        %2663 = vmatpush2.bf16.xpose.msra.mxu0 0
        %2664 = vmatprep.subr.bf16.mxu0 0
        %2665 = vmatpush2.bf16.xpose.msra.mxu0 0
        %2666 = vmatprep.subr.bf16.mxu0 0
        %2667 = vmatpush2.bf16.xpose.msra.mxu0 0
        %2668 = vmatprep.subr.bf16.mxu0 0
        %2669 = vmatpush2.bf16.xpose.msra.mxu0 0
        %2670 = vmatprep.mubr.bf16.mxu0 0
        %2671 = vmatmul.mubr.bf16.gmra.mxu0 %v2633
        %v2672 = vpop.f32.mrf.mxu0
        %v2673 = vadd.f32 0.0, %v2672
        %v2674 = vpop.f32.mrf.mxu0
        %v2675 = vpop.f32.mrf.mxu0
        %v2676 = vpop.f32.mrf.mxu0
        %2677 = vdwg.mxu0
        %v2678 = vsel %vm1618, %v2673, -inf
        %2679 = vmax.xlane.f32.xlu0 %v2678
        %v2680 = vpop.xlane.xlu0 %2679
        %v2681 = vsub.f32 %v2673, %v2680
        %v2682 = vmul.f32 %v2681, 1.442695
        %v2683 = vpow.pop %v2682
        %v2684 = vsel %vm1618, %v2683, 0.0
        %2685 = vadd.xlane.f32.xlu0 %v2684
        %v2686 = vpop.xlane.xlu0 %2685
        %v2687 = vrcp.pop %v2686
        %v2688 = vmul.f32 %v2683, %v2687
        %v2689 = vpack.c.bf16 %v2688, %v2688
        %v2690 = vpack.c.bf16 %v2625, %v2625
        %v2692 = vsel %vm1632, %v2689, 0
        %v2695 = vand.u32 %v2690, %v1639
        %2697 = vmatprep.subr.bf16.mxu0 0
        %2698 = vmatpush1.bf16.msra.mxu0 0
        %2699 = vmatprep.subr.bf16.mxu0 0
        %2700 = vmatpush1.bf16.msra.mxu0 0
        %2701 = vmatprep.subr.bf16.mxu0 0
        %2702 = vmatpush1.bf16.msra.mxu0 0
        %2703 = vmatprep.subr.bf16.mxu0 0
        %2704 = vmatpush1.bf16.msra.mxu0 0
        %2705 = vmatprep.subr.bf16.mxu0 0
        %2706 = vmatpush1.bf16.msra.mxu0 0
        %2707 = vmatprep.subr.bf16.mxu0 0
        %2708 = vmatpush1.bf16.msra.mxu0 0
        %2709 = vmatprep.subr.bf16.mxu0 0
        %2710 = vmatpush1.bf16.msra.mxu0 0
        %2711 = vmatprep.subr.bf16.mxu0 0
        %2712 = vmatpush1.bf16.msra.mxu0 %v2695
        %2713 = vmatprep.subr.bf16.mxu0 0
        %2714 = vmatpush2.bf16.msra.mxu0 0
        %2715 = vmatprep.subr.bf16.mxu0 0
        %2716 = vmatpush2.bf16.msra.mxu0 0
        %2717 = vmatprep.subr.bf16.mxu0 0
        %2718 = vmatpush2.bf16.msra.mxu0 0
        %2719 = vmatprep.subr.bf16.mxu0 0
        %2720 = vmatpush2.bf16.msra.mxu0 0
        %2721 = vmatprep.subr.bf16.mxu0 0
        %2722 = vmatpush2.bf16.msra.mxu0 0
        %2723 = vmatprep.subr.bf16.mxu0 0
        %2724 = vmatpush2.bf16.msra.mxu0 0
        %2725 = vmatprep.subr.bf16.mxu0 0
        %2726 = vmatpush2.bf16.msra.mxu0 0
        %2727 = vmatprep.subr.bf16.mxu0 0
        %2728 = vmatpush2.bf16.msra.mxu0 0
        %2729 = vmatprep.mubr.bf16.mxu0 0
        %2730 = vmatmul.mubr.bf16.gmra.mxu0 %v2692
        %v2731 = vpop.f32.mrf.mxu0
        %v2732 = vadd.f32 0.0, %v2731
        %v2733 = vpop.f32.mrf.mxu0
        %v2734 = vpop.f32.mrf.mxu0
        %v2735 = vpop.f32.mrf.mxu0
        %2736 = vdwg.mxu0
        %v2737 = vpack.c.bf16 %v2732, %v2732
        %s2738 = scalar_lea.vmem %s27, 12
        %v2739 = vld [vmem:[%s2738] sm:$0xf]
        %v2741 = vsel %vm1571, %v2737, 0
        %v2744 = vsel %vm1993, %v2739, 0
        %2746 = vmatprep.subr.bf16.mxu0 0
        %2747 = vmatpush1.bf16.msra.mxu0 0
        %2748 = vmatprep.subr.bf16.mxu0 0
        %2749 = vmatpush1.bf16.msra.mxu0 0
        %2750 = vmatprep.subr.bf16.mxu0 0
        %2751 = vmatpush1.bf16.msra.mxu0 0
        %2752 = vmatprep.subr.bf16.mxu0 0
        %2753 = vmatpush1.bf16.msra.mxu0 0
        %2754 = vmatprep.subr.bf16.mxu0 0
        %2755 = vmatpush1.bf16.msra.mxu0 0
        %2756 = vmatprep.subr.bf16.mxu0 0
        %2757 = vmatpush1.bf16.msra.mxu0 0
        %2758 = vmatprep.subr.bf16.mxu0 0
        %2759 = vmatpush1.bf16.msra.mxu0 0
        %2760 = vmatprep.subr.bf16.mxu0 0
        %2761 = vmatpush1.bf16.msra.mxu0 %v2744
        %2762 = vmatprep.subr.bf16.mxu0 0
        %2763 = vmatpush2.bf16.msra.mxu0 0
        %2764 = vmatprep.subr.bf16.mxu0 0
        %2765 = vmatpush2.bf16.msra.mxu0 0
        %2766 = vmatprep.subr.bf16.mxu0 0
        %2767 = vmatpush2.bf16.msra.mxu0 0
        %2768 = vmatprep.subr.bf16.mxu0 0
        %2769 = vmatpush2.bf16.msra.mxu0 0
        %2770 = vmatprep.subr.bf16.mxu0 0
        %2771 = vmatpush2.bf16.msra.mxu0 0
        %2772 = vmatprep.subr.bf16.mxu0 0
        %2773 = vmatpush2.bf16.msra.mxu0 0
        %2774 = vmatprep.subr.bf16.mxu0 0
        %2775 = vmatpush2.bf16.msra.mxu0 0
        %2776 = vmatprep.subr.bf16.mxu0 0
        %2777 = vmatpush2.bf16.msra.mxu0 0
        %2778 = vmatprep.mubr.bf16.mxu0 0
        %2779 = vmatmul.mubr.bf16.gmra.mxu0 %v2741
        %v2780 = vpop.f32.mrf.mxu0
        %v2781 = vadd.f32 0.0, %v2780
        %v2782 = vpop.f32.mrf.mxu0
        %v2783 = vpop.f32.mrf.mxu0
        %v2784 = vpop.f32.mrf.mxu0
        %2785 = vdwg.mxu0
        %v2786 = vadd.f32 %v2434, %v2781
        %v2787 = vadd.f32 %v1343, %v2786
        %v2788 = vld [vmem:[%s29] sm:$0x1]
        %v2790 = vlaneseq
        %v2791 = vshrl.u32 %v2790, 7
        %v2792 = vsub.s32 0, %v2791
        %v2793 = vrot.slane %v2788, %v2792
        %v2795 = vadd.f32 %v2787, %v2793
        %v2796 = vld [vmem:[%s31] sm:$0x1]
        %v2797 = vld [vmem:[%s33] sm:$0x1]
        %v2798 = vsel %vm1346, %v2795, 0.0
        %2799 = vadd.xlane.f32.xlu0 %v2798
        %v2800 = vpop.xlane.xlu0 %2799
        %v2801 = vmul.f32 %v2800, %v1350
        %v2802 = vsub.f32 %v2795, %v2801
        %v2803 = vmul.f32 %v2802, %v2802
        %v2804 = vsel %vm1346, %v2803, 0.0
        %2805 = vadd.xlane.f32.xlu0 %v2804
        %v2806 = vpop.xlane.xlu0 %2805
        %v2807 = vmul.f32 %v2806, %v1350
        %v2808 = vadd.f32 %v2807, 1e-06
        %v2809 = vrsqrt.pop %v2808
        %v2810 = vmul.f32 %v2802, %v2809
        %v2812 = vlaneseq
        %v2813 = vshrl.u32 %v2812, 7
        %v2814 = vsub.s32 0, %v2813
        %v2815 = vrot.slane %v2796, %v2814
        %v2817 = vmul.f32 %v2810, %v2815
        %v2819 = vlaneseq
        %v2820 = vshrl.u32 %v2819, 7
        %v2821 = vsub.s32 0, %v2820
        %v2822 = vrot.slane %v2797, %v2821
        %v2824 = vadd.f32 %v2817, %v2822
        %v2825 = vpack.c.bf16 %v2824, %v2824
        %v2826 = vld [vmem:[%s35] sm:$0xf]
        %v2827 = vld [vmem:[%s35 + $0x4] sm:$0xf]
        %v2828 = vld [vmem:[%s35 + $0x8] sm:$0xf]
        %v2829 = vld [vmem:[%s35 + $0xc] sm:$0xf]
        %v2830 = vld [vmem:[%s37] sm:$0x1]
        %v2832 = vlaneseq
        %v2833 = vshrl.u32 %v2832, 7
        %v2834 = vsub.s32 0, %v2833
        %v2835 = vrot.slane %v2830, %v2834
        %v2841 = vunpack.c.l.b16 %v2826
        %v2842 = vunpack.c.l.b16 %v2827
        %v2843 = vunpack.c.l.b16 %v2828
        %v2844 = vunpack.c.l.b16 %v2829
        %v2845 = vpack.c.b16 %v2842, %v2841
        %v2846 = vpack.c.b16 %v2844, %v2843
        %v2850 = vsel %vm1399, %v2825, 0
        %2852 = vmatprep.subr.bf16.mxu0 0
        %2853 = vmatpush1.bf16.msra.mxu0 0
        %2854 = vmatprep.subr.bf16.mxu0 0
        %2855 = vmatpush1.bf16.msra.mxu0 0
        %2856 = vmatprep.subr.bf16.mxu0 0
        %2857 = vmatpush1.bf16.msra.mxu0 0
        %2858 = vmatprep.subr.bf16.mxu0 0
        %2859 = vmatpush1.bf16.msra.mxu0 0
        %2860 = vmatprep.subr.bf16.mxu0 0
        %2861 = vmatpush1.bf16.msra.mxu0 0
        %2862 = vmatprep.subr.bf16.mxu0 0
        %2863 = vmatpush1.bf16.msra.mxu0 0
        %2864 = vmatprep.subr.bf16.mxu0 0
        %2865 = vmatpush1.bf16.msra.mxu0 %v2846
        %2866 = vmatprep.subr.bf16.mxu0 0
        %2867 = vmatpush1.bf16.msra.mxu0 %v2845
        %2868 = vmatprep.subr.bf16.mxu0 0
        %2869 = vmatpush2.bf16.msra.mxu0 0
        %2870 = vmatprep.subr.bf16.mxu0 0
        %2871 = vmatpush2.bf16.msra.mxu0 0
        %2872 = vmatprep.subr.bf16.mxu0 0
        %2873 = vmatpush2.bf16.msra.mxu0 0
        %2874 = vmatprep.subr.bf16.mxu0 0
        %2875 = vmatpush2.bf16.msra.mxu0 0
        %2876 = vmatprep.subr.bf16.mxu0 0
        %2877 = vmatpush2.bf16.msra.mxu0 0
        %2878 = vmatprep.subr.bf16.mxu0 0
        %2879 = vmatpush2.bf16.msra.mxu0 0
        %2880 = vmatprep.subr.bf16.mxu0 0
        %2881 = vmatpush2.bf16.msra.mxu0 0
        %2882 = vmatprep.subr.bf16.mxu0 0
        %2883 = vmatpush2.bf16.msra.mxu0 0
        %2884 = vmatprep.mubr.bf16.mxu0 0
        %2885 = vmatmul.mubr.bf16.gmra.mxu0 %v2850
        %v2886 = vpop.f32.mrf.mxu0
        %v2887 = vadd.f32 %v2835, %v2886
        %v2888 = vpop.f32.mrf.mxu0
        %v2889 = vpop.f32.mrf.mxu0
        %v2890 = vpop.f32.mrf.mxu0
        %2891 = vdwg.mxu0
        %v2892 = vmul.f32 %v2887, 0.5
        %v2893 = vmul.f32 %v2887, 0.70710677
        %vm2894 = vcmp.ge.f32.partialorder %v2893, 0.0
        %v2895 = vsel %vm2894, 1.0, -1.0
        %v2896 = vand.u32 2147483647, %v2893
        %v2897 = vmul.f32 %v2896, 0.3275911
        %v2898 = vadd.f32 %v2897, 1.0
        %v2899 = vrcp.pop %v2898
        %v2900 = vmul.f32 1.0, %v2899
        %v2901 = vmul.f32 %v2900, 1.0614054
        %v2902 = vadd.f32 %v2901, -1.4531521
        %v2903 = vmul.f32 %v2902, %v2900
        %v2904 = vadd.f32 %v2903, 1.4214138
        %v2905 = vmul.f32 %v2904, %v2900
        %v2906 = vadd.f32 %v2905, -0.28449672
        %v2907 = vmul.f32 %v2906, %v2900
        %v2908 = vadd.f32 %v2907, 0.2548296
        %v2909 = vmul.f32 %v2908, %v2900
        %v2910 = vsub.f32 0.0, %v2896
        %v2911 = vmul.f32 %v2910, %v2896
        %v2912 = vmul.f32 %v2911, 1.442695
        %v2913 = vpow.pop %v2912
        %v2914 = vmul.f32 %v2909, %v2913
        %v2915 = vsub.f32 1.0, %v2914
        %v2916 = vmul.f32 %v2895, %v2915
        %v2917 = vadd.f32 %v2916, 1.0
        %v2918 = vmul.f32 %v2892, %v2917
        %v2919 = vpack.c.bf16 %v2918, %v2918
        %v2920 = vld [vmem:[%s39] sm:$0xf]
        %v2921 = vld [vmem:[%s39 + $0x4] sm:$0xf]
        %v2922 = vld [vmem:[%s39 + $0x8] sm:$0xf]
        %v2923 = vld [vmem:[%s39 + $0xc] sm:$0xf]
        %v2924 = vld [vmem:[%s39 + $0x10] sm:$0xf]
        %v2925 = vld [vmem:[%s39 + $0x14] sm:$0xf]
        %v2926 = vld [vmem:[%s39 + $0x18] sm:$0xf]
        %v2927 = vld [vmem:[%s39 + $0x1c] sm:$0xf]
        %v2928 = vld [vmem:[%s39 + $0x20] sm:$0xf]
        %v2929 = vld [vmem:[%s39 + $0x24] sm:$0xf]
        %v2930 = vld [vmem:[%s39 + $0x28] sm:$0xf]
        %v2931 = vld [vmem:[%s39 + $0x2c] sm:$0xf]
        %v2932 = vld [vmem:[%s39 + $0x30] sm:$0xf]
        %v2933 = vld [vmem:[%s39 + $0x34] sm:$0xf]
        %v2934 = vld [vmem:[%s39 + $0x38] sm:$0xf]
        %v2935 = vld [vmem:[%s39 + $0x3c] sm:$0xf]
        %v2936 = vld [vmem:[%s41] sm:$0x1]
        %v2938 = vlaneseq
        %v2939 = vshrl.u32 %v2938, 7
        %v2940 = vsub.s32 0, %v2939
        %v2941 = vrot.slane %v2936, %v2940
        %v2959 = vunpack.c.l.b16 %v2920
        %v2960 = vunpack.c.l.b16 %v2921
        %v2961 = vunpack.c.l.b16 %v2922
        %v2962 = vunpack.c.l.b16 %v2923
        %v2963 = vunpack.c.l.b16 %v2924
        %v2964 = vunpack.c.l.b16 %v2925
        %v2965 = vunpack.c.l.b16 %v2926
        %v2966 = vunpack.c.l.b16 %v2927
        %v2967 = vunpack.c.l.b16 %v2928
        %v2968 = vunpack.c.l.b16 %v2929
        %v2969 = vunpack.c.l.b16 %v2930
        %v2970 = vunpack.c.l.b16 %v2931
        %v2971 = vunpack.c.l.b16 %v2932
        %v2972 = vunpack.c.l.b16 %v2933
        %v2973 = vunpack.c.l.b16 %v2934
        %v2974 = vunpack.c.l.b16 %v2935
        %v2975 = vpack.c.b16 %v2960, %v2959
        %v2976 = vpack.c.b16 %v2962, %v2961
        %v2977 = vpack.c.b16 %v2964, %v2963
        %v2978 = vpack.c.b16 %v2966, %v2965
        %v2979 = vpack.c.b16 %v2968, %v2967
        %v2980 = vpack.c.b16 %v2970, %v2969
        %v2981 = vpack.c.b16 %v2972, %v2971
        %v2982 = vpack.c.b16 %v2974, %v2973
        %2991 = vmatprep.subr.bf16.mxu0 0
        %2992 = vmatpush1.bf16.msra.mxu0 %v2982
        %2993 = vmatprep.subr.bf16.mxu0 0
        %2994 = vmatpush1.bf16.msra.mxu0 %v2981
        %2995 = vmatprep.subr.bf16.mxu0 0
        %2996 = vmatpush1.bf16.msra.mxu0 %v2980
        %2997 = vmatprep.subr.bf16.mxu0 0
        %2998 = vmatpush1.bf16.msra.mxu0 %v2979
        %2999 = vmatprep.subr.bf16.mxu0 0
        %3000 = vmatpush1.bf16.msra.mxu0 %v2978
        %3001 = vmatprep.subr.bf16.mxu0 0
        %3002 = vmatpush1.bf16.msra.mxu0 %v2977
        %3003 = vmatprep.subr.bf16.mxu0 0
        %3004 = vmatpush1.bf16.msra.mxu0 %v2976
        %3005 = vmatprep.subr.bf16.mxu0 0
        %3006 = vmatpush1.bf16.msra.mxu0 %v2975
        %3007 = vmatprep.subr.bf16.mxu0 0
        %3008 = vmatpush2.bf16.msra.mxu0 0
        %3009 = vmatprep.subr.bf16.mxu0 0
        %3010 = vmatpush2.bf16.msra.mxu0 0
        %3011 = vmatprep.subr.bf16.mxu0 0
        %3012 = vmatpush2.bf16.msra.mxu0 0
        %3013 = vmatprep.subr.bf16.mxu0 0
        %3014 = vmatpush2.bf16.msra.mxu0 0
        %3015 = vmatprep.subr.bf16.mxu0 0
        %3016 = vmatpush2.bf16.msra.mxu0 0
        %3017 = vmatprep.subr.bf16.mxu0 0
        %3018 = vmatpush2.bf16.msra.mxu0 0
        %3019 = vmatprep.subr.bf16.mxu0 0
        %3020 = vmatpush2.bf16.msra.mxu0 0
        %3021 = vmatprep.subr.bf16.mxu0 0
        %3022 = vmatpush2.bf16.msra.mxu0 0
        %3023 = vmatprep.mubr.bf16.mxu0 0
        %3024 = vmatmul.mubr.bf16.gmra.mxu0 %v2919
        %v3025 = vpop.f32.mrf.mxu0
        %v3026 = vadd.f32 %v2941, %v3025
        %v3027 = vpop.f32.mrf.mxu0
        %v3028 = vpop.f32.mrf.mxu0
        %v3029 = vpop.f32.mrf.mxu0
        %3030 = vdwg.mxu0
        %v3031 = vadd.f32 %v2795, %v3026
        %v3032 = vld [vmem:[%s43] sm:$0x1]
        %v3033 = vld [vmem:[%s45] sm:$0x1]
        %v3034 = vsel %vm1346, %v3031, 0.0
        %3035 = vadd.xlane.f32.xlu0 %v3034
        %v3036 = vpop.xlane.xlu0 %3035
        %v3037 = vmul.f32 %v3036, %v1350
        %v3038 = vsub.f32 %v3031, %v3037
        %v3039 = vmul.f32 %v3038, %v3038
        %v3040 = vsel %vm1346, %v3039, 0.0
        %3041 = vadd.xlane.f32.xlu0 %v3040
        %v3042 = vpop.xlane.xlu0 %3041
        %v3043 = vmul.f32 %v3042, %v1350
        %v3044 = vadd.f32 %v3043, 1e-06
        %v3045 = vrsqrt.pop %v3044
        %v3046 = vmul.f32 %v3038, %v3045
        %v3048 = vlaneseq
        %v3049 = vshrl.u32 %v3048, 7
        %v3050 = vsub.s32 0, %v3049
        %v3051 = vrot.slane %v3032, %v3050
        %v3053 = vmul.f32 %v3046, %v3051
        %v3055 = vlaneseq
        %v3056 = vshrl.u32 %v3055, 7
        %v3057 = vsub.s32 0, %v3056
        %v3058 = vrot.slane %v3033, %v3057
        %v3060 = vadd.f32 %v3053, %v3058
        %v3061 = vpack.c.bf16 %v3060, %v3060
        %v3062 = vld [vmem:[%s47] sm:$0xf]
        %v3063 = vld [vmem:[%s47 + $0x4] sm:$0xf]
        %v3064 = vld [vmem:[%s47 + $0x8] sm:$0xf]
        %v3065 = vld [vmem:[%s47 + $0xc] sm:$0xf]
        %v3066 = vld [vmem:[%s49] sm:$0x1]
        %v3068 = vlaneseq
        %v3069 = vshrl.u32 %v3068, 7
        %v3070 = vsub.s32 0, %v3069
        %v3071 = vrot.slane %v3066, %v3070
        %v3077 = vunpack.c.l.b16 %v3062
        %v3078 = vunpack.c.l.b16 %v3063
        %v3079 = vunpack.c.l.b16 %v3064
        %v3080 = vunpack.c.l.b16 %v3065
        %v3081 = vpack.c.b16 %v3078, %v3077
        %v3082 = vpack.c.b16 %v3080, %v3079
        %v3086 = vsel %vm1399, %v3061, 0
        %3088 = vmatprep.subr.bf16.mxu0 0
        %3089 = vmatpush1.bf16.msra.mxu0 0
        %3090 = vmatprep.subr.bf16.mxu0 0
        %3091 = vmatpush1.bf16.msra.mxu0 0
        %3092 = vmatprep.subr.bf16.mxu0 0
        %3093 = vmatpush1.bf16.msra.mxu0 0
        %3094 = vmatprep.subr.bf16.mxu0 0
        %3095 = vmatpush1.bf16.msra.mxu0 0
        %3096 = vmatprep.subr.bf16.mxu0 0
        %3097 = vmatpush1.bf16.msra.mxu0 0
        %3098 = vmatprep.subr.bf16.mxu0 0
        %3099 = vmatpush1.bf16.msra.mxu0 0
        %3100 = vmatprep.subr.bf16.mxu0 0
        %3101 = vmatpush1.bf16.msra.mxu0 %v3082
        %3102 = vmatprep.subr.bf16.mxu0 0
        %3103 = vmatpush1.bf16.msra.mxu0 %v3081
        %3104 = vmatprep.subr.bf16.mxu0 0
        %3105 = vmatpush2.bf16.msra.mxu0 0
        %3106 = vmatprep.subr.bf16.mxu0 0
        %3107 = vmatpush2.bf16.msra.mxu0 0
        %3108 = vmatprep.subr.bf16.mxu0 0
        %3109 = vmatpush2.bf16.msra.mxu0 0
        %3110 = vmatprep.subr.bf16.mxu0 0
        %3111 = vmatpush2.bf16.msra.mxu0 0
        %3112 = vmatprep.subr.bf16.mxu0 0
        %3113 = vmatpush2.bf16.msra.mxu0 0
        %3114 = vmatprep.subr.bf16.mxu0 0
        %3115 = vmatpush2.bf16.msra.mxu0 0
        %3116 = vmatprep.subr.bf16.mxu0 0
        %3117 = vmatpush2.bf16.msra.mxu0 0
        %3118 = vmatprep.subr.bf16.mxu0 0
        %3119 = vmatpush2.bf16.msra.mxu0 0
        %3120 = vmatprep.mubr.bf16.mxu0 0
        %3121 = vmatmul.mubr.bf16.gmra.mxu0 %v3086
        %v3122 = vpop.f32.mrf.mxu0
        %v3123 = vadd.f32 %v3071, %v3122
        %v3124 = vpop.f32.mrf.mxu0
        %v3125 = vpop.f32.mrf.mxu0
        %v3126 = vpop.f32.mrf.mxu0
        %3127 = vdwg.mxu0
        %v3128 = vld [vmem:[%s51] sm:$0xf]
        %v3129 = vld [vmem:[%s51 + $0x4] sm:$0xf]
        %v3130 = vld [vmem:[%s51 + $0x8] sm:$0xf]
        %v3131 = vld [vmem:[%s51 + $0xc] sm:$0xf]
        %v3132 = vld [vmem:[%s53] sm:$0x1]
        %v3134 = vlaneseq
        %v3135 = vshrl.u32 %v3134, 7
        %v3136 = vsub.s32 0, %v3135
        %v3137 = vrot.slane %v3132, %v3136
        %v3143 = vunpack.c.l.b16 %v3128
        %v3144 = vunpack.c.l.b16 %v3129
        %v3145 = vunpack.c.l.b16 %v3130
        %v3146 = vunpack.c.l.b16 %v3131
        %v3147 = vpack.c.b16 %v3144, %v3143
        %v3148 = vpack.c.b16 %v3146, %v3145
        %3151 = vmatprep.subr.bf16.mxu0 0
        %3152 = vmatpush1.bf16.msra.mxu0 0
        %3153 = vmatprep.subr.bf16.mxu0 0
        %3154 = vmatpush1.bf16.msra.mxu0 0
        %3155 = vmatprep.subr.bf16.mxu0 0
        %3156 = vmatpush1.bf16.msra.mxu0 0
        %3157 = vmatprep.subr.bf16.mxu0 0
        %3158 = vmatpush1.bf16.msra.mxu0 0
        %3159 = vmatprep.subr.bf16.mxu0 0
        %3160 = vmatpush1.bf16.msra.mxu0 0
        %3161 = vmatprep.subr.bf16.mxu0 0
        %3162 = vmatpush1.bf16.msra.mxu0 0
        %3163 = vmatprep.subr.bf16.mxu0 0
        %3164 = vmatpush1.bf16.msra.mxu0 %v3148
        %3165 = vmatprep.subr.bf16.mxu0 0
        %3166 = vmatpush1.bf16.msra.mxu0 %v3147
        %3167 = vmatprep.subr.bf16.mxu0 0
        %3168 = vmatpush2.bf16.msra.mxu0 0
        %3169 = vmatprep.subr.bf16.mxu0 0
        %3170 = vmatpush2.bf16.msra.mxu0 0
        %3171 = vmatprep.subr.bf16.mxu0 0
        %3172 = vmatpush2.bf16.msra.mxu0 0
        %3173 = vmatprep.subr.bf16.mxu0 0
        %3174 = vmatpush2.bf16.msra.mxu0 0
        %3175 = vmatprep.subr.bf16.mxu0 0
        %3176 = vmatpush2.bf16.msra.mxu0 0
        %3177 = vmatprep.subr.bf16.mxu0 0
        %3178 = vmatpush2.bf16.msra.mxu0 0
        %3179 = vmatprep.subr.bf16.mxu0 0
        %3180 = vmatpush2.bf16.msra.mxu0 0
        %3181 = vmatprep.subr.bf16.mxu0 0
        %3182 = vmatpush2.bf16.msra.mxu0 0
        %3183 = vmatprep.mubr.bf16.mxu0 0
        %3184 = vmatmul.mubr.bf16.gmra.mxu0 %v3086
        %v3185 = vpop.f32.mrf.mxu0
        %v3186 = vadd.f32 %v3137, %v3185
        %v3187 = vpop.f32.mrf.mxu0
        %v3188 = vpop.f32.mrf.mxu0
        %v3189 = vpop.f32.mrf.mxu0
        %3190 = vdwg.mxu0
        %v3191 = vld [vmem:[%s55] sm:$0xf]
        %v3192 = vld [vmem:[%s55 + $0x4] sm:$0xf]
        %v3193 = vld [vmem:[%s55 + $0x8] sm:$0xf]
        %v3194 = vld [vmem:[%s55 + $0xc] sm:$0xf]
        %v3195 = vld [vmem:[%s57] sm:$0x1]
        %v3197 = vlaneseq
        %v3198 = vshrl.u32 %v3197, 7
        %v3199 = vsub.s32 0, %v3198
        %v3200 = vrot.slane %v3195, %v3199
        %v3206 = vunpack.c.l.b16 %v3191
        %v3207 = vunpack.c.l.b16 %v3192
        %v3208 = vunpack.c.l.b16 %v3193
        %v3209 = vunpack.c.l.b16 %v3194
        %v3210 = vpack.c.b16 %v3207, %v3206
        %v3211 = vpack.c.b16 %v3209, %v3208
        %3214 = vmatprep.subr.bf16.mxu0 0
        %3215 = vmatpush1.bf16.msra.mxu0 0
        %3216 = vmatprep.subr.bf16.mxu0 0
        %3217 = vmatpush1.bf16.msra.mxu0 0
        %3218 = vmatprep.subr.bf16.mxu0 0
        %3219 = vmatpush1.bf16.msra.mxu0 0
        %3220 = vmatprep.subr.bf16.mxu0 0
        %3221 = vmatpush1.bf16.msra.mxu0 0
        %3222 = vmatprep.subr.bf16.mxu0 0
        %3223 = vmatpush1.bf16.msra.mxu0 0
        %3224 = vmatprep.subr.bf16.mxu0 0
        %3225 = vmatpush1.bf16.msra.mxu0 0
        %3226 = vmatprep.subr.bf16.mxu0 0
        %3227 = vmatpush1.bf16.msra.mxu0 %v3211
        %3228 = vmatprep.subr.bf16.mxu0 0
        %3229 = vmatpush1.bf16.msra.mxu0 %v3210
        %3230 = vmatprep.subr.bf16.mxu0 0
        %3231 = vmatpush2.bf16.msra.mxu0 0
        %3232 = vmatprep.subr.bf16.mxu0 0
        %3233 = vmatpush2.bf16.msra.mxu0 0
        %3234 = vmatprep.subr.bf16.mxu0 0
        %3235 = vmatpush2.bf16.msra.mxu0 0
        %3236 = vmatprep.subr.bf16.mxu0 0
        %3237 = vmatpush2.bf16.msra.mxu0 0
        %3238 = vmatprep.subr.bf16.mxu0 0
        %3239 = vmatpush2.bf16.msra.mxu0 0
        %3240 = vmatprep.subr.bf16.mxu0 0
        %3241 = vmatpush2.bf16.msra.mxu0 0
        %3242 = vmatprep.subr.bf16.mxu0 0
        %3243 = vmatpush2.bf16.msra.mxu0 0
        %3244 = vmatprep.subr.bf16.mxu0 0
        %3245 = vmatpush2.bf16.msra.mxu0 0
        %3246 = vmatprep.mubr.bf16.mxu0 0
        %3247 = vmatmul.mubr.bf16.gmra.mxu0 %v3086
        %v3248 = vpop.f32.mrf.mxu0
        %v3249 = vadd.f32 %v3200, %v3248
        %v3250 = vpop.f32.mrf.mxu0
        %v3251 = vpop.f32.mrf.mxu0
        %v3252 = vpop.f32.mrf.mxu0
        %3253 = vdwg.mxu0
        %v3254 = vpack.c.bf16 %v3123, %v3123
        %v3255 = vpack.c.bf16 %v3186, %v3186
        %v3257 = vsel %vm1571, %v3254, 0
        %v3260 = vsel %vm1571, %v3255, 0
        %3262 = vmatprep.subr.bf16.mxu0 0
        %3263 = vmatpush1.bf16.xpose.msra.mxu0 0
        %3264 = vmatprep.subr.bf16.mxu0 0
        %3265 = vmatpush1.bf16.xpose.msra.mxu0 0
        %3266 = vmatprep.subr.bf16.mxu0 0
        %3267 = vmatpush1.bf16.xpose.msra.mxu0 0
        %3268 = vmatprep.subr.bf16.mxu0 0
        %3269 = vmatpush1.bf16.xpose.msra.mxu0 0
        %3270 = vmatprep.subr.bf16.mxu0 0
        %3271 = vmatpush1.bf16.xpose.msra.mxu0 0
        %3272 = vmatprep.subr.bf16.mxu0 0
        %3273 = vmatpush1.bf16.xpose.msra.mxu0 0
        %3274 = vmatprep.subr.bf16.mxu0 0
        %3275 = vmatpush1.bf16.xpose.msra.mxu0 0
        %3276 = vmatprep.subr.bf16.mxu0 0
        %3277 = vmatpush1.bf16.xpose.msra.mxu0 %v3260
        %3278 = vmatprep.subr.bf16.mxu0 0
        %3279 = vmatpush2.bf16.xpose.msra.mxu0 0
        %3280 = vmatprep.subr.bf16.mxu0 0
        %3281 = vmatpush2.bf16.xpose.msra.mxu0 0
        %3282 = vmatprep.subr.bf16.mxu0 0
        %3283 = vmatpush2.bf16.xpose.msra.mxu0 0
        %3284 = vmatprep.subr.bf16.mxu0 0
        %3285 = vmatpush2.bf16.xpose.msra.mxu0 0
        %3286 = vmatprep.subr.bf16.mxu0 0
        %3287 = vmatpush2.bf16.xpose.msra.mxu0 0
        %3288 = vmatprep.subr.bf16.mxu0 0
        %3289 = vmatpush2.bf16.xpose.msra.mxu0 0
        %3290 = vmatprep.subr.bf16.mxu0 0
        %3291 = vmatpush2.bf16.xpose.msra.mxu0 0
        %3292 = vmatprep.subr.bf16.mxu0 0
        %3293 = vmatpush2.bf16.xpose.msra.mxu0 0
        %3294 = vmatprep.mubr.bf16.mxu0 0
        %3295 = vmatmul.mubr.bf16.gmra.mxu0 %v3257
        %v3296 = vpop.f32.mrf.mxu0
        %v3297 = vadd.f32 0.0, %v3296
        %v3298 = vpop.f32.mrf.mxu0
        %v3299 = vpop.f32.mrf.mxu0
        %v3300 = vpop.f32.mrf.mxu0
        %3301 = vdwg.mxu0
        %v3302 = vsel %vm1618, %v3297, -inf
        %3303 = vmax.xlane.f32.xlu0 %v3302
        %v3304 = vpop.xlane.xlu0 %3303
        %v3305 = vsub.f32 %v3297, %v3304
        %v3306 = vmul.f32 %v3305, 1.442695
        %v3307 = vpow.pop %v3306
        %v3308 = vsel %vm1618, %v3307, 0.0
        %3309 = vadd.xlane.f32.xlu0 %v3308
        %v3310 = vpop.xlane.xlu0 %3309
        %v3311 = vrcp.pop %v3310
        %v3312 = vmul.f32 %v3307, %v3311
        %v3313 = vpack.c.bf16 %v3312, %v3312
        %v3314 = vpack.c.bf16 %v3249, %v3249
        %v3316 = vsel %vm1632, %v3313, 0
        %v3319 = vand.u32 %v3314, %v1639
        %3321 = vmatprep.subr.bf16.mxu0 0
        %3322 = vmatpush1.bf16.msra.mxu0 0
        %3323 = vmatprep.subr.bf16.mxu0 0
        %3324 = vmatpush1.bf16.msra.mxu0 0
        %3325 = vmatprep.subr.bf16.mxu0 0
        %3326 = vmatpush1.bf16.msra.mxu0 0
        %3327 = vmatprep.subr.bf16.mxu0 0
        %3328 = vmatpush1.bf16.msra.mxu0 0
        %3329 = vmatprep.subr.bf16.mxu0 0
        %3330 = vmatpush1.bf16.msra.mxu0 0
        %3331 = vmatprep.subr.bf16.mxu0 0
        %3332 = vmatpush1.bf16.msra.mxu0 0
        %3333 = vmatprep.subr.bf16.mxu0 0
        %3334 = vmatpush1.bf16.msra.mxu0 0
        %3335 = vmatprep.subr.bf16.mxu0 0
        %3336 = vmatpush1.bf16.msra.mxu0 %v3319
        %3337 = vmatprep.subr.bf16.mxu0 0
        %3338 = vmatpush2.bf16.msra.mxu0 0
        %3339 = vmatprep.subr.bf16.mxu0 0
        %3340 = vmatpush2.bf16.msra.mxu0 0
        %3341 = vmatprep.subr.bf16.mxu0 0
        %3342 = vmatpush2.bf16.msra.mxu0 0
        %3343 = vmatprep.subr.bf16.mxu0 0
        %3344 = vmatpush2.bf16.msra.mxu0 0
        %3345 = vmatprep.subr.bf16.mxu0 0
        %3346 = vmatpush2.bf16.msra.mxu0 0
        %3347 = vmatprep.subr.bf16.mxu0 0
        %3348 = vmatpush2.bf16.msra.mxu0 0
        %3349 = vmatprep.subr.bf16.mxu0 0
        %3350 = vmatpush2.bf16.msra.mxu0 0
        %3351 = vmatprep.subr.bf16.mxu0 0
        %3352 = vmatpush2.bf16.msra.mxu0 0
        %3353 = vmatprep.mubr.bf16.mxu0 0
        %3354 = vmatmul.mubr.bf16.gmra.mxu0 %v3316
        %v3355 = vpop.f32.mrf.mxu0
        %v3356 = vadd.f32 0.0, %v3355
        %v3357 = vpop.f32.mrf.mxu0
        %v3358 = vpop.f32.mrf.mxu0
        %v3359 = vpop.f32.mrf.mxu0
        %3360 = vdwg.mxu0
        %v3361 = vpack.c.bf16 %v3356, %v3356
        %v3362 = vld [vmem:[%s59] sm:$0xf]
        %s3363 = scalar_lea.vmem %s47, 16
        %v3364 = vld [vmem:[%s3363] sm:$0xf]
        %v3365 = vld [vmem:[%s3363 + $0x4] sm:$0xf]
        %v3366 = vld [vmem:[%s3363 + $0x8] sm:$0xf]
        %v3367 = vld [vmem:[%s3363 + $0xc] sm:$0xf]
        %s3368 = scalar_lea.vmem %s49, 1
        %v3369 = vld [vmem:[%s3368] sm:$0x1]
        %v3371 = vlaneseq
        %v3372 = vshrl.u32 %v3371, 7
        %v3373 = vsub.s32 0, %v3372
        %v3374 = vrot.slane %v3369, %v3373
        %v3380 = vunpack.c.l.b16 %v3364
        %v3381 = vunpack.c.l.b16 %v3365
        %v3382 = vunpack.c.l.b16 %v3366
        %v3383 = vunpack.c.l.b16 %v3367
        %v3384 = vpack.c.b16 %v3381, %v3380
        %v3385 = vpack.c.b16 %v3383, %v3382
        %3388 = vmatprep.subr.bf16.mxu0 0
        %3389 = vmatpush1.bf16.msra.mxu0 0
        %3390 = vmatprep.subr.bf16.mxu0 0
        %3391 = vmatpush1.bf16.msra.mxu0 0
        %3392 = vmatprep.subr.bf16.mxu0 0
        %3393 = vmatpush1.bf16.msra.mxu0 0
        %3394 = vmatprep.subr.bf16.mxu0 0
        %3395 = vmatpush1.bf16.msra.mxu0 0
        %3396 = vmatprep.subr.bf16.mxu0 0
        %3397 = vmatpush1.bf16.msra.mxu0 0
        %3398 = vmatprep.subr.bf16.mxu0 0
        %3399 = vmatpush1.bf16.msra.mxu0 0
        %3400 = vmatprep.subr.bf16.mxu0 0
        %3401 = vmatpush1.bf16.msra.mxu0 %v3385
        %3402 = vmatprep.subr.bf16.mxu0 0
        %3403 = vmatpush1.bf16.msra.mxu0 %v3384
        %3404 = vmatprep.subr.bf16.mxu0 0
        %3405 = vmatpush2.bf16.msra.mxu0 0
        %3406 = vmatprep.subr.bf16.mxu0 0
        %3407 = vmatpush2.bf16.msra.mxu0 0
        %3408 = vmatprep.subr.bf16.mxu0 0
        %3409 = vmatpush2.bf16.msra.mxu0 0
        %3410 = vmatprep.subr.bf16.mxu0 0
        %3411 = vmatpush2.bf16.msra.mxu0 0
        %3412 = vmatprep.subr.bf16.mxu0 0
        %3413 = vmatpush2.bf16.msra.mxu0 0
        %3414 = vmatprep.subr.bf16.mxu0 0
        %3415 = vmatpush2.bf16.msra.mxu0 0
        %3416 = vmatprep.subr.bf16.mxu0 0
        %3417 = vmatpush2.bf16.msra.mxu0 0
        %3418 = vmatprep.subr.bf16.mxu0 0
        %3419 = vmatpush2.bf16.msra.mxu0 0
        %3420 = vmatprep.mubr.bf16.mxu0 0
        %3421 = vmatmul.mubr.bf16.gmra.mxu0 %v3086
        %v3422 = vpop.f32.mrf.mxu0
        %v3423 = vadd.f32 %v3374, %v3422
        %v3424 = vpop.f32.mrf.mxu0
        %v3425 = vpop.f32.mrf.mxu0
        %v3426 = vpop.f32.mrf.mxu0
        %3427 = vdwg.mxu0
        %s3428 = scalar_lea.vmem %s51, 16
        %v3429 = vld [vmem:[%s3428] sm:$0xf]
        %v3430 = vld [vmem:[%s3428 + $0x4] sm:$0xf]
        %v3431 = vld [vmem:[%s3428 + $0x8] sm:$0xf]
        %v3432 = vld [vmem:[%s3428 + $0xc] sm:$0xf]
        %s3433 = scalar_lea.vmem %s53, 1
        %v3434 = vld [vmem:[%s3433] sm:$0x1]
        %v3436 = vlaneseq
        %v3437 = vshrl.u32 %v3436, 7
        %v3438 = vsub.s32 0, %v3437
        %v3439 = vrot.slane %v3434, %v3438
        %v3445 = vunpack.c.l.b16 %v3429
        %v3446 = vunpack.c.l.b16 %v3430
        %v3447 = vunpack.c.l.b16 %v3431
        %v3448 = vunpack.c.l.b16 %v3432
        %v3449 = vpack.c.b16 %v3446, %v3445
        %v3450 = vpack.c.b16 %v3448, %v3447
        %3453 = vmatprep.subr.bf16.mxu0 0
        %3454 = vmatpush1.bf16.msra.mxu0 0
        %3455 = vmatprep.subr.bf16.mxu0 0
        %3456 = vmatpush1.bf16.msra.mxu0 0
        %3457 = vmatprep.subr.bf16.mxu0 0
        %3458 = vmatpush1.bf16.msra.mxu0 0
        %3459 = vmatprep.subr.bf16.mxu0 0
        %3460 = vmatpush1.bf16.msra.mxu0 0
        %3461 = vmatprep.subr.bf16.mxu0 0
        %3462 = vmatpush1.bf16.msra.mxu0 0
        %3463 = vmatprep.subr.bf16.mxu0 0
        %3464 = vmatpush1.bf16.msra.mxu0 0
        %3465 = vmatprep.subr.bf16.mxu0 0
        %3466 = vmatpush1.bf16.msra.mxu0 %v3450
        %3467 = vmatprep.subr.bf16.mxu0 0
        %3468 = vmatpush1.bf16.msra.mxu0 %v3449
        %3469 = vmatprep.subr.bf16.mxu0 0
        %3470 = vmatpush2.bf16.msra.mxu0 0
        %3471 = vmatprep.subr.bf16.mxu0 0
        %3472 = vmatpush2.bf16.msra.mxu0 0
        %3473 = vmatprep.subr.bf16.mxu0 0
        %3474 = vmatpush2.bf16.msra.mxu0 0
        %3475 = vmatprep.subr.bf16.mxu0 0
        %3476 = vmatpush2.bf16.msra.mxu0 0
        %3477 = vmatprep.subr.bf16.mxu0 0
        %3478 = vmatpush2.bf16.msra.mxu0 0
        %3479 = vmatprep.subr.bf16.mxu0 0
        %3480 = vmatpush2.bf16.msra.mxu0 0
        %3481 = vmatprep.subr.bf16.mxu0 0
        %3482 = vmatpush2.bf16.msra.mxu0 0
        %3483 = vmatprep.subr.bf16.mxu0 0
        %3484 = vmatpush2.bf16.msra.mxu0 0
        %3485 = vmatprep.mubr.bf16.mxu0 0
        %3486 = vmatmul.mubr.bf16.gmra.mxu0 %v3086
        %v3487 = vpop.f32.mrf.mxu0
        %v3488 = vadd.f32 %v3439, %v3487
        %v3489 = vpop.f32.mrf.mxu0
        %v3490 = vpop.f32.mrf.mxu0
        %v3491 = vpop.f32.mrf.mxu0
        %3492 = vdwg.mxu0
        %s3493 = scalar_lea.vmem %s55, 16
        %v3494 = vld [vmem:[%s3493] sm:$0xf]
        %v3495 = vld [vmem:[%s3493 + $0x4] sm:$0xf]
        %v3496 = vld [vmem:[%s3493 + $0x8] sm:$0xf]
        %v3497 = vld [vmem:[%s3493 + $0xc] sm:$0xf]
        %s3498 = scalar_lea.vmem %s57, 1
        %v3499 = vld [vmem:[%s3498] sm:$0x1]
        %v3501 = vlaneseq
        %v3502 = vshrl.u32 %v3501, 7
        %v3503 = vsub.s32 0, %v3502
        %v3504 = vrot.slane %v3499, %v3503
        %v3510 = vunpack.c.l.b16 %v3494
        %v3511 = vunpack.c.l.b16 %v3495
        %v3512 = vunpack.c.l.b16 %v3496
        %v3513 = vunpack.c.l.b16 %v3497
        %v3514 = vpack.c.b16 %v3511, %v3510
        %v3515 = vpack.c.b16 %v3513, %v3512
        %3518 = vmatprep.subr.bf16.mxu0 0
        %3519 = vmatpush1.bf16.msra.mxu0 0
        %3520 = vmatprep.subr.bf16.mxu0 0
        %3521 = vmatpush1.bf16.msra.mxu0 0
        %3522 = vmatprep.subr.bf16.mxu0 0
        %3523 = vmatpush1.bf16.msra.mxu0 0
        %3524 = vmatprep.subr.bf16.mxu0 0
        %3525 = vmatpush1.bf16.msra.mxu0 0
        %3526 = vmatprep.subr.bf16.mxu0 0
        %3527 = vmatpush1.bf16.msra.mxu0 0
        %3528 = vmatprep.subr.bf16.mxu0 0
        %3529 = vmatpush1.bf16.msra.mxu0 0
        %3530 = vmatprep.subr.bf16.mxu0 0
        %3531 = vmatpush1.bf16.msra.mxu0 %v3515
        %3532 = vmatprep.subr.bf16.mxu0 0
        %3533 = vmatpush1.bf16.msra.mxu0 %v3514
        %3534 = vmatprep.subr.bf16.mxu0 0
        %3535 = vmatpush2.bf16.msra.mxu0 0
        %3536 = vmatprep.subr.bf16.mxu0 0
        %3537 = vmatpush2.bf16.msra.mxu0 0
        %3538 = vmatprep.subr.bf16.mxu0 0
        %3539 = vmatpush2.bf16.msra.mxu0 0
        %3540 = vmatprep.subr.bf16.mxu0 0
        %3541 = vmatpush2.bf16.msra.mxu0 0
        %3542 = vmatprep.subr.bf16.mxu0 0
        %3543 = vmatpush2.bf16.msra.mxu0 0
        %3544 = vmatprep.subr.bf16.mxu0 0
        %3545 = vmatpush2.bf16.msra.mxu0 0
        %3546 = vmatprep.subr.bf16.mxu0 0
        %3547 = vmatpush2.bf16.msra.mxu0 0
        %3548 = vmatprep.subr.bf16.mxu0 0
        %3549 = vmatpush2.bf16.msra.mxu0 0
        %3550 = vmatprep.mubr.bf16.mxu0 0
        %3551 = vmatmul.mubr.bf16.gmra.mxu0 %v3086
        %v3552 = vpop.f32.mrf.mxu0
        %v3553 = vadd.f32 %v3504, %v3552
        %v3554 = vpop.f32.mrf.mxu0
        %v3555 = vpop.f32.mrf.mxu0
        %v3556 = vpop.f32.mrf.mxu0
        %3557 = vdwg.mxu0
        %v3558 = vpack.c.bf16 %v3423, %v3423
        %v3559 = vpack.c.bf16 %v3488, %v3488
        %v3561 = vsel %vm1571, %v3558, 0
        %v3564 = vsel %vm1571, %v3559, 0
        %3566 = vmatprep.subr.bf16.mxu0 0
        %3567 = vmatpush1.bf16.xpose.msra.mxu0 0
        %3568 = vmatprep.subr.bf16.mxu0 0
        %3569 = vmatpush1.bf16.xpose.msra.mxu0 0
        %3570 = vmatprep.subr.bf16.mxu0 0
        %3571 = vmatpush1.bf16.xpose.msra.mxu0 0
        %3572 = vmatprep.subr.bf16.mxu0 0
        %3573 = vmatpush1.bf16.xpose.msra.mxu0 0
        %3574 = vmatprep.subr.bf16.mxu0 0
        %3575 = vmatpush1.bf16.xpose.msra.mxu0 0
        %3576 = vmatprep.subr.bf16.mxu0 0
        %3577 = vmatpush1.bf16.xpose.msra.mxu0 0
        %3578 = vmatprep.subr.bf16.mxu0 0
        %3579 = vmatpush1.bf16.xpose.msra.mxu0 0
        %3580 = vmatprep.subr.bf16.mxu0 0
        %3581 = vmatpush1.bf16.xpose.msra.mxu0 %v3564
        %3582 = vmatprep.subr.bf16.mxu0 0
        %3583 = vmatpush2.bf16.xpose.msra.mxu0 0
        %3584 = vmatprep.subr.bf16.mxu0 0
        %3585 = vmatpush2.bf16.xpose.msra.mxu0 0
        %3586 = vmatprep.subr.bf16.mxu0 0
        %3587 = vmatpush2.bf16.xpose.msra.mxu0 0
        %3588 = vmatprep.subr.bf16.mxu0 0
        %3589 = vmatpush2.bf16.xpose.msra.mxu0 0
        %3590 = vmatprep.subr.bf16.mxu0 0
        %3591 = vmatpush2.bf16.xpose.msra.mxu0 0
        %3592 = vmatprep.subr.bf16.mxu0 0
        %3593 = vmatpush2.bf16.xpose.msra.mxu0 0
        %3594 = vmatprep.subr.bf16.mxu0 0
        %3595 = vmatpush2.bf16.xpose.msra.mxu0 0
        %3596 = vmatprep.subr.bf16.mxu0 0
        %3597 = vmatpush2.bf16.xpose.msra.mxu0 0
        %3598 = vmatprep.mubr.bf16.mxu0 0
        %3599 = vmatmul.mubr.bf16.gmra.mxu0 %v3561
        %v3600 = vpop.f32.mrf.mxu0
        %v3601 = vadd.f32 0.0, %v3600
        %v3602 = vpop.f32.mrf.mxu0
        %v3603 = vpop.f32.mrf.mxu0
        %v3604 = vpop.f32.mrf.mxu0
        %3605 = vdwg.mxu0
        %v3606 = vsel %vm1618, %v3601, -inf
        %3607 = vmax.xlane.f32.xlu0 %v3606
        %v3608 = vpop.xlane.xlu0 %3607
        %v3609 = vsub.f32 %v3601, %v3608
        %v3610 = vmul.f32 %v3609, 1.442695
        %v3611 = vpow.pop %v3610
        %v3612 = vsel %vm1618, %v3611, 0.0
        %3613 = vadd.xlane.f32.xlu0 %v3612
        %v3614 = vpop.xlane.xlu0 %3613
        %v3615 = vrcp.pop %v3614
        %v3616 = vmul.f32 %v3611, %v3615
        %v3617 = vpack.c.bf16 %v3616, %v3616
        %v3618 = vpack.c.bf16 %v3553, %v3553
        %v3620 = vsel %vm1632, %v3617, 0
        %v3623 = vand.u32 %v3618, %v1639
        %3625 = vmatprep.subr.bf16.mxu0 0
        %3626 = vmatpush1.bf16.msra.mxu0 0
        %3627 = vmatprep.subr.bf16.mxu0 0
        %3628 = vmatpush1.bf16.msra.mxu0 0
        %3629 = vmatprep.subr.bf16.mxu0 0
        %3630 = vmatpush1.bf16.msra.mxu0 0
        %3631 = vmatprep.subr.bf16.mxu0 0
        %3632 = vmatpush1.bf16.msra.mxu0 0
        %3633 = vmatprep.subr.bf16.mxu0 0
        %3634 = vmatpush1.bf16.msra.mxu0 0
        %3635 = vmatprep.subr.bf16.mxu0 0
        %3636 = vmatpush1.bf16.msra.mxu0 0
        %3637 = vmatprep.subr.bf16.mxu0 0
        %3638 = vmatpush1.bf16.msra.mxu0 0
        %3639 = vmatprep.subr.bf16.mxu0 0
        %3640 = vmatpush1.bf16.msra.mxu0 %v3623
        %3641 = vmatprep.subr.bf16.mxu0 0
        %3642 = vmatpush2.bf16.msra.mxu0 0
        %3643 = vmatprep.subr.bf16.mxu0 0
        %3644 = vmatpush2.bf16.msra.mxu0 0
        %3645 = vmatprep.subr.bf16.mxu0 0
        %3646 = vmatpush2.bf16.msra.mxu0 0
        %3647 = vmatprep.subr.bf16.mxu0 0
        %3648 = vmatpush2.bf16.msra.mxu0 0
        %3649 = vmatprep.subr.bf16.mxu0 0
        %3650 = vmatpush2.bf16.msra.mxu0 0
        %3651 = vmatprep.subr.bf16.mxu0 0
        %3652 = vmatpush2.bf16.msra.mxu0 0
        %3653 = vmatprep.subr.bf16.mxu0 0
        %3654 = vmatpush2.bf16.msra.mxu0 0
        %3655 = vmatprep.subr.bf16.mxu0 0
        %3656 = vmatpush2.bf16.msra.mxu0 0
        %3657 = vmatprep.mubr.bf16.mxu0 0
        %3658 = vmatmul.mubr.bf16.gmra.mxu0 %v3620
        %v3659 = vpop.f32.mrf.mxu0
        %v3660 = vadd.f32 0.0, %v3659
        %v3661 = vpop.f32.mrf.mxu0
        %v3662 = vpop.f32.mrf.mxu0
        %v3663 = vpop.f32.mrf.mxu0
        %3664 = vdwg.mxu0
        %v3665 = vpack.c.bf16 %v3660, %v3660
        %s3666 = scalar_lea.vmem %s59, 4
        %v3667 = vld [vmem:[%s3666] sm:$0xf]
        %v3669 = vsel %vm1571, %v3665, 0
        %v3672 = vsel %vm1993, %v3667, 0
        %3674 = vmatprep.subr.bf16.mxu0 0
        %3675 = vmatpush1.bf16.msra.mxu0 0
        %3676 = vmatprep.subr.bf16.mxu0 0
        %3677 = vmatpush1.bf16.msra.mxu0 0
        %3678 = vmatprep.subr.bf16.mxu0 0
        %3679 = vmatpush1.bf16.msra.mxu0 0
        %3680 = vmatprep.subr.bf16.mxu0 0
        %3681 = vmatpush1.bf16.msra.mxu0 0
        %3682 = vmatprep.subr.bf16.mxu0 0
        %3683 = vmatpush1.bf16.msra.mxu0 0
        %3684 = vmatprep.subr.bf16.mxu0 0
        %3685 = vmatpush1.bf16.msra.mxu0 0
        %3686 = vmatprep.subr.bf16.mxu0 0
        %3687 = vmatpush1.bf16.msra.mxu0 0
        %3688 = vmatprep.subr.bf16.mxu0 0
        %3689 = vmatpush1.bf16.msra.mxu0 %v3672
        %3690 = vmatprep.subr.bf16.mxu0 0
        %3691 = vmatpush2.bf16.msra.mxu0 0
        %3692 = vmatprep.subr.bf16.mxu0 0
        %3693 = vmatpush2.bf16.msra.mxu0 0
        %3694 = vmatprep.subr.bf16.mxu0 0
        %3695 = vmatpush2.bf16.msra.mxu0 0
        %3696 = vmatprep.subr.bf16.mxu0 0
        %3697 = vmatpush2.bf16.msra.mxu0 0
        %3698 = vmatprep.subr.bf16.mxu0 0
        %3699 = vmatpush2.bf16.msra.mxu0 0
        %3700 = vmatprep.subr.bf16.mxu0 0
        %3701 = vmatpush2.bf16.msra.mxu0 0
        %3702 = vmatprep.subr.bf16.mxu0 0
        %3703 = vmatpush2.bf16.msra.mxu0 0
        %3704 = vmatprep.subr.bf16.mxu0 0
        %3705 = vmatpush2.bf16.msra.mxu0 0
        %3706 = vmatprep.mubr.bf16.mxu0 0
        %3707 = vmatmul.mubr.bf16.gmra.mxu0 %v3669
        %v3708 = vpop.f32.mrf.mxu0
        %v3709 = vadd.f32 0.0, %v3708
        %v3710 = vpop.f32.mrf.mxu0
        %v3711 = vpop.f32.mrf.mxu0
        %v3712 = vpop.f32.mrf.mxu0
        %3713 = vdwg.mxu0
        %v3715 = vsel %vm1571, %v3361, 0
        %v3718 = vsel %vm1993, %v3362, 0
        %3720 = vmatprep.subr.bf16.mxu0 0
        %3721 = vmatpush1.bf16.msra.mxu0 0
        %3722 = vmatprep.subr.bf16.mxu0 0
        %3723 = vmatpush1.bf16.msra.mxu0 0
        %3724 = vmatprep.subr.bf16.mxu0 0
        %3725 = vmatpush1.bf16.msra.mxu0 0
        %3726 = vmatprep.subr.bf16.mxu0 0
        %3727 = vmatpush1.bf16.msra.mxu0 0
        %3728 = vmatprep.subr.bf16.mxu0 0
        %3729 = vmatpush1.bf16.msra.mxu0 0
        %3730 = vmatprep.subr.bf16.mxu0 0
        %3731 = vmatpush1.bf16.msra.mxu0 0
        %3732 = vmatprep.subr.bf16.mxu0 0
        %3733 = vmatpush1.bf16.msra.mxu0 0
        %3734 = vmatprep.subr.bf16.mxu0 0
        %3735 = vmatpush1.bf16.msra.mxu0 %v3718
        %3736 = vmatprep.subr.bf16.mxu0 0
        %3737 = vmatpush2.bf16.msra.mxu0 0
        %3738 = vmatprep.subr.bf16.mxu0 0
        %3739 = vmatpush2.bf16.msra.mxu0 0
        %3740 = vmatprep.subr.bf16.mxu0 0
        %3741 = vmatpush2.bf16.msra.mxu0 0
        %3742 = vmatprep.subr.bf16.mxu0 0
        %3743 = vmatpush2.bf16.msra.mxu0 0
        %3744 = vmatprep.subr.bf16.mxu0 0
        %3745 = vmatpush2.bf16.msra.mxu0 0
        %3746 = vmatprep.subr.bf16.mxu0 0
        %3747 = vmatpush2.bf16.msra.mxu0 0
        %3748 = vmatprep.subr.bf16.mxu0 0
        %3749 = vmatpush2.bf16.msra.mxu0 0
        %3750 = vmatprep.subr.bf16.mxu0 0
        %3751 = vmatpush2.bf16.msra.mxu0 0
        %3752 = vmatprep.mubr.bf16.mxu0 0
        %3753 = vmatmul.mubr.bf16.gmra.mxu0 %v3715
        %v3754 = vpop.f32.mrf.mxu0
        %v3755 = vadd.f32 %v3709, %v3754
        %v3756 = vpop.f32.mrf.mxu0
        %v3757 = vpop.f32.mrf.mxu0
        %v3758 = vpop.f32.mrf.mxu0
        %3759 = vdwg.mxu0
        %s3760 = scalar_lea.vmem %s47, 32
        %v3761 = vld [vmem:[%s3760] sm:$0xf]
        %v3762 = vld [vmem:[%s3760 + $0x4] sm:$0xf]
        %v3763 = vld [vmem:[%s3760 + $0x8] sm:$0xf]
        %v3764 = vld [vmem:[%s3760 + $0xc] sm:$0xf]
        %s3765 = scalar_lea.vmem %s49, 2
        %v3766 = vld [vmem:[%s3765] sm:$0x1]
        %v3768 = vlaneseq
        %v3769 = vshrl.u32 %v3768, 7
        %v3770 = vsub.s32 0, %v3769
        %v3771 = vrot.slane %v3766, %v3770
        %v3777 = vunpack.c.l.b16 %v3761
        %v3778 = vunpack.c.l.b16 %v3762
        %v3779 = vunpack.c.l.b16 %v3763
        %v3780 = vunpack.c.l.b16 %v3764
        %v3781 = vpack.c.b16 %v3778, %v3777
        %v3782 = vpack.c.b16 %v3780, %v3779
        %3785 = vmatprep.subr.bf16.mxu0 0
        %3786 = vmatpush1.bf16.msra.mxu0 0
        %3787 = vmatprep.subr.bf16.mxu0 0
        %3788 = vmatpush1.bf16.msra.mxu0 0
        %3789 = vmatprep.subr.bf16.mxu0 0
        %3790 = vmatpush1.bf16.msra.mxu0 0
        %3791 = vmatprep.subr.bf16.mxu0 0
        %3792 = vmatpush1.bf16.msra.mxu0 0
        %3793 = vmatprep.subr.bf16.mxu0 0
        %3794 = vmatpush1.bf16.msra.mxu0 0
        %3795 = vmatprep.subr.bf16.mxu0 0
        %3796 = vmatpush1.bf16.msra.mxu0 0
        %3797 = vmatprep.subr.bf16.mxu0 0
        %3798 = vmatpush1.bf16.msra.mxu0 %v3782
        %3799 = vmatprep.subr.bf16.mxu0 0
        %3800 = vmatpush1.bf16.msra.mxu0 %v3781
        %3801 = vmatprep.subr.bf16.mxu0 0
        %3802 = vmatpush2.bf16.msra.mxu0 0
        %3803 = vmatprep.subr.bf16.mxu0 0
        %3804 = vmatpush2.bf16.msra.mxu0 0
        %3805 = vmatprep.subr.bf16.mxu0 0
        %3806 = vmatpush2.bf16.msra.mxu0 0
        %3807 = vmatprep.subr.bf16.mxu0 0
        %3808 = vmatpush2.bf16.msra.mxu0 0
        %3809 = vmatprep.subr.bf16.mxu0 0
        %3810 = vmatpush2.bf16.msra.mxu0 0
        %3811 = vmatprep.subr.bf16.mxu0 0
        %3812 = vmatpush2.bf16.msra.mxu0 0
        %3813 = vmatprep.subr.bf16.mxu0 0
        %3814 = vmatpush2.bf16.msra.mxu0 0
        %3815 = vmatprep.subr.bf16.mxu0 0
        %3816 = vmatpush2.bf16.msra.mxu0 0
        %3817 = vmatprep.mubr.bf16.mxu0 0
        %3818 = vmatmul.mubr.bf16.gmra.mxu0 %v3086
        %v3819 = vpop.f32.mrf.mxu0
        %v3820 = vadd.f32 %v3771, %v3819
        %v3821 = vpop.f32.mrf.mxu0
        %v3822 = vpop.f32.mrf.mxu0
        %v3823 = vpop.f32.mrf.mxu0
        %3824 = vdwg.mxu0
        %s3825 = scalar_lea.vmem %s51, 32
        %v3826 = vld [vmem:[%s3825] sm:$0xf]
        %v3827 = vld [vmem:[%s3825 + $0x4] sm:$0xf]
        %v3828 = vld [vmem:[%s3825 + $0x8] sm:$0xf]
        %v3829 = vld [vmem:[%s3825 + $0xc] sm:$0xf]
        %s3830 = scalar_lea.vmem %s53, 2
        %v3831 = vld [vmem:[%s3830] sm:$0x1]
        %v3833 = vlaneseq
        %v3834 = vshrl.u32 %v3833, 7
        %v3835 = vsub.s32 0, %v3834
        %v3836 = vrot.slane %v3831, %v3835
        %v3842 = vunpack.c.l.b16 %v3826
        %v3843 = vunpack.c.l.b16 %v3827
        %v3844 = vunpack.c.l.b16 %v3828
        %v3845 = vunpack.c.l.b16 %v3829
        %v3846 = vpack.c.b16 %v3843, %v3842
        %v3847 = vpack.c.b16 %v3845, %v3844
        %3850 = vmatprep.subr.bf16.mxu0 0
        %3851 = vmatpush1.bf16.msra.mxu0 0
        %3852 = vmatprep.subr.bf16.mxu0 0
        %3853 = vmatpush1.bf16.msra.mxu0 0
        %3854 = vmatprep.subr.bf16.mxu0 0
        %3855 = vmatpush1.bf16.msra.mxu0 0
        %3856 = vmatprep.subr.bf16.mxu0 0
        %3857 = vmatpush1.bf16.msra.mxu0 0
        %3858 = vmatprep.subr.bf16.mxu0 0
        %3859 = vmatpush1.bf16.msra.mxu0 0
        %3860 = vmatprep.subr.bf16.mxu0 0
        %3861 = vmatpush1.bf16.msra.mxu0 0
        %3862 = vmatprep.subr.bf16.mxu0 0
        %3863 = vmatpush1.bf16.msra.mxu0 %v3847
        %3864 = vmatprep.subr.bf16.mxu0 0
        %3865 = vmatpush1.bf16.msra.mxu0 %v3846
        %3866 = vmatprep.subr.bf16.mxu0 0
        %3867 = vmatpush2.bf16.msra.mxu0 0
        %3868 = vmatprep.subr.bf16.mxu0 0
        %3869 = vmatpush2.bf16.msra.mxu0 0
        %3870 = vmatprep.subr.bf16.mxu0 0
        %3871 = vmatpush2.bf16.msra.mxu0 0
        %3872 = vmatprep.subr.bf16.mxu0 0
        %3873 = vmatpush2.bf16.msra.mxu0 0
        %3874 = vmatprep.subr.bf16.mxu0 0
        %3875 = vmatpush2.bf16.msra.mxu0 0
        %3876 = vmatprep.subr.bf16.mxu0 0
        %3877 = vmatpush2.bf16.msra.mxu0 0
        %3878 = vmatprep.subr.bf16.mxu0 0
        %3879 = vmatpush2.bf16.msra.mxu0 0
        %3880 = vmatprep.subr.bf16.mxu0 0
        %3881 = vmatpush2.bf16.msra.mxu0 0
        %3882 = vmatprep.mubr.bf16.mxu0 0
        %3883 = vmatmul.mubr.bf16.gmra.mxu0 %v3086
        %v3884 = vpop.f32.mrf.mxu0
        %v3885 = vadd.f32 %v3836, %v3884
        %v3886 = vpop.f32.mrf.mxu0
        %v3887 = vpop.f32.mrf.mxu0
        %v3888 = vpop.f32.mrf.mxu0
        %3889 = vdwg.mxu0
        %s3890 = scalar_lea.vmem %s55, 32
        %v3891 = vld [vmem:[%s3890] sm:$0xf]
        %v3892 = vld [vmem:[%s3890 + $0x4] sm:$0xf]
        %v3893 = vld [vmem:[%s3890 + $0x8] sm:$0xf]
        %v3894 = vld [vmem:[%s3890 + $0xc] sm:$0xf]
        %s3895 = scalar_lea.vmem %s57, 2
        %v3896 = vld [vmem:[%s3895] sm:$0x1]
        %v3898 = vlaneseq
        %v3899 = vshrl.u32 %v3898, 7
        %v3900 = vsub.s32 0, %v3899
        %v3901 = vrot.slane %v3896, %v3900
        %v3907 = vunpack.c.l.b16 %v3891
        %v3908 = vunpack.c.l.b16 %v3892
        %v3909 = vunpack.c.l.b16 %v3893
        %v3910 = vunpack.c.l.b16 %v3894
        %v3911 = vpack.c.b16 %v3908, %v3907
        %v3912 = vpack.c.b16 %v3910, %v3909
        %3915 = vmatprep.subr.bf16.mxu0 0
        %3916 = vmatpush1.bf16.msra.mxu0 0
        %3917 = vmatprep.subr.bf16.mxu0 0
        %3918 = vmatpush1.bf16.msra.mxu0 0
        %3919 = vmatprep.subr.bf16.mxu0 0
        %3920 = vmatpush1.bf16.msra.mxu0 0
        %3921 = vmatprep.subr.bf16.mxu0 0
        %3922 = vmatpush1.bf16.msra.mxu0 0
        %3923 = vmatprep.subr.bf16.mxu0 0
        %3924 = vmatpush1.bf16.msra.mxu0 0
        %3925 = vmatprep.subr.bf16.mxu0 0
        %3926 = vmatpush1.bf16.msra.mxu0 0
        %3927 = vmatprep.subr.bf16.mxu0 0
        %3928 = vmatpush1.bf16.msra.mxu0 %v3912
        %3929 = vmatprep.subr.bf16.mxu0 0
        %3930 = vmatpush1.bf16.msra.mxu0 %v3911
        %3931 = vmatprep.subr.bf16.mxu0 0
        %3932 = vmatpush2.bf16.msra.mxu0 0
        %3933 = vmatprep.subr.bf16.mxu0 0
        %3934 = vmatpush2.bf16.msra.mxu0 0
        %3935 = vmatprep.subr.bf16.mxu0 0
        %3936 = vmatpush2.bf16.msra.mxu0 0
        %3937 = vmatprep.subr.bf16.mxu0 0
        %3938 = vmatpush2.bf16.msra.mxu0 0
        %3939 = vmatprep.subr.bf16.mxu0 0
        %3940 = vmatpush2.bf16.msra.mxu0 0
        %3941 = vmatprep.subr.bf16.mxu0 0
        %3942 = vmatpush2.bf16.msra.mxu0 0
        %3943 = vmatprep.subr.bf16.mxu0 0
        %3944 = vmatpush2.bf16.msra.mxu0 0
        %3945 = vmatprep.subr.bf16.mxu0 0
        %3946 = vmatpush2.bf16.msra.mxu0 0
        %3947 = vmatprep.mubr.bf16.mxu0 0
        %3948 = vmatmul.mubr.bf16.gmra.mxu0 %v3086
        %v3949 = vpop.f32.mrf.mxu0
        %v3950 = vadd.f32 %v3901, %v3949
        %v3951 = vpop.f32.mrf.mxu0
        %v3952 = vpop.f32.mrf.mxu0
        %v3953 = vpop.f32.mrf.mxu0
        %3954 = vdwg.mxu0
        %v3955 = vpack.c.bf16 %v3820, %v3820
        %v3956 = vpack.c.bf16 %v3885, %v3885
        %v3958 = vsel %vm1571, %v3955, 0
        %v3961 = vsel %vm1571, %v3956, 0
        %3963 = vmatprep.subr.bf16.mxu0 0
        %3964 = vmatpush1.bf16.xpose.msra.mxu0 0
        %3965 = vmatprep.subr.bf16.mxu0 0
        %3966 = vmatpush1.bf16.xpose.msra.mxu0 0
        %3967 = vmatprep.subr.bf16.mxu0 0
        %3968 = vmatpush1.bf16.xpose.msra.mxu0 0
        %3969 = vmatprep.subr.bf16.mxu0 0
        %3970 = vmatpush1.bf16.xpose.msra.mxu0 0
        %3971 = vmatprep.subr.bf16.mxu0 0
        %3972 = vmatpush1.bf16.xpose.msra.mxu0 0
        %3973 = vmatprep.subr.bf16.mxu0 0
        %3974 = vmatpush1.bf16.xpose.msra.mxu0 0
        %3975 = vmatprep.subr.bf16.mxu0 0
        %3976 = vmatpush1.bf16.xpose.msra.mxu0 0
        %3977 = vmatprep.subr.bf16.mxu0 0
        %3978 = vmatpush1.bf16.xpose.msra.mxu0 %v3961
        %3979 = vmatprep.subr.bf16.mxu0 0
        %3980 = vmatpush2.bf16.xpose.msra.mxu0 0
        %3981 = vmatprep.subr.bf16.mxu0 0
        %3982 = vmatpush2.bf16.xpose.msra.mxu0 0
        %3983 = vmatprep.subr.bf16.mxu0 0
        %3984 = vmatpush2.bf16.xpose.msra.mxu0 0
        %3985 = vmatprep.subr.bf16.mxu0 0
        %3986 = vmatpush2.bf16.xpose.msra.mxu0 0
        %3987 = vmatprep.subr.bf16.mxu0 0
        %3988 = vmatpush2.bf16.xpose.msra.mxu0 0
        %3989 = vmatprep.subr.bf16.mxu0 0
        %3990 = vmatpush2.bf16.xpose.msra.mxu0 0
        %3991 = vmatprep.subr.bf16.mxu0 0
        %3992 = vmatpush2.bf16.xpose.msra.mxu0 0
        %3993 = vmatprep.subr.bf16.mxu0 0
        %3994 = vmatpush2.bf16.xpose.msra.mxu0 0
        %3995 = vmatprep.mubr.bf16.mxu0 0
        %3996 = vmatmul.mubr.bf16.gmra.mxu0 %v3958
        %v3997 = vpop.f32.mrf.mxu0
        %v3998 = vadd.f32 0.0, %v3997
        %v3999 = vpop.f32.mrf.mxu0
        %v4000 = vpop.f32.mrf.mxu0
        %v4001 = vpop.f32.mrf.mxu0
        %4002 = vdwg.mxu0
        %v4003 = vsel %vm1618, %v3998, -inf
        %4004 = vmax.xlane.f32.xlu0 %v4003
        %v4005 = vpop.xlane.xlu0 %4004
        %v4006 = vsub.f32 %v3998, %v4005
        %v4007 = vmul.f32 %v4006, 1.442695
        %v4008 = vpow.pop %v4007
        %v4009 = vsel %vm1618, %v4008, 0.0
        %4010 = vadd.xlane.f32.xlu0 %v4009
        %v4011 = vpop.xlane.xlu0 %4010
        %v4012 = vrcp.pop %v4011
        %v4013 = vmul.f32 %v4008, %v4012
        %v4014 = vpack.c.bf16 %v4013, %v4013
        %v4015 = vpack.c.bf16 %v3950, %v3950
        %v4017 = vsel %vm1632, %v4014, 0
        %v4020 = vand.u32 %v4015, %v1639
        %4022 = vmatprep.subr.bf16.mxu0 0
        %4023 = vmatpush1.bf16.msra.mxu0 0
        %4024 = vmatprep.subr.bf16.mxu0 0
        %4025 = vmatpush1.bf16.msra.mxu0 0
        %4026 = vmatprep.subr.bf16.mxu0 0
        %4027 = vmatpush1.bf16.msra.mxu0 0
        %4028 = vmatprep.subr.bf16.mxu0 0
        %4029 = vmatpush1.bf16.msra.mxu0 0
        %4030 = vmatprep.subr.bf16.mxu0 0
        %4031 = vmatpush1.bf16.msra.mxu0 0
        %4032 = vmatprep.subr.bf16.mxu0 0
        %4033 = vmatpush1.bf16.msra.mxu0 0
        %4034 = vmatprep.subr.bf16.mxu0 0
        %4035 = vmatpush1.bf16.msra.mxu0 0
        %4036 = vmatprep.subr.bf16.mxu0 0
        %4037 = vmatpush1.bf16.msra.mxu0 %v4020
        %4038 = vmatprep.subr.bf16.mxu0 0
        %4039 = vmatpush2.bf16.msra.mxu0 0
        %4040 = vmatprep.subr.bf16.mxu0 0
        %4041 = vmatpush2.bf16.msra.mxu0 0
        %4042 = vmatprep.subr.bf16.mxu0 0
        %4043 = vmatpush2.bf16.msra.mxu0 0
        %4044 = vmatprep.subr.bf16.mxu0 0
        %4045 = vmatpush2.bf16.msra.mxu0 0
        %4046 = vmatprep.subr.bf16.mxu0 0
        %4047 = vmatpush2.bf16.msra.mxu0 0
        %4048 = vmatprep.subr.bf16.mxu0 0
        %4049 = vmatpush2.bf16.msra.mxu0 0
        %4050 = vmatprep.subr.bf16.mxu0 0
        %4051 = vmatpush2.bf16.msra.mxu0 0
        %4052 = vmatprep.subr.bf16.mxu0 0
        %4053 = vmatpush2.bf16.msra.mxu0 0
        %4054 = vmatprep.mubr.bf16.mxu0 0
        %4055 = vmatmul.mubr.bf16.gmra.mxu0 %v4017
        %v4056 = vpop.f32.mrf.mxu0
        %v4057 = vadd.f32 0.0, %v4056
        %v4058 = vpop.f32.mrf.mxu0
        %v4059 = vpop.f32.mrf.mxu0
        %v4060 = vpop.f32.mrf.mxu0
        %4061 = vdwg.mxu0
        %v4062 = vpack.c.bf16 %v4057, %v4057
        %s4063 = scalar_lea.vmem %s59, 8
        %v4064 = vld [vmem:[%s4063] sm:$0xf]
        %v4066 = vsel %vm1571, %v4062, 0
        %v4069 = vsel %vm1993, %v4064, 0
        %4071 = vmatprep.subr.bf16.mxu0 0
        %4072 = vmatpush1.bf16.msra.mxu0 0
        %4073 = vmatprep.subr.bf16.mxu0 0
        %4074 = vmatpush1.bf16.msra.mxu0 0
        %4075 = vmatprep.subr.bf16.mxu0 0
        %4076 = vmatpush1.bf16.msra.mxu0 0
        %4077 = vmatprep.subr.bf16.mxu0 0
        %4078 = vmatpush1.bf16.msra.mxu0 0
        %4079 = vmatprep.subr.bf16.mxu0 0
        %4080 = vmatpush1.bf16.msra.mxu0 0
        %4081 = vmatprep.subr.bf16.mxu0 0
        %4082 = vmatpush1.bf16.msra.mxu0 0
        %4083 = vmatprep.subr.bf16.mxu0 0
        %4084 = vmatpush1.bf16.msra.mxu0 0
        %4085 = vmatprep.subr.bf16.mxu0 0
        %4086 = vmatpush1.bf16.msra.mxu0 %v4069
        %4087 = vmatprep.subr.bf16.mxu0 0
        %4088 = vmatpush2.bf16.msra.mxu0 0
        %4089 = vmatprep.subr.bf16.mxu0 0
        %4090 = vmatpush2.bf16.msra.mxu0 0
        %4091 = vmatprep.subr.bf16.mxu0 0
        %4092 = vmatpush2.bf16.msra.mxu0 0
        %4093 = vmatprep.subr.bf16.mxu0 0
        %4094 = vmatpush2.bf16.msra.mxu0 0
        %4095 = vmatprep.subr.bf16.mxu0 0
        %4096 = vmatpush2.bf16.msra.mxu0 0
        %4097 = vmatprep.subr.bf16.mxu0 0
        %4098 = vmatpush2.bf16.msra.mxu0 0
        %4099 = vmatprep.subr.bf16.mxu0 0
        %4100 = vmatpush2.bf16.msra.mxu0 0
        %4101 = vmatprep.subr.bf16.mxu0 0
        %4102 = vmatpush2.bf16.msra.mxu0 0
        %4103 = vmatprep.mubr.bf16.mxu0 0
        %4104 = vmatmul.mubr.bf16.gmra.mxu0 %v4066
        %v4105 = vpop.f32.mrf.mxu0
        %v4106 = vadd.f32 0.0, %v4105
        %v4107 = vpop.f32.mrf.mxu0
        %v4108 = vpop.f32.mrf.mxu0
        %v4109 = vpop.f32.mrf.mxu0
        %4110 = vdwg.mxu0
        %v4111 = vadd.f32 %v3755, %v4106
        %s4112 = scalar_lea.vmem %s47, 48
        %v4113 = vld [vmem:[%s4112] sm:$0xf]
        %v4114 = vld [vmem:[%s4112 + $0x4] sm:$0xf]
        %v4115 = vld [vmem:[%s4112 + $0x8] sm:$0xf]
        %v4116 = vld [vmem:[%s4112 + $0xc] sm:$0xf]
        %s4117 = scalar_lea.vmem %s49, 3
        %v4118 = vld [vmem:[%s4117] sm:$0x1]
        %v4120 = vlaneseq
        %v4121 = vshrl.u32 %v4120, 7
        %v4122 = vsub.s32 0, %v4121
        %v4123 = vrot.slane %v4118, %v4122
        %v4129 = vunpack.c.l.b16 %v4113
        %v4130 = vunpack.c.l.b16 %v4114
        %v4131 = vunpack.c.l.b16 %v4115
        %v4132 = vunpack.c.l.b16 %v4116
        %v4133 = vpack.c.b16 %v4130, %v4129
        %v4134 = vpack.c.b16 %v4132, %v4131
        %4137 = vmatprep.subr.bf16.mxu0 0
        %4138 = vmatpush1.bf16.msra.mxu0 0
        %4139 = vmatprep.subr.bf16.mxu0 0
        %4140 = vmatpush1.bf16.msra.mxu0 0
        %4141 = vmatprep.subr.bf16.mxu0 0
        %4142 = vmatpush1.bf16.msra.mxu0 0
        %4143 = vmatprep.subr.bf16.mxu0 0
        %4144 = vmatpush1.bf16.msra.mxu0 0
        %4145 = vmatprep.subr.bf16.mxu0 0
        %4146 = vmatpush1.bf16.msra.mxu0 0
        %4147 = vmatprep.subr.bf16.mxu0 0
        %4148 = vmatpush1.bf16.msra.mxu0 0
        %4149 = vmatprep.subr.bf16.mxu0 0
        %4150 = vmatpush1.bf16.msra.mxu0 %v4134
        %4151 = vmatprep.subr.bf16.mxu0 0
        %4152 = vmatpush1.bf16.msra.mxu0 %v4133
        %4153 = vmatprep.subr.bf16.mxu0 0
        %4154 = vmatpush2.bf16.msra.mxu0 0
        %4155 = vmatprep.subr.bf16.mxu0 0
        %4156 = vmatpush2.bf16.msra.mxu0 0
        %4157 = vmatprep.subr.bf16.mxu0 0
        %4158 = vmatpush2.bf16.msra.mxu0 0
        %4159 = vmatprep.subr.bf16.mxu0 0
        %4160 = vmatpush2.bf16.msra.mxu0 0
        %4161 = vmatprep.subr.bf16.mxu0 0
        %4162 = vmatpush2.bf16.msra.mxu0 0
        %4163 = vmatprep.subr.bf16.mxu0 0
        %4164 = vmatpush2.bf16.msra.mxu0 0
        %4165 = vmatprep.subr.bf16.mxu0 0
        %4166 = vmatpush2.bf16.msra.mxu0 0
        %4167 = vmatprep.subr.bf16.mxu0 0
        %4168 = vmatpush2.bf16.msra.mxu0 0
        %4169 = vmatprep.mubr.bf16.mxu0 0
        %4170 = vmatmul.mubr.bf16.gmra.mxu0 %v3086
        %v4171 = vpop.f32.mrf.mxu0
        %v4172 = vadd.f32 %v4123, %v4171
        %v4173 = vpop.f32.mrf.mxu0
        %v4174 = vpop.f32.mrf.mxu0
        %v4175 = vpop.f32.mrf.mxu0
        %4176 = vdwg.mxu0
        %s4177 = scalar_lea.vmem %s51, 48
        %v4178 = vld [vmem:[%s4177] sm:$0xf]
        %v4179 = vld [vmem:[%s4177 + $0x4] sm:$0xf]
        %v4180 = vld [vmem:[%s4177 + $0x8] sm:$0xf]
        %v4181 = vld [vmem:[%s4177 + $0xc] sm:$0xf]
        %s4182 = scalar_lea.vmem %s53, 3
        %v4183 = vld [vmem:[%s4182] sm:$0x1]
        %v4185 = vlaneseq
        %v4186 = vshrl.u32 %v4185, 7
        %v4187 = vsub.s32 0, %v4186
        %v4188 = vrot.slane %v4183, %v4187
        %v4194 = vunpack.c.l.b16 %v4178
        %v4195 = vunpack.c.l.b16 %v4179
        %v4196 = vunpack.c.l.b16 %v4180
        %v4197 = vunpack.c.l.b16 %v4181
        %v4198 = vpack.c.b16 %v4195, %v4194
        %v4199 = vpack.c.b16 %v4197, %v4196
        %4202 = vmatprep.subr.bf16.mxu0 0
        %4203 = vmatpush1.bf16.msra.mxu0 0
        %4204 = vmatprep.subr.bf16.mxu0 0
        %4205 = vmatpush1.bf16.msra.mxu0 0
        %4206 = vmatprep.subr.bf16.mxu0 0
        %4207 = vmatpush1.bf16.msra.mxu0 0
        %4208 = vmatprep.subr.bf16.mxu0 0
        %4209 = vmatpush1.bf16.msra.mxu0 0
        %4210 = vmatprep.subr.bf16.mxu0 0
        %4211 = vmatpush1.bf16.msra.mxu0 0
        %4212 = vmatprep.subr.bf16.mxu0 0
        %4213 = vmatpush1.bf16.msra.mxu0 0
        %4214 = vmatprep.subr.bf16.mxu0 0
        %4215 = vmatpush1.bf16.msra.mxu0 %v4199
        %4216 = vmatprep.subr.bf16.mxu0 0
        %4217 = vmatpush1.bf16.msra.mxu0 %v4198
        %4218 = vmatprep.subr.bf16.mxu0 0
        %4219 = vmatpush2.bf16.msra.mxu0 0
        %4220 = vmatprep.subr.bf16.mxu0 0
        %4221 = vmatpush2.bf16.msra.mxu0 0
        %4222 = vmatprep.subr.bf16.mxu0 0
        %4223 = vmatpush2.bf16.msra.mxu0 0
        %4224 = vmatprep.subr.bf16.mxu0 0
        %4225 = vmatpush2.bf16.msra.mxu0 0
        %4226 = vmatprep.subr.bf16.mxu0 0
        %4227 = vmatpush2.bf16.msra.mxu0 0
        %4228 = vmatprep.subr.bf16.mxu0 0
        %4229 = vmatpush2.bf16.msra.mxu0 0
        %4230 = vmatprep.subr.bf16.mxu0 0
        %4231 = vmatpush2.bf16.msra.mxu0 0
        %4232 = vmatprep.subr.bf16.mxu0 0
        %4233 = vmatpush2.bf16.msra.mxu0 0
        %4234 = vmatprep.mubr.bf16.mxu0 0
        %4235 = vmatmul.mubr.bf16.gmra.mxu0 %v3086
        %v4236 = vpop.f32.mrf.mxu0
        %v4237 = vadd.f32 %v4188, %v4236
        %v4238 = vpop.f32.mrf.mxu0
        %v4239 = vpop.f32.mrf.mxu0
        %v4240 = vpop.f32.mrf.mxu0
        %4241 = vdwg.mxu0
        %s4242 = scalar_lea.vmem %s55, 48
        %v4243 = vld [vmem:[%s4242] sm:$0xf]
        %v4244 = vld [vmem:[%s4242 + $0x4] sm:$0xf]
        %v4245 = vld [vmem:[%s4242 + $0x8] sm:$0xf]
        %v4246 = vld [vmem:[%s4242 + $0xc] sm:$0xf]
        %s4247 = scalar_lea.vmem %s57, 3
        %v4248 = vld [vmem:[%s4247] sm:$0x1]
        %v4250 = vlaneseq
        %v4251 = vshrl.u32 %v4250, 7
        %v4252 = vsub.s32 0, %v4251
        %v4253 = vrot.slane %v4248, %v4252
        %v4259 = vunpack.c.l.b16 %v4243
        %v4260 = vunpack.c.l.b16 %v4244
        %v4261 = vunpack.c.l.b16 %v4245
        %v4262 = vunpack.c.l.b16 %v4246
        %v4263 = vpack.c.b16 %v4260, %v4259
        %v4264 = vpack.c.b16 %v4262, %v4261
        %4267 = vmatprep.subr.bf16.mxu0 0
        %4268 = vmatpush1.bf16.msra.mxu0 0
        %4269 = vmatprep.subr.bf16.mxu0 0
        %4270 = vmatpush1.bf16.msra.mxu0 0
        %4271 = vmatprep.subr.bf16.mxu0 0
        %4272 = vmatpush1.bf16.msra.mxu0 0
        %4273 = vmatprep.subr.bf16.mxu0 0
        %4274 = vmatpush1.bf16.msra.mxu0 0
        %4275 = vmatprep.subr.bf16.mxu0 0
        %4276 = vmatpush1.bf16.msra.mxu0 0
        %4277 = vmatprep.subr.bf16.mxu0 0
        %4278 = vmatpush1.bf16.msra.mxu0 0
        %4279 = vmatprep.subr.bf16.mxu0 0
        %4280 = vmatpush1.bf16.msra.mxu0 %v4264
        %4281 = vmatprep.subr.bf16.mxu0 0
        %4282 = vmatpush1.bf16.msra.mxu0 %v4263
        %4283 = vmatprep.subr.bf16.mxu0 0
        %4284 = vmatpush2.bf16.msra.mxu0 0
        %4285 = vmatprep.subr.bf16.mxu0 0
        %4286 = vmatpush2.bf16.msra.mxu0 0
        %4287 = vmatprep.subr.bf16.mxu0 0
        %4288 = vmatpush2.bf16.msra.mxu0 0
        %4289 = vmatprep.subr.bf16.mxu0 0
        %4290 = vmatpush2.bf16.msra.mxu0 0
        %4291 = vmatprep.subr.bf16.mxu0 0
        %4292 = vmatpush2.bf16.msra.mxu0 0
        %4293 = vmatprep.subr.bf16.mxu0 0
        %4294 = vmatpush2.bf16.msra.mxu0 0
        %4295 = vmatprep.subr.bf16.mxu0 0
        %4296 = vmatpush2.bf16.msra.mxu0 0
        %4297 = vmatprep.subr.bf16.mxu0 0
        %4298 = vmatpush2.bf16.msra.mxu0 0
        %4299 = vmatprep.mubr.bf16.mxu0 0
        %4300 = vmatmul.mubr.bf16.gmra.mxu0 %v3086
        %v4301 = vpop.f32.mrf.mxu0
        %v4302 = vadd.f32 %v4253, %v4301
        %v4303 = vpop.f32.mrf.mxu0
        %v4304 = vpop.f32.mrf.mxu0
        %v4305 = vpop.f32.mrf.mxu0
        %4306 = vdwg.mxu0
        %v4307 = vpack.c.bf16 %v4172, %v4172
        %v4308 = vpack.c.bf16 %v4237, %v4237
        %v4310 = vsel %vm1571, %v4307, 0
        %v4313 = vsel %vm1571, %v4308, 0
        %4315 = vmatprep.subr.bf16.mxu0 0
        %4316 = vmatpush1.bf16.xpose.msra.mxu0 0
        %4317 = vmatprep.subr.bf16.mxu0 0
        %4318 = vmatpush1.bf16.xpose.msra.mxu0 0
        %4319 = vmatprep.subr.bf16.mxu0 0
        %4320 = vmatpush1.bf16.xpose.msra.mxu0 0
        %4321 = vmatprep.subr.bf16.mxu0 0
        %4322 = vmatpush1.bf16.xpose.msra.mxu0 0
        %4323 = vmatprep.subr.bf16.mxu0 0
        %4324 = vmatpush1.bf16.xpose.msra.mxu0 0
        %4325 = vmatprep.subr.bf16.mxu0 0
        %4326 = vmatpush1.bf16.xpose.msra.mxu0 0
        %4327 = vmatprep.subr.bf16.mxu0 0
        %4328 = vmatpush1.bf16.xpose.msra.mxu0 0
        %4329 = vmatprep.subr.bf16.mxu0 0
        %4330 = vmatpush1.bf16.xpose.msra.mxu0 %v4313
        %4331 = vmatprep.subr.bf16.mxu0 0
        %4332 = vmatpush2.bf16.xpose.msra.mxu0 0
        %4333 = vmatprep.subr.bf16.mxu0 0
        %4334 = vmatpush2.bf16.xpose.msra.mxu0 0
        %4335 = vmatprep.subr.bf16.mxu0 0
        %4336 = vmatpush2.bf16.xpose.msra.mxu0 0
        %4337 = vmatprep.subr.bf16.mxu0 0
        %4338 = vmatpush2.bf16.xpose.msra.mxu0 0
        %4339 = vmatprep.subr.bf16.mxu0 0
        %4340 = vmatpush2.bf16.xpose.msra.mxu0 0
        %4341 = vmatprep.subr.bf16.mxu0 0
        %4342 = vmatpush2.bf16.xpose.msra.mxu0 0
        %4343 = vmatprep.subr.bf16.mxu0 0
        %4344 = vmatpush2.bf16.xpose.msra.mxu0 0
        %4345 = vmatprep.subr.bf16.mxu0 0
        %4346 = vmatpush2.bf16.xpose.msra.mxu0 0
        %4347 = vmatprep.mubr.bf16.mxu0 0
        %4348 = vmatmul.mubr.bf16.gmra.mxu0 %v4310
        %v4349 = vpop.f32.mrf.mxu0
        %v4350 = vadd.f32 0.0, %v4349
        %v4351 = vpop.f32.mrf.mxu0
        %v4352 = vpop.f32.mrf.mxu0
        %v4353 = vpop.f32.mrf.mxu0
        %4354 = vdwg.mxu0
        %v4355 = vsel %vm1618, %v4350, -inf
        %4356 = vmax.xlane.f32.xlu0 %v4355
        %v4357 = vpop.xlane.xlu0 %4356
        %v4358 = vsub.f32 %v4350, %v4357
        %v4359 = vmul.f32 %v4358, 1.442695
        %v4360 = vpow.pop %v4359
        %v4361 = vsel %vm1618, %v4360, 0.0
        %4362 = vadd.xlane.f32.xlu0 %v4361
        %v4363 = vpop.xlane.xlu0 %4362
        %v4364 = vrcp.pop %v4363
        %v4365 = vmul.f32 %v4360, %v4364
        %v4366 = vpack.c.bf16 %v4365, %v4365
        %v4367 = vpack.c.bf16 %v4302, %v4302
        %v4369 = vsel %vm1632, %v4366, 0
        %v4372 = vand.u32 %v4367, %v1639
        %4374 = vmatprep.subr.bf16.mxu0 0
        %4375 = vmatpush1.bf16.msra.mxu0 0
        %4376 = vmatprep.subr.bf16.mxu0 0
        %4377 = vmatpush1.bf16.msra.mxu0 0
        %4378 = vmatprep.subr.bf16.mxu0 0
        %4379 = vmatpush1.bf16.msra.mxu0 0
        %4380 = vmatprep.subr.bf16.mxu0 0
        %4381 = vmatpush1.bf16.msra.mxu0 0
        %4382 = vmatprep.subr.bf16.mxu0 0
        %4383 = vmatpush1.bf16.msra.mxu0 0
        %4384 = vmatprep.subr.bf16.mxu0 0
        %4385 = vmatpush1.bf16.msra.mxu0 0
        %4386 = vmatprep.subr.bf16.mxu0 0
        %4387 = vmatpush1.bf16.msra.mxu0 0
        %4388 = vmatprep.subr.bf16.mxu0 0
        %4389 = vmatpush1.bf16.msra.mxu0 %v4372
        %4390 = vmatprep.subr.bf16.mxu0 0
        %4391 = vmatpush2.bf16.msra.mxu0 0
        %4392 = vmatprep.subr.bf16.mxu0 0
        %4393 = vmatpush2.bf16.msra.mxu0 0
        %4394 = vmatprep.subr.bf16.mxu0 0
        %4395 = vmatpush2.bf16.msra.mxu0 0
        %4396 = vmatprep.subr.bf16.mxu0 0
        %4397 = vmatpush2.bf16.msra.mxu0 0
        %4398 = vmatprep.subr.bf16.mxu0 0
        %4399 = vmatpush2.bf16.msra.mxu0 0
        %4400 = vmatprep.subr.bf16.mxu0 0
        %4401 = vmatpush2.bf16.msra.mxu0 0
        %4402 = vmatprep.subr.bf16.mxu0 0
        %4403 = vmatpush2.bf16.msra.mxu0 0
        %4404 = vmatprep.subr.bf16.mxu0 0
        %4405 = vmatpush2.bf16.msra.mxu0 0
        %4406 = vmatprep.mubr.bf16.mxu0 0
        %4407 = vmatmul.mubr.bf16.gmra.mxu0 %v4369
        %v4408 = vpop.f32.mrf.mxu0
        %v4409 = vadd.f32 0.0, %v4408
        %v4410 = vpop.f32.mrf.mxu0
        %v4411 = vpop.f32.mrf.mxu0
        %v4412 = vpop.f32.mrf.mxu0
        %4413 = vdwg.mxu0
        %v4414 = vpack.c.bf16 %v4409, %v4409
        %s4415 = scalar_lea.vmem %s59, 12
        %v4416 = vld [vmem:[%s4415] sm:$0xf]
        %v4418 = vsel %vm1571, %v4414, 0
        %v4421 = vsel %vm1993, %v4416, 0
        %4423 = vmatprep.subr.bf16.mxu0 0
        %4424 = vmatpush1.bf16.msra.mxu0 0
        %4425 = vmatprep.subr.bf16.mxu0 0
        %4426 = vmatpush1.bf16.msra.mxu0 0
        %4427 = vmatprep.subr.bf16.mxu0 0
        %4428 = vmatpush1.bf16.msra.mxu0 0
        %4429 = vmatprep.subr.bf16.mxu0 0
        %4430 = vmatpush1.bf16.msra.mxu0 0
        %4431 = vmatprep.subr.bf16.mxu0 0
        %4432 = vmatpush1.bf16.msra.mxu0 0
        %4433 = vmatprep.subr.bf16.mxu0 0
        %4434 = vmatpush1.bf16.msra.mxu0 0
        %4435 = vmatprep.subr.bf16.mxu0 0
        %4436 = vmatpush1.bf16.msra.mxu0 0
        %4437 = vmatprep.subr.bf16.mxu0 0
        %4438 = vmatpush1.bf16.msra.mxu0 %v4421
        %4439 = vmatprep.subr.bf16.mxu0 0
        %4440 = vmatpush2.bf16.msra.mxu0 0
        %4441 = vmatprep.subr.bf16.mxu0 0
        %4442 = vmatpush2.bf16.msra.mxu0 0
        %4443 = vmatprep.subr.bf16.mxu0 0
        %4444 = vmatpush2.bf16.msra.mxu0 0
        %4445 = vmatprep.subr.bf16.mxu0 0
        %4446 = vmatpush2.bf16.msra.mxu0 0
        %4447 = vmatprep.subr.bf16.mxu0 0
        %4448 = vmatpush2.bf16.msra.mxu0 0
        %4449 = vmatprep.subr.bf16.mxu0 0
        %4450 = vmatpush2.bf16.msra.mxu0 0
        %4451 = vmatprep.subr.bf16.mxu0 0
        %4452 = vmatpush2.bf16.msra.mxu0 0
        %4453 = vmatprep.subr.bf16.mxu0 0
        %4454 = vmatpush2.bf16.msra.mxu0 0
        %4455 = vmatprep.mubr.bf16.mxu0 0
        %4456 = vmatmul.mubr.bf16.gmra.mxu0 %v4418
        %v4457 = vpop.f32.mrf.mxu0
        %v4458 = vadd.f32 0.0, %v4457
        %v4459 = vpop.f32.mrf.mxu0
        %v4460 = vpop.f32.mrf.mxu0
        %v4461 = vpop.f32.mrf.mxu0
        %4462 = vdwg.mxu0
        %v4463 = vadd.f32 %v4111, %v4458
        %v4464 = vadd.f32 %v3031, %v4463
        %v4465 = vld [vmem:[%s61] sm:$0x1]
        %v4467 = vlaneseq
        %v4468 = vshrl.u32 %v4467, 7
        %v4469 = vsub.s32 0, %v4468
        %v4470 = vrot.slane %v4465, %v4469
        %v4472 = vadd.f32 %v4464, %v4470
        %v4473 = vld [vmem:[%s63] sm:$0x1]
        %v4474 = vld [vmem:[%s65] sm:$0x1]
        %v4475 = vsel %vm1346, %v4472, 0.0
        %4476 = vadd.xlane.f32.xlu0 %v4475
        %v4477 = vpop.xlane.xlu0 %4476
        %v4478 = vmul.f32 %v4477, %v1350
        %v4479 = vsub.f32 %v4472, %v4478
        %v4480 = vmul.f32 %v4479, %v4479
        %v4481 = vsel %vm1346, %v4480, 0.0
        %4482 = vadd.xlane.f32.xlu0 %v4481
        %v4483 = vpop.xlane.xlu0 %4482
        %v4484 = vmul.f32 %v4483, %v1350
        %v4485 = vadd.f32 %v4484, 1e-06
        %v4486 = vrsqrt.pop %v4485
        %v4487 = vmul.f32 %v4479, %v4486
        %v4489 = vlaneseq
        %v4490 = vshrl.u32 %v4489, 7
        %v4491 = vsub.s32 0, %v4490
        %v4492 = vrot.slane %v4473, %v4491
        %v4494 = vmul.f32 %v4487, %v4492
        %v4496 = vlaneseq
        %v4497 = vshrl.u32 %v4496, 7
        %v4498 = vsub.s32 0, %v4497
        %v4499 = vrot.slane %v4474, %v4498
        %v4501 = vadd.f32 %v4494, %v4499
        %v4502 = vpack.c.bf16 %v4501, %v4501
        %v4503 = vld [vmem:[%s67] sm:$0xf]
        %v4504 = vld [vmem:[%s67 + $0x4] sm:$0xf]
        %v4505 = vld [vmem:[%s67 + $0x8] sm:$0xf]
        %v4506 = vld [vmem:[%s67 + $0xc] sm:$0xf]
        %v4507 = vld [vmem:[%s69] sm:$0x1]
        %v4509 = vlaneseq
        %v4510 = vshrl.u32 %v4509, 7
        %v4511 = vsub.s32 0, %v4510
        %v4512 = vrot.slane %v4507, %v4511
        %v4518 = vunpack.c.l.b16 %v4503
        %v4519 = vunpack.c.l.b16 %v4504
        %v4520 = vunpack.c.l.b16 %v4505
        %v4521 = vunpack.c.l.b16 %v4506
        %v4522 = vpack.c.b16 %v4519, %v4518
        %v4523 = vpack.c.b16 %v4521, %v4520
        %v4527 = vsel %vm1399, %v4502, 0
        %4529 = vmatprep.subr.bf16.mxu0 0
        %4530 = vmatpush1.bf16.msra.mxu0 0
        %4531 = vmatprep.subr.bf16.mxu0 0
        %4532 = vmatpush1.bf16.msra.mxu0 0
        %4533 = vmatprep.subr.bf16.mxu0 0
        %4534 = vmatpush1.bf16.msra.mxu0 0
        %4535 = vmatprep.subr.bf16.mxu0 0
        %4536 = vmatpush1.bf16.msra.mxu0 0
        %4537 = vmatprep.subr.bf16.mxu0 0
        %4538 = vmatpush1.bf16.msra.mxu0 0
        %4539 = vmatprep.subr.bf16.mxu0 0
        %4540 = vmatpush1.bf16.msra.mxu0 0
        %4541 = vmatprep.subr.bf16.mxu0 0
        %4542 = vmatpush1.bf16.msra.mxu0 %v4523
        %4543 = vmatprep.subr.bf16.mxu0 0
        %4544 = vmatpush1.bf16.msra.mxu0 %v4522
        %4545 = vmatprep.subr.bf16.mxu0 0
        %4546 = vmatpush2.bf16.msra.mxu0 0
        %4547 = vmatprep.subr.bf16.mxu0 0
        %4548 = vmatpush2.bf16.msra.mxu0 0
        %4549 = vmatprep.subr.bf16.mxu0 0
        %4550 = vmatpush2.bf16.msra.mxu0 0
        %4551 = vmatprep.subr.bf16.mxu0 0
        %4552 = vmatpush2.bf16.msra.mxu0 0
        %4553 = vmatprep.subr.bf16.mxu0 0
        %4554 = vmatpush2.bf16.msra.mxu0 0
        %4555 = vmatprep.subr.bf16.mxu0 0
        %4556 = vmatpush2.bf16.msra.mxu0 0
        %4557 = vmatprep.subr.bf16.mxu0 0
        %4558 = vmatpush2.bf16.msra.mxu0 0
        %4559 = vmatprep.subr.bf16.mxu0 0
        %4560 = vmatpush2.bf16.msra.mxu0 0
        %4561 = vmatprep.mubr.bf16.mxu0 0
        %4562 = vmatmul.mubr.bf16.gmra.mxu0 %v4527
        %v4563 = vpop.f32.mrf.mxu0
        %v4564 = vadd.f32 %v4512, %v4563
        %v4565 = vpop.f32.mrf.mxu0
        %v4566 = vpop.f32.mrf.mxu0
        %v4567 = vpop.f32.mrf.mxu0
        %4568 = vdwg.mxu0
        %v4569 = vmul.f32 %v4564, 0.5
        %v4570 = vmul.f32 %v4564, 0.70710677
        %vm4571 = vcmp.ge.f32.partialorder %v4570, 0.0
        %v4572 = vsel %vm4571, 1.0, -1.0
        %v4573 = vand.u32 2147483647, %v4570
        %v4574 = vmul.f32 %v4573, 0.3275911
        %v4575 = vadd.f32 %v4574, 1.0
        %v4576 = vrcp.pop %v4575
        %v4577 = vmul.f32 1.0, %v4576
        %v4578 = vmul.f32 %v4577, 1.0614054
        %v4579 = vadd.f32 %v4578, -1.4531521
        %v4580 = vmul.f32 %v4579, %v4577
        %v4581 = vadd.f32 %v4580, 1.4214138
        %v4582 = vmul.f32 %v4581, %v4577
        %v4583 = vadd.f32 %v4582, -0.28449672
        %v4584 = vmul.f32 %v4583, %v4577
        %v4585 = vadd.f32 %v4584, 0.2548296
        %v4586 = vmul.f32 %v4585, %v4577
        %v4587 = vsub.f32 0.0, %v4573
        %v4588 = vmul.f32 %v4587, %v4573
        %v4589 = vmul.f32 %v4588, 1.442695
        %v4590 = vpow.pop %v4589
        %v4591 = vmul.f32 %v4586, %v4590
        %v4592 = vsub.f32 1.0, %v4591
        %v4593 = vmul.f32 %v4572, %v4592
        %v4594 = vadd.f32 %v4593, 1.0
        %v4595 = vmul.f32 %v4569, %v4594
        %v4596 = vpack.c.bf16 %v4595, %v4595
        %v4597 = vld [vmem:[%s71] sm:$0xf]
        %v4598 = vld [vmem:[%s71 + $0x4] sm:$0xf]
        %v4599 = vld [vmem:[%s71 + $0x8] sm:$0xf]
        %v4600 = vld [vmem:[%s71 + $0xc] sm:$0xf]
        %v4601 = vld [vmem:[%s71 + $0x10] sm:$0xf]
        %v4602 = vld [vmem:[%s71 + $0x14] sm:$0xf]
        %v4603 = vld [vmem:[%s71 + $0x18] sm:$0xf]
        %v4604 = vld [vmem:[%s71 + $0x1c] sm:$0xf]
        %v4605 = vld [vmem:[%s71 + $0x20] sm:$0xf]
        %v4606 = vld [vmem:[%s71 + $0x24] sm:$0xf]
        %v4607 = vld [vmem:[%s71 + $0x28] sm:$0xf]
        %v4608 = vld [vmem:[%s71 + $0x2c] sm:$0xf]
        %v4609 = vld [vmem:[%s71 + $0x30] sm:$0xf]
        %v4610 = vld [vmem:[%s71 + $0x34] sm:$0xf]
        %v4611 = vld [vmem:[%s71 + $0x38] sm:$0xf]
        %v4612 = vld [vmem:[%s71 + $0x3c] sm:$0xf]
        %v4613 = vld [vmem:[%s73] sm:$0x1]
        %v4615 = vlaneseq
        %v4616 = vshrl.u32 %v4615, 7
        %v4617 = vsub.s32 0, %v4616
        %v4618 = vrot.slane %v4613, %v4617
        %v4636 = vunpack.c.l.b16 %v4597
        %v4637 = vunpack.c.l.b16 %v4598
        %v4638 = vunpack.c.l.b16 %v4599
        %v4639 = vunpack.c.l.b16 %v4600
        %v4640 = vunpack.c.l.b16 %v4601
        %v4641 = vunpack.c.l.b16 %v4602
        %v4642 = vunpack.c.l.b16 %v4603
        %v4643 = vunpack.c.l.b16 %v4604
        %v4644 = vunpack.c.l.b16 %v4605
        %v4645 = vunpack.c.l.b16 %v4606
        %v4646 = vunpack.c.l.b16 %v4607
        %v4647 = vunpack.c.l.b16 %v4608
        %v4648 = vunpack.c.l.b16 %v4609
        %v4649 = vunpack.c.l.b16 %v4610
        %v4650 = vunpack.c.l.b16 %v4611
        %v4651 = vunpack.c.l.b16 %v4612
        %v4652 = vpack.c.b16 %v4637, %v4636
        %v4653 = vpack.c.b16 %v4639, %v4638
        %v4654 = vpack.c.b16 %v4641, %v4640
        %v4655 = vpack.c.b16 %v4643, %v4642
        %v4656 = vpack.c.b16 %v4645, %v4644
        %v4657 = vpack.c.b16 %v4647, %v4646
        %v4658 = vpack.c.b16 %v4649, %v4648
        %v4659 = vpack.c.b16 %v4651, %v4650
        %4668 = vmatprep.subr.bf16.mxu0 0
        %4669 = vmatpush1.bf16.msra.mxu0 %v4659
        %4670 = vmatprep.subr.bf16.mxu0 0
        %4671 = vmatpush1.bf16.msra.mxu0 %v4658
        %4672 = vmatprep.subr.bf16.mxu0 0
        %4673 = vmatpush1.bf16.msra.mxu0 %v4657
        %4674 = vmatprep.subr.bf16.mxu0 0
        %4675 = vmatpush1.bf16.msra.mxu0 %v4656
        %4676 = vmatprep.subr.bf16.mxu0 0
        %4677 = vmatpush1.bf16.msra.mxu0 %v4655
        %4678 = vmatprep.subr.bf16.mxu0 0
        %4679 = vmatpush1.bf16.msra.mxu0 %v4654
        %4680 = vmatprep.subr.bf16.mxu0 0
        %4681 = vmatpush1.bf16.msra.mxu0 %v4653
        %4682 = vmatprep.subr.bf16.mxu0 0
        %4683 = vmatpush1.bf16.msra.mxu0 %v4652
        %4684 = vmatprep.subr.bf16.mxu0 0
        %4685 = vmatpush2.bf16.msra.mxu0 0
        %4686 = vmatprep.subr.bf16.mxu0 0
        %4687 = vmatpush2.bf16.msra.mxu0 0
        %4688 = vmatprep.subr.bf16.mxu0 0
        %4689 = vmatpush2.bf16.msra.mxu0 0
        %4690 = vmatprep.subr.bf16.mxu0 0
        %4691 = vmatpush2.bf16.msra.mxu0 0
        %4692 = vmatprep.subr.bf16.mxu0 0
        %4693 = vmatpush2.bf16.msra.mxu0 0
        %4694 = vmatprep.subr.bf16.mxu0 0
        %4695 = vmatpush2.bf16.msra.mxu0 0
        %4696 = vmatprep.subr.bf16.mxu0 0
        %4697 = vmatpush2.bf16.msra.mxu0 0
        %4698 = vmatprep.subr.bf16.mxu0 0
        %4699 = vmatpush2.bf16.msra.mxu0 0
        %4700 = vmatprep.mubr.bf16.mxu0 0
        %4701 = vmatmul.mubr.bf16.gmra.mxu0 %v4596
        %v4702 = vpop.f32.mrf.mxu0
        %v4703 = vadd.f32 %v4618, %v4702
        %v4704 = vpop.f32.mrf.mxu0
        %v4705 = vpop.f32.mrf.mxu0
        %v4706 = vpop.f32.mrf.mxu0
        %4707 = vdwg.mxu0
        %v4708 = vadd.f32 %v4472, %v4703
        %v4709 = vld [vmem:[%s75] sm:$0x1]
        %v4710 = vld [vmem:[%s77] sm:$0x1]
        %v4711 = vsel %vm1337, %v4708, 0.0
        %4712 = vadd.xlane.f32.xlu0 %v4711
        %v4713 = vpop.xlane.xlu0 %4712
        %v4714 = vmul.f32 %v4713, %v1350
        %v4715 = vsub.f32 %v4708, %v4714
        %v4716 = vmul.f32 %v4715, %v4715
        %v4717 = vsel %vm1337, %v4716, 0.0
        %4718 = vadd.xlane.f32.xlu0 %v4717
        %v4719 = vpop.xlane.xlu0 %4718
        %v4720 = vmul.f32 %v4719, %v1350
        %v4721 = vadd.f32 %v4720, 1e-06
        %v4722 = vrsqrt.pop %v4721
        %v4723 = vmul.f32 %v4715, %v4722
        %v4724 = vmul.f32 %v4723, %v4709
        %v4725 = vadd.f32 %v4724, %v4710
        %4726 = vst.msk [vmem:[%s1174] sm:$0x1] %vm1337, %v4725
        %s4727 = sand.u32 %s925, 1
        %s4728 = scalar_lea.sflag [#allocation4], %s4727
        %s4729 = sand.u32 %s925, 1
        %s4730 = scalar_lea.vmem [#allocation3], %s4729
        // Predicated region
        $region177: #{forward.1} parent=175 // pred_check
          %p4731 = pneg %p935
        $region178: #{forward.1} parent=175 // pred_check_branch
          %4733 = sbr.rel (%p4731) target = $region180
        $region179: #{forward.1} parent=175 // pred_region
          %s4735 = ssub.s32 16, 16
          %4736 = vsyncadd %s4728, %s4735
          %s4737 = smul.addr %s93, 16
          %s4738 = scalar_lea.hbm %s79, %s4737
          %s4740 = sshll.u32 %s4730, 4
          %s4741 = int_to_ptr.vmem [resolvable:$true] %s4740
          %4743 = dma.vmem_to_hbm [thread:$0]  %s4741, 16, %s4738, %s4728
        $region180: #{forward.1} parent=175 // pred_fallthru
          _
      $region176: #{forward.1} parent=5 // pred_fallthru
        _
      %p4744 = scmp.le.s32.totalorder 2, %s88
      // Predicated region
      $region181: #{forward.1} parent=5 // pred_check
        %p4745 = pneg %p4744
      $region182: #{forward.1} parent=5 // pred_check_branch
        %4747 = sbr.rel (%p4745) target = $region184
      $region183: #{forward.1} parent=5 // pred_region
        %s4748 = ssub.s32 %s88, 2
        // Predicated region
        $region185: #{forward.1} parent=183 // pred_check
          %p4749 = pneg %p941
        $region186: #{forward.1} parent=183 // pred_check_branch
          %4751 = sbr.rel (%p4749) target = $region188
        $region187: #{forward.1} parent=183 // pred_region
          %s4752 = sand.u32 %s926, 1
          %s4753 = scalar_lea.sflag [#allocation4], %s4752
          %s4754 = sand.u32 %s926, 1
          %s4755 = scalar_lea.vmem [#allocation3], %s4754
          %4756 = dma.done %s4753, 16
        $region188: #{forward.1} parent=183 // pred_fallthru
          _
      $region184: #{forward.1} parent=5 // pred_fallthru
        _
    $region6: #{forward.1} parent=1 // loop_footer
      %s92 = sadd.s32 1, %s88
    $region7: #{forward.1} parent=1 // loop_footer_branch
      %87 = sbr.rel target = $region3
    $region8: #{forward.1} parent=1 // loop_exit
      _
    %4757 = vsyncpa [#allocation4], 1
    %s4758 = scalar_lea.sflag [#allocation4], 1
    %4759 = vsyncpa %s4758, 1

</llo_original>
